<compile_context>
chip_gen: v7x
topology: tpu7x:2x2x1
jax: 0.10.0
libtpu: 0.0.40
codegen_flags: <defaults>
</compile_context>

<pallas_src>
import functools

import jax
import jax.numpy as jnp
from jax import lax
from jax.experimental import pallas as pl
from jax.experimental.pallas import tpu as pltpu


# Conv2 geometry constants (fc in_features 3200 = 32ch * 10 * 10 positions).
_P = 100                 # conv2 output positions (10 x 10)
_NG = 10                 # position groups = conv2 output rows (10 pos / group)
_GP = _P // _NG          # positions per group
_GK = _GP * 256          # p2 patch columns per group (10 pos * 4*4*16)
_GN = 384                # grouped conv2 output lanes: 10*32 = 320, padded to 384
_NH = 128                # lane-packed heads width: [mean | value | zero pad]


def _round_up(x, m):
    return (x + m - 1) // m * m


def _pick_tile(m, max_tile, align=8):
    """Largest tile <= max_tile; if everything fits in one tile, try to split
    into two aligned tiles so v7x's two TensorCores both get a grid step."""
    if m > max_tile:
        return max_tile
    half = _round_up(pl.cdiv(m, 2), align)
    return m if half >= m else half


# ---------------------------------------------------------------------------
# Kernel 1: conv1 as matmul,  h1 = relu(p1 @ w1 + b1)
# ---------------------------------------------------------------------------
def _conv1_kernel(x_ref, w_ref, b_ref, o_ref):
    acc = jnp.dot(x_ref[...], w_ref[...], preferred_element_type=jnp.float32)
    o_ref[...] = jnp.maximum(acc + b_ref[...], 0.0).astype(o_ref.dtype)


def conv1_matmul(p1, w1, b1, *, tile_m=1024):
    M, K = p1.shape
    _, N = w1.shape
    tm = _pick_tile(M, tile_m)
    cost = pl.CostEstimate(
        flops=int(2 * M * K * N),
        transcendentals=0,
        bytes_accessed=int(M * K * 2 + K * N * 2 + N * 4 + M * N * 2))
    return pl.pallas_call(
        _conv1_kernel,
        out_shape=jax.ShapeDtypeStruct((M, N), jnp.bfloat16),
        grid=(pl.cdiv(M, tm),),
        in_specs=[
            pl.BlockSpec((tm, K), lambda i: (i, 0)),
            pl.BlockSpec((K, N), lambda i: (0, 0)),   # weight resident across grid
            pl.BlockSpec((1, N), lambda i: (0, 0)),
        ],
        out_specs=pl.BlockSpec((tm, N), lambda i: (i, 0)),
        compiler_params=pltpu.CompilerParams(
            dimension_semantics=("parallel",),
            vmem_limit_bytes=32 * 1024 * 1024),
        cost_estimate=cost,
    )(p1, w1, b1)


# ---------------------------------------------------------------------------
# Kernel 2: conv2 + fc + heads fused.  Grid = (batch tiles, 10 position groups).
#   per group:  h2g = relu(p2_blk (tb,2560) @ w2g (2560,384) + b2g)   [block-diag conv2]
#               acc += h2g @ wfc_blk (384,256)                         [partial fc]
#   last group: out = relu(acc + bfc) @ wh (256,128) + bh              [packed heads]
# ---------------------------------------------------------------------------
def _conv2_fc_heads_kernel(p2_ref, w2g_ref, b2g_ref, wfc_ref, bfc_ref,
                           wh_ref, bh_ref, out_ref, acc_ref):
    j = pl.program_id(1)

    @pl.when(j == 0)
    def _():
        acc_ref[...] = jnp.zeros_like(acc_ref)

    h2 = jnp.dot(p2_ref[...], w2g_ref[...], preferred_element_type=jnp.float32)
    h2 = jnp.maximum(h2 + b2g_ref[...], 0.0).astype(jnp.bfloat16)      # (tb, 384)
    acc_ref[...] += jnp.dot(h2, wfc_ref[...],
                            preferred_element_type=jnp.float32)        # (tb, 256)

    @pl.when(j == pl.num_programs(1) - 1)
    def _():
        feat = jnp.maximum(acc_ref[...] + bfc_ref[...], 0.0).astype(jnp.bfloat16)
        out_ref[...] = (jnp.dot(feat, wh_ref[...],
                                preferred_element_type=jnp.float32)
                        + bh_ref[...]).astype(out_ref.dtype)


def conv2_fc_heads(p2, w2g, b2g, wfc, bfc, wh, bh, *, tile_b=128):
    B, KP = p2.shape                          # KP = 25600
    tb = _pick_tile(B, tile_b)
    flops = int(2 * B * (_NG * _GK * _GN + _NG * _GN * 256 + 256 * _NH))
    bytes_accessed = int(B * KP * 2
                         + (_GK * _GN + _NG * _GN * 256 + 256 * _NH) * 2
                         + (_GN + 256 + _NH) * 4
                         + B * _NH * 4)
    return pl.pallas_call(
        _conv2_fc_heads_kernel,
        out_shape=jax.ShapeDtypeStruct((B, _NH), jnp.float32),
        grid=(pl.cdiv(B, tb), _NG),
        in_specs=[
            pl.BlockSpec((tb, _GK), lambda i, j: (i, j)),     # patch group
            pl.BlockSpec((_GK, _GN), lambda i, j: (0, 0)),    # block-diag conv2 weight
            pl.BlockSpec((1, _GN), lambda i, j: (0, 0)),
            pl.BlockSpec((_GN, 256), lambda i, j: (j, 0)),    # fc weight rows for group j
            pl.BlockSpec((1, 256), lambda i, j: (0, 0)),
            pl.BlockSpec((256, _NH), lambda i, j: (0, 0)),    # packed mean|value head
            pl.BlockSpec((1, _NH), lambda i, j: (0, 0)),
        ],
        out_specs=pl.BlockSpec((tb, _NH), lambda i, j: (i, 0)),
        scratch_shapes=[pltpu.VMEM((tb, 256), jnp.float32)],  # fc accumulator
        compiler_params=pltpu.CompilerParams(
            dimension_semantics=("parallel", "arbitrary"),
            vmem_limit_bytes=32 * 1024 * 1024),
        cost_estimate=pl.CostEstimate(flops=flops, transcendentals=0,
                                      bytes_accessed=bytes_accessed),
    )(p2, w2g, b2g, wfc, bfc, wh, bh)


# ---------------------------------------------------------------------------
# im2col glue (XLA): 4 wide contiguous slices + one transpose per conv.
# ---------------------------------------------------------------------------
def _conv1_patches(x):
    """conv1 (8x8, stride 4) im2col straight from NCHW f32 input.

    Rows ordered (b, oh, ow); columns ordered (a, r, d, s, c4) with
    ki = 4a + r, kj = 4d + s, c4 = channel zero-padded 3 -> 4, so K = 256.
    The NCHW->NHWC transpose is folded into the single big transpose.
    """
    B, C, H, W = x.shape
    s = 4
    assert H == W and H % s == 0, (H, W)
    oh = H // s - 1                                          # 22 for 92
    xb = jnp.pad(x.astype(jnp.bfloat16), ((0, 0), (0, 1), (0, 0), (0, 0)))
    views = [xb[:, :, s * a:s * (a + oh), s * d:s * (d + oh)]
             for a in (0, 1) for d in (0, 1)]                # each (B, 4, 88, 88)
    v = jnp.stack(views, axis=1)                             # (B, ad, c, 88, 88)
    v = v.reshape(B, 2, 2, 4, oh, s, oh, s)                  # (B, a, d, c, oh, r, ow, s)
    v = v.transpose(0, 4, 6, 1, 5, 2, 7, 3)                  # (B, oh, ow, a, r, d, s, c)
    return v.reshape(B * oh * oh, 2 * s * 2 * s * 4), oh     # (B*484, 256)


def _conv2_patches(h1, B, oh1):
    """conv2 (4x4, stride 2) im2col on NHWC h1, flattened to (B, 100*256)."""
    C = 16
    s = 2
    oh = oh1 // s - 1                                        # 10
    h = h1.reshape(B, oh1, oh1, C)
    views = [h[:, s * a:s * (a + oh), s * d:s * (d + oh), :]
             for a in (0, 1) for d in (0, 1)]                # each (B, 20, 20, 16)
    v = jnp.stack(views, axis=1)                             # (B, ad, 20, 20, 16)
    v = v.reshape(B, 2, 2, oh, s, oh, s, C)                  # (B, a, d, oh, r, ow, s, c)
    v = v.transpose(0, 3, 5, 1, 4, 2, 6, 7)                  # (B, oh, ow, a, r, d, s, c)
    return v.reshape(B, oh * oh * 2 * s * 2 * s * C)         # (B, 25600)


# ---------------------------------------------------------------------------
# Parameter init (PyTorch layout) and one-time kernel-ready packing
# ---------------------------------------------------------------------------
def _uniform(key, shape, bound):
    return jax.random.uniform(key, shape, jnp.float32, -bound, bound)


def init_params(key, action_dim):
    ks = jax.random.split(key, 10)
    p = {}
    b1 = 1.0 / jnp.sqrt(3 * 8 * 8)
    p["conv1_w"] = _uniform(ks[0], (16, 3, 8, 8), b1)
    p["conv1_b"] = _uniform(ks[1], (16,), b1)
    b2 = 1.0 / jnp.sqrt(16 * 4 * 4)
    p["conv2_w"] = _uniform(ks[2], (32, 16, 4, 4), b2)
    p["conv2_b"] = _uniform(ks[3], (32,), b2)
    b3 = 1.0 / jnp.sqrt(3200.0)
    p["fc_w"] = _uniform(ks[4], (256, 3200), b3)
    p["fc_b"] = _uniform(ks[5], (256,), b3)
    b4 = 1.0 / jnp.sqrt(256.0)
    p["mean_w"] = _uniform(ks[6], (action_dim, 256), b4)
    p["mean_b"] = _uniform(ks[7], (action_dim,), b4)
    p["value_w"] = _uniform(ks[8], (1, 256), b4)
    p["value_b"] = _uniform(ks[9], (1,), b4)
    p["log_std"] = jnp.zeros((action_dim,), jnp.float32)
    return p


def prepare_params(p):
    """One-time reshuffle of PyTorch-layout params into kernel-ready form."""
    A = p["mean_w"].shape[0]
    assert A + 1 <= _NH, A
    f = {}
    # conv1 (O,C,8,8) -> rows (a, r, d, s, c4) matching _conv1_patches; c padded 3->4.
    w1 = p["conv1_w"].reshape(16, 3, 2, 4, 2, 4).transpose(2, 3, 4, 5, 1, 0)
    w1 = jnp.pad(w1, ((0, 0),) * 4 + ((0, 1), (0, 0)))
    f["w1"] = w1.reshape(256, 16).astype(jnp.bfloat16)
    f["b1"] = p["conv1_b"].reshape(1, 16).astype(jnp.float32)

    # conv2 (O,C,4,4) -> (256, 32) rows (a, r, d, s, c), then block-diagonal over
    # the 10 positions of one conv2 output row; N padded 320 -> 384.
    w2 = (p["conv2_w"].reshape(32, 16, 2, 2, 2, 2)
          .transpose(2, 3, 4, 5, 1, 0).reshape(256, 32))
    w2g = jnp.kron(jnp.eye(_GP, dtype=w2.dtype), w2)                 # (2560, 320)
    f["w2g"] = jnp.pad(w2g, ((0, 0), (0, _GN - _GP * 32))).astype(jnp.bfloat16)
    b2g = jnp.tile(p["conv2_b"], _GP)
    f["b2g"] = jnp.pad(b2g, (0, _GN - _GP * 32)).reshape(1, _GN).astype(jnp.float32)

    # fc weight: PyTorch consumes h2 flattened (c, oh, ow); our grouped conv2
    # output is ordered (oh=group, ow, c), each group's 320 rows padded to 384.
    wfc = (p["fc_w"].reshape(256, 32, 10, 10).transpose(2, 3, 1, 0)  # (oh, ow, c, n)
           .reshape(_NG, _GP * 32, 256))
    wfc = jnp.pad(wfc, ((0, 0), (0, _GN - _GP * 32), (0, 0)))
    f["wfc"] = wfc.reshape(_NG * _GN, 256).astype(jnp.bfloat16)
    f["bfc"] = p["fc_b"].reshape(1, 256).astype(jnp.float32)

    # Lane-packed heads: columns [0:A] mean, [A] value, rest zero -> one unmasked
    # (tb, 128) store; sliced apart in the wrapper.
    wh = jnp.zeros((256, _NH), jnp.float32)
    wh = wh.at[:, :A].set(p["mean_w"].T).at[:, A].set(p["value_w"][0])
    f["wh"] = wh.astype(jnp.bfloat16)
    bh = jnp.zeros((_NH,), jnp.float32)
    bh = bh.at[:A].set(p["mean_b"]).at[A].set(p["value_b"][0])
    f["bh"] = bh.reshape(1, _NH)
    f["log_std"] = p["log_std"]
    return f


# ---------------------------------------------------------------------------
# CNNPolicy.forward (eval mode)
# ---------------------------------------------------------------------------
def cnn_policy_forward(kp, x, *, action_dim):
    B = x.shape[0]
    p1, oh1 = _conv1_patches(x)                               # (B*484, 256) bf16
    h1 = conv1_matmul(p1, kp["w1"], kp["b1"])                 # (B*484, 16) bf16
    p2 = _conv2_patches(h1, B, oh1)                           # (B, 25600) bf16
    heads = conv2_fc_heads(p2, kp["w2g"], kp["b2g"], kp["wfc"], kp["bfc"],
                           kp["wh"], kp["bh"])                # (B, 128) f32
    action = heads[:, :action_dim]
    value = heads[:, action_dim:action_dim + 1]
    # std = exp(log_std) parameterizes Normal(mean, std) for training-mode sampling.
    # TODO(synk): training-mode action = Normal(mean, std).sample(); eval returns mean.
    return action, value


# ---------------------------------------------------------------------------
# Pure-JAX reference (mirrors the PyTorch module, f32) for a sanity check
# ---------------------------------------------------------------------------
def _reference_forward(p, x):
    dn = ("NCHW", "OIHW", "NCHW")
    h1 = jax.nn.relu(lax.conv_general_dilated(x, p["conv1_w"], (4, 4), "VALID",
                                              dimension_numbers=dn)
                     + p["conv1_b"][None, :, None, None])
    h2 = jax.nn.relu(lax.conv_general_dilated(h1, p["conv2_w"], (2, 2), "VALID",
                                              dimension_numbers=dn)
                     + p["conv2_b"][None, :, None, None])
    h2f = h2.reshape(x.shape[0], -1)
    feat = jax.nn.relu(h2f @ p["fc_w"].T + p["fc_b"])
    mean = feat @ p["mean_w"].T + p["mean_b"]
    value = feat @ p["value_w"].T + p["value_b"]
    return mean, value


if __name__ == "__main__":
    key = jax.random.PRNGKey(0)
    k_in, k_params = jax.random.split(key)

    B, action_dim = 2, 4
    # fc in_features = 3200 = 32*10*10  =>  conv input spatial must be 92x92 (NCHW).
    x = jax.random.normal(k_in, (B, 3, 92, 92), dtype=jnp.float32)
    params = init_params(k_params, action_dim)
    kparams = prepare_params(params)          # hoisted: runs once, not per forward

    forward = jax.jit(functools.partial(cnn_policy_forward, action_dim=action_dim))
    action, value = forward(kparams, x)
    jax.block_until_ready((action, value))

    assert action.shape == (B, action_dim), action.shape
    assert value.shape == (B, 1), value.shape
    assert action.dtype == jnp.float32 and value.dtype == jnp.float32

    # Numerical sanity check vs. the f32 reference (bf16 matmul tolerance).
    ref_a, ref_v = jax.jit(_reference_forward)(params, x)
    jax.block_until_ready((ref_a, ref_v))
    assert jnp.allclose(action, ref_a, atol=5e-2, rtol=1e-1), \
        float(jnp.max(jnp.abs(action - ref_a)))
    assert jnp.allclose(value, ref_v, atol=5e-2, rtol=1e-1), \
        float(jnp.max(jnp.abs(value - ref_v)))

    print("KERNEL_OK")
</pallas_src>

<mosaic_0001>
module attributes {stable_mosaic.version = 11 : i64} {
  func.func @_conv1_kernel(%arg0: i32, %arg1: memref<488x256xbf16, #tpu.memory_space<vmem>>, %arg2: memref<256x16xbf16, #tpu.memory_space<vmem>>, %arg3: memref<1x16xf32, #tpu.memory_space<vmem>>, %arg4: memref<488x16xbf16, #tpu.memory_space<vmem>>) attributes {dimension_semantics = [#tpu.dimension_semantics<parallel>], iteration_bounds = array<i64: 2>, scalar_prefetch = 0 : i64, scratch_operands = 0 : i64, tpu.core_type = #tpu.core_type<tc>, window_params = [{transform_indices = @transform_0, window_bounds = array<i64: 488, 256>}, {pipeline_mode = #tpu.pipeline_mode<synchronous>, transform_indices = @transform_1, window_bounds = array<i64: 256, 16>}, {pipeline_mode = #tpu.pipeline_mode<synchronous>, transform_indices = @transform_2, window_bounds = array<i64: 1, 16>}, {transform_indices = @transform_3, window_bounds = array<i64: 488, 16>}]} {
    %c0 = arith.constant 0 : index
    %c0_0 = arith.constant 0 : index
    %0 = vector.load %arg1[%c0, %c0_0] : memref<488x256xbf16, #tpu.memory_space<vmem>>, vector<488x256xbf16>
    %c0_1 = arith.constant 0 : index
    %c0_2 = arith.constant 0 : index
    %1 = vector.load %arg2[%c0_1, %c0_2] : memref<256x16xbf16, #tpu.memory_space<vmem>>, vector<256x16xbf16>
    %cst = arith.constant dense<0.000000e+00> : vector<488x16xf32>
    %2 = tpu.matmul %0, %1, %cst {dimension_numbers = #tpu.dot_dimension_numbers<[1], [0], [0], [1], [0, 0, 1, 1], [], []>} : vector<488x256xbf16>, vector<256x16xbf16>, vector<488x16xf32> -> vector<488x16xf32>
    %c0_3 = arith.constant 0 : index
    %c0_4 = arith.constant 0 : index
    %3 = vector.load %arg3[%c0_3, %c0_4] : memref<1x16xf32, #tpu.memory_space<vmem>>, vector<1x16xf32>
    %4 = vector.broadcast %3 : vector<1x16xf32> to vector<488x16xf32>
    %5 = arith.addf %2, %4 : vector<488x16xf32>
    %cst_5 = arith.constant 0.000000e+00 : f32
    %6 = vector.broadcast %cst_5 : f32 to vector<488x16xf32>
    %7 = arith.maximumf %5, %6 : vector<488x16xf32>
    %8 = arith.truncf %7 : vector<488x16xf32> to vector<488x16xbf16>
    %c0_6 = arith.constant 0 : index
    %c0_7 = arith.constant 0 : index
    %9 = vector.load %arg4[%c0_6, %c0_7] : memref<488x16xbf16, #tpu.memory_space<vmem>>, vector<488x16xbf16>
    tpu.vector_store %arg4[%c0_6, %c0_7], %8 {strides = array<i32>} : memref<488x16xbf16, #tpu.memory_space<vmem>>, vector<488x16xbf16>,
    return
  }
  func.func @transform_0(%arg0: i32) -> (i32, i32) {
    %c0_i32 = arith.constant 0 : i32
    %c0_i32_0 = arith.constant 0 : i32
    return %arg0, %c0_i32 : i32, i32
  }
  func.func @transform_1(%arg0: i32) -> (i32, i32) {
    %c0_i32 = arith.constant 0 : i32
    %c0_i32_0 = arith.constant 0 : i32
    %c0_i32_1 = arith.constant 0 : i32
    return %c0_i32, %c0_i32_0 : i32, i32
  }
  func.func @transform_2(%arg0: i32) -> (i32, i32) {
    %c0_i32 = arith.constant 0 : i32
    %c0_i32_0 = arith.constant 0 : i32
    %c0_i32_1 = arith.constant 0 : i32
    return %c0_i32, %c0_i32_0 : i32, i32
  }
  func.func @transform_3(%arg0: i32) -> (i32, i32) {
    %c0_i32 = arith.constant 0 : i32
    %c0_i32_0 = arith.constant 0 : i32
    return %arg0, %c0_i32 : i32, i32
  }
}

module attributes {stable_mosaic.version = 11 : i64} {
  func.func @_conv2_fc_heads_kernel(%arg0: i32, %arg1: i32, %arg2: memref<2x2560xbf16, #tpu.memory_space<vmem>>, %arg3: memref<2560x384xbf16, #tpu.memory_space<vmem>>, %arg4: memref<1x384xf32, #tpu.memory_space<vmem>>, %arg5: memref<384x256xbf16, #tpu.memory_space<vmem>>, %arg6: memref<1x256xf32, #tpu.memory_space<vmem>>, %arg7: memref<256x128xbf16, #tpu.memory_space<vmem>>, %arg8: memref<1x128xf32, #tpu.memory_space<vmem>>, %arg9: memref<2x128xf32, #tpu.memory_space<vmem>>, %arg10: memref<2x256xf32, #tpu.memory_space<vmem>>) attributes {dimension_semantics = [#tpu.dimension_semantics<parallel>, #tpu.dimension_semantics<arbitrary>], iteration_bounds = array<i64: 1, 10>, scalar_prefetch = 0 : i64, scratch_operands = 1 : i64, tpu.core_type = #tpu.core_type<tc>, window_params = [{transform_indices = @transform_0, window_bounds = array<i64: 2, 2560>}, {pipeline_mode = #tpu.pipeline_mode<synchronous>, transform_indices = @transform_1, window_bounds = array<i64: 2560, 384>}, {pipeline_mode = #tpu.pipeline_mode<synchronous>, transform_indices = @transform_2, window_bounds = array<i64: 1, 384>}, {transform_indices = @transform_3, window_bounds = array<i64: 384, 256>}, {pipeline_mode = #tpu.pipeline_mode<synchronous>, transform_indices = @transform_4, window_bounds = array<i64: 1, 256>}, {pipeline_mode = #tpu.pipeline_mode<synchronous>, transform_indices = @transform_5, window_bounds = array<i64: 256, 128>}, {pipeline_mode = #tpu.pipeline_mode<synchronous>, transform_indices = @transform_6, window_bounds = array<i64: 1, 128>}, {transform_indices = @transform_7, window_bounds = array<i64: 2, 128>}]} {
    %c0_i32 = arith.constant 0 : i32
    %0 = arith.cmpi eq, %arg1, %c0_i32 : i32
    %1 = arith.extui %0 : i1 to i32
    %c0_i32_0 = arith.constant 0 : i32
    %2 = arith.cmpi ne, %1, %c0_i32_0 : i32
    scf.if %2 {
      %cst_15 = arith.constant 0.000000e+00 : f32
      %20 = vector.broadcast %cst_15 : f32 to vector<2x256xf32>
      %c0_16 = arith.constant 0 : index
      %c0_17 = arith.constant 0 : index
      %21 = vector.load %arg10[%c0_16, %c0_17] : memref<2x256xf32, #tpu.memory_space<vmem>>, vector<2x256xf32>
      tpu.vector_store %arg10[%c0_16, %c0_17], %20 {strides = array<i32>} : memref<2x256xf32, #tpu.memory_space<vmem>>, vector<2x256xf32>,
    } else {
    }
    %c0 = arith.constant 0 : index
    %c0_1 = arith.constant 0 : index
    %3 = vector.load %arg2[%c0, %c0_1] : memref<2x2560xbf16, #tpu.memory_space<vmem>>, vector<2x2560xbf16>
    %c0_2 = arith.constant 0 : index
    %c0_3 = arith.constant 0 : index
    %4 = vector.load %arg3[%c0_2, %c0_3] : memref<2560x384xbf16, #tpu.memory_space<vmem>>, vector<2560x384xbf16>
    %cst = arith.constant dense<0.000000e+00> : vector<2x384xf32>
    %5 = tpu.matmul %3, %4, %cst {dimension_numbers = #tpu.dot_dimension_numbers<[1], [0], [0], [1], [0, 0, 1, 1], [], []>} : vector<2x2560xbf16>, vector<2560x384xbf16>, vector<2x384xf32> -> vector<2x384xf32>
    %c0_4 = arith.constant 0 : index
    %c0_5 = arith.constant 0 : index
    %6 = vector.load %arg4[%c0_4, %c0_5] : memref<1x384xf32, #tpu.memory_space<vmem>>, vector<1x384xf32>
    %7 = vector.broadcast %6 : vector<1x384xf32> to vector<2x384xf32>
    %8 = arith.addf %5, %7 : vector<2x384xf32>
    %cst_6 = arith.constant 0.000000e+00 : f32
    %9 = vector.broadcast %cst_6 : f32 to vector<2x384xf32>
    %10 = arith.maximumf %8, %9 : vector<2x384xf32>
    %11 = arith.truncf %10 : vector<2x384xf32> to vector<2x384xbf16>
    %c0_7 = arith.constant 0 : index
    %c0_8 = arith.constant 0 : index
    %12 = vector.load %arg10[%c0_7, %c0_8] : memref<2x256xf32, #tpu.memory_space<vmem>>, vector<2x256xf32>
    %c0_9 = arith.constant 0 : index
    %c0_10 = arith.constant 0 : index
    %13 = vector.load %arg5[%c0_9, %c0_10] : memref<384x256xbf16, #tpu.memory_space<vmem>>, vector<384x256xbf16>
    %cst_11 = arith.constant dense<0.000000e+00> : vector<2x256xf32>
    %14 = tpu.matmul %11, %13, %cst_11 {dimension_numbers = #tpu.dot_dimension_numbers<[1], [0], [0], [1], [0, 0, 1, 1], [], []>} : vector<2x384xbf16>, vector<384x256xbf16>, vector<2x256xf32> -> vector<2x256xf32>
    %15 = arith.addf %12, %14 : vector<2x256xf32>
    %c0_12 = arith.constant 0 : index
    %c0_13 = arith.constant 0 : index
    %16 = vector.load %arg10[%c0_12, %c0_13] : memref<2x256xf32, #tpu.memory_space<vmem>>, vector<2x256xf32>
    tpu.vector_store %arg10[%c0_12, %c0_13], %15 {strides = array<i32>} : memref<2x256xf32, #tpu.memory_space<vmem>>, vector<2x256xf32>,
    %c9_i32 = arith.constant 9 : i32
    %17 = arith.cmpi eq, %arg1, %c9_i32 : i32
    %18 = arith.extui %17 : i1 to i32
    %c0_i32_14 = arith.constant 0 : i32
    %19 = arith.cmpi ne, %18, %c0_i32_14 : i32
    scf.if %19 {
      %c0_15 = arith.constant 0 : index
      %c0_16 = arith.constant 0 : index
      %20 = vector.load %arg10[%c0_15, %c0_16] : memref<2x256xf32, #tpu.memory_space<vmem>>, vector<2x256xf32>
      %c0_17 = arith.constant 0 : index
      %c0_18 = arith.constant 0 : index
      %21 = vector.load %arg6[%c0_17, %c0_18] : memref<1x256xf32, #tpu.memory_space<vmem>>, vector<1x256xf32>
      %22 = vector.broadcast %21 : vector<1x256xf32> to vector<2x256xf32>
      %23 = arith.addf %20, %22 : vector<2x256xf32>
      %cst_19 = arith.constant 0.000000e+00 : f32
      %24 = vector.broadcast %cst_19 : f32 to vector<2x256xf32>
      %25 = arith.maximumf %23, %24 : vector<2x256xf32>
      %26 = arith.truncf %25 : vector<2x256xf32> to vector<2x256xbf16>
      %c0_20 = arith.constant 0 : index
      %c0_21 = arith.constant 0 : index
      %27 = vector.load %arg7[%c0_20, %c0_21] : memref<256x128xbf16, #tpu.memory_space<vmem>>, vector<256x128xbf16>
      %cst_22 = arith.constant dense<0.000000e+00> : vector<2x128xf32>
      %28 = tpu.matmul %26, %27, %cst_22 {dimension_numbers = #tpu.dot_dimension_numbers<[1], [0], [0], [1], [0, 0, 1, 1], [], []>} : vector<2x256xbf16>, vector<256x128xbf16>, vector<2x128xf32> -> vector<2x128xf32>
      %c0_23 = arith.constant 0 : index
      %c0_24 = arith.constant 0 : index
      %29 = vector.load %arg8[%c0_23, %c0_24] : memref<1x128xf32, #tpu.memory_space<vmem>>, vector<1x128xf32>
      %30 = vector.broadcast %29 : vector<1x128xf32> to vector<2x128xf32>
      %31 = arith.addf %28, %30 : vector<2x128xf32>
      %c0_25 = arith.constant 0 : index
      %c0_26 = arith.constant 0 : index
      %32 = vector.load %arg9[%c0_25, %c0_26] : memref<2x128xf32, #tpu.memory_space<vmem>>, vector<2x128xf32>
      tpu.vector_store %arg9[%c0_25, %c0_26], %31 {strides = array<i32>} : memref<2x128xf32, #tpu.memory_space<vmem>>, vector<2x128xf32>,
    } else {
    }
    return
  }
  func.func @transform_0(%arg0: i32, %arg1: i32) -> (i32, i32) {
    %c0_i32 = arith.constant 0 : i32
    return %arg0, %arg1 : i32, i32
  }
  func.func @transform_1(%arg0: i32, %arg1: i32) -> (i32, i32) {
    %c0_i32 = arith.constant 0 : i32
    %c0_i32_0 = arith.constant 0 : i32
    %c0_i32_1 = arith.constant 0 : i32
    return %c0_i32, %c0_i32_0 : i32, i32
  }
  func.func @transform_2(%arg0: i32, %arg1: i32) -> (i32, i32) {
    %c0_i32 = arith.constant 0 : i32
    %c0_i32_0 = arith.constant 0 : i32
    %c0_i32_1 = arith.constant 0 : i32
    return %c0_i32, %c0_i32_0 : i32, i32
  }
  func.func @transform_3(%arg0: i32, %arg1: i32) -> (i32, i32) {
    %c0_i32 = arith.constant 0 : i32
    %c0_i32_0 = arith.constant 0 : i32
    return %arg1, %c0_i32 : i32, i32
  }
  func.func @transform_4(%arg0: i32, %arg1: i32) -> (i32, i32) {
    %c0_i32 = arith.constant 0 : i32
    %c0_i32_0 = arith.constant 0 : i32
    %c0_i32_1 = arith.constant 0 : i32
    return %c0_i32, %c0_i32_0 : i32, i32
  }
  func.func @transform_5(%arg0: i32, %arg1: i32) -> (i32, i32) {
    %c0_i32 = arith.constant 0 : i32
    %c0_i32_0 = arith.constant 0 : i32
    %c0_i32_1 = arith.constant 0 : i32
    return %c0_i32, %c0_i32_0 : i32, i32
  }
  func.func @transform_6(%arg0: i32, %arg1: i32) -> (i32, i32) {
    %c0_i32 = arith.constant 0 : i32
    %c0_i32_0 = arith.constant 0 : i32
    %c0_i32_1 = arith.constant 0 : i32
    return %c0_i32, %c0_i32_0 : i32, i32
  }
  func.func @transform_7(%arg0: i32, %arg1: i32) -> (i32, i32) {
    %c0_i32 = arith.constant 0 : i32
    %c0_i32_0 = arith.constant 0 : i32
    return %arg0, %c0_i32 : i32, i32
  }
}

</mosaic_0001>

<llo_original>
// kernel: cnn_policy_forward.2
$region0: #{cnn_policy_forward.2}
  #allocation0 [shape = 'u32[]', space=smem, size = 0x4, offset = 0x4, fixed_abs, tag = 'smem constant byte address 0x4 - core index']
  #allocation1 [shape = 'u32[144,128]{1,0:T(1,128)}', space=vmem, size = 0x12000, scoped, tag = 'internal scratch']
  %s0 = inlined_call_operand.vmem [shape: bf16[968,256], index: 0, kind: input, shape index: {}]
  %s1 = inlined_call_operand.vmem [shape: bf16[256,16], index: 1, kind: input, shape index: {}]
  %s2 = inlined_call_operand.vmem [shape: f32[1,16], index: 2, kind: input, shape index: {}]
  %s3 = inlined_call_operand.vmem [shape: bf16[968,16], index: 3, kind: output, shape index: {}]
  %s4 = sld [smem:[#allocation0]]
  $region89: #{cnn_policy_forward.2} parent=0
    _
  %s6 = ssub.s32 1, %s4
  %s7 = scalar_select 0, %s6, %s4
  $region1: #{cnn_policy_forward.2} parent=0
    #allocation2 [shape = 'u8[249856]{0}', space=vmem, size = 0x3d000, scoped, tag = 'output window, operand 0']
    loop: start=0, step=1, limit=4
    $region2: #{cnn_policy_forward.2} parent=1 // loop_pre_header
      _
    $region3: #{cnn_policy_forward.2} parent=1 // loop_header
      %s9 = sphi 0, %s13
      %p10 = scmp.ge.s32.totalorder %s9, 4
      %s19 = sphi 0, %s21
      %s22 = sphi 0, %s19
      %s23 = sphi 0, %s22
      %s39 = sphi 0, %s23
      %s43 = sphi 0, %s43
      %s45 = sphi 0, %s43
      %s46 = sphi 0, %s45
      %s60 = sphi 0, %s46
      %s64 = sphi 0, %s64
      %s66 = sphi 0, %s64
      %s67 = sphi 0, %s66
      %s81 = sphi 0, %s67
      %s87 = sphi 0, %s89
      %s90 = sphi 0, %s87
      %s91 = sphi 0, %s90
      %s107 = sphi 0, %s91
    $region4: #{cnn_policy_forward.2} parent=1 // loop_header_branch
      %12 = sbr.rel (%p10) target = $region8
    $region5: #{cnn_policy_forward.2} parent=1 // loop_body
      %s14 = ssub.s32 %s9, 1
      %s15 = ssub.s32 %s9, 2
      %s16 = sadd.s32 %s9, 1
      %s17 = ssub.s32 %s9, %s16
      %p18 = scmp.eq.s32.totalorder %s17, 0
      %s20 = sadd.s32 %s19, 1
      %s21 = scalar_select %p18, %s19, %s20
      %p24 = pneg %p18
      %p25 = scmp.eq.s32.totalorder %s9, 1
      %p26 = por %p24, %p25
      %p27 = scmp.ne.s32.totalorder %s19, %s22
      %p28 = scmp.eq.s32.totalorder %s9, 0
      %p29 = por %p27, %p28
      %p30 = scmp.ne.s32.totalorder %s19, %s22
      %p31 = scmp.eq.s32.totalorder %s14, 1
      %p32 = por %p30, %p31
      %p33 = scmp.ne.s32.totalorder %s22, %s23
      %p34 = scmp.eq.s32.totalorder %s14, 0
      %p35 = por %p33, %p34
      %p36 = scmp.ne.s32.totalorder %s22, %s23
      %p37 = scmp.eq.s32.totalorder %s15, 1
      %p38 = por %p36, %p37
      %p40 = scmp.ne.s32.totalorder %s23, %s39
      %p41 = scmp.eq.s32.totalorder %s15, 0
      %p42 = por %p40, %p41
      %s44 = sadd.s32 %s43, 1
      %p47 = scmp.eq.s32.totalorder %s9, 1
      %p48 = scmp.ne.s32.totalorder %s43, %s45
      %p49 = scmp.eq.s32.totalorder %s9, 0
      %p50 = por %p48, %p49
      %p51 = scmp.ne.s32.totalorder %s43, %s45
      %p52 = scmp.eq.s32.totalorder %s14, 1
      %p53 = por %p51, %p52
      %p54 = scmp.ne.s32.totalorder %s45, %s46
      %p55 = scmp.eq.s32.totalorder %s14, 0
      %p56 = por %p54, %p55
      %p57 = scmp.ne.s32.totalorder %s45, %s46
      %p58 = scmp.eq.s32.totalorder %s15, 1
      %p59 = por %p57, %p58
      %p61 = scmp.ne.s32.totalorder %s46, %s60
      %p62 = scmp.eq.s32.totalorder %s15, 0
      %p63 = por %p61, %p62
      %s65 = sadd.s32 %s64, 1
      %p68 = scmp.eq.s32.totalorder %s9, 1
      %p69 = scmp.ne.s32.totalorder %s64, %s66
      %p70 = scmp.eq.s32.totalorder %s9, 0
      %p71 = por %p69, %p70
      %p72 = scmp.ne.s32.totalorder %s64, %s66
      %p73 = scmp.eq.s32.totalorder %s14, 1
      %p74 = por %p72, %p73
      %p75 = scmp.ne.s32.totalorder %s66, %s67
      %p76 = scmp.eq.s32.totalorder %s14, 0
      %p77 = por %p75, %p76
      %p78 = scmp.ne.s32.totalorder %s66, %s67
      %p79 = scmp.eq.s32.totalorder %s15, 1
      %p80 = por %p78, %p79
      %p82 = scmp.ne.s32.totalorder %s67, %s81
      %p83 = scmp.eq.s32.totalorder %s15, 0
      %p84 = por %p82, %p83
      %s85 = ssub.s32 %s9, %s16
      %p86 = scmp.eq.s32.totalorder %s85, 0
      %s88 = sadd.s32 %s87, 1
      %s89 = scalar_select %p86, %s87, %s88
      %p92 = pneg %p86
      %p93 = scmp.eq.s32.totalorder %s9, 1
      %p94 = por %p92, %p93
      %p95 = scmp.ne.s32.totalorder %s87, %s90
      %p96 = scmp.eq.s32.totalorder %s9, 0
      %p97 = por %p95, %p96
      %p98 = scmp.ne.s32.totalorder %s87, %s90
      %p99 = scmp.eq.s32.totalorder %s14, 1
      %p100 = por %p98, %p99
      %p101 = scmp.ne.s32.totalorder %s90, %s91
      %p102 = scmp.eq.s32.totalorder %s14, 0
      %p103 = por %p101, %p102
      %p104 = scmp.ne.s32.totalorder %s90, %s91
      %p105 = scmp.eq.s32.totalorder %s15, 1
      %p106 = por %p104, %p105
      %p108 = scmp.ne.s32.totalorder %s91, %s107
      %p109 = scmp.eq.s32.totalorder %s15, 0
      %p110 = por %p108, %p109
      %p111 = scmp.le.s32.totalorder 1, %s9
      %p112 = scmp.lt.s32.totalorder %s9, 3
      %p113 = pnand %p111, %p112
      %p114 = pneg %p113
      // Predicated region
      $region9: #{cnn_policy_forward.2} parent=5 // pred_check
        _
      $region10: #{cnn_policy_forward.2} parent=5 // pred_check_branch
        %116 = sbr.rel (%p113) target = $region12
      $region11: #{cnn_policy_forward.2} parent=5 // pred_region
        %s117 = ssub.s32 %s9, 1
        // Predicated region
        $region13: #{cnn_policy_forward.2} parent=11 // pred_check
          %p118 = pneg %p56
        $region14: #{cnn_policy_forward.2} parent=11 // pred_check_branch
          %120 = sbr.rel (%p118) target = $region16
        $region15: #{cnn_policy_forward.2} parent=11 // pred_region
          _
        $region16: #{cnn_policy_forward.2} parent=11 // pred_fallthru
          _
        // Predicated region
        $region17: #{cnn_policy_forward.2} parent=11 // pred_check
          %p121 = pneg %p77
        $region18: #{cnn_policy_forward.2} parent=11 // pred_check_branch
          %123 = sbr.rel (%p121) target = $region20
        $region19: #{cnn_policy_forward.2} parent=11 // pred_region
          _
        $region20: #{cnn_policy_forward.2} parent=11 // pred_fallthru
          _
      $region12: #{cnn_policy_forward.2} parent=5 // pred_fallthru
        _
      %p124 = scmp.lt.s32.totalorder %s9, 2
      // Predicated region
      $region21: #{cnn_policy_forward.2} parent=5 // pred_check
        %p125 = pneg %p124
      $region22: #{cnn_policy_forward.2} parent=5 // pred_check_branch
        %127 = sbr.rel (%p125) target = $region24
      $region23: #{cnn_policy_forward.2} parent=5 // pred_region
        // Predicated region
        $region25: #{cnn_policy_forward.2} parent=23 // pred_check
          %p128 = pneg %p29
        $region26: #{cnn_policy_forward.2} parent=23 // pred_check_branch
          %130 = sbr.rel (%p128) target = $region28
        $region27: #{cnn_policy_forward.2} parent=23 // pred_region
          %s131 = smul.u32 61, %s9
          %s132 = ssub.s32 121, %s131
          %p133 = scmp.lt.s32.totalorder %s132, 61
          %s134 = scalar_select %p133, %s132, 61
          %s135 = smul.u32 64, %s134
          %s136 = smul.u32 %s135, 2
          %p137 = scmp.lt.s32.totalorder %s131, 120
          %s138 = scalar_select %p137, %s131, 120
          %s139 = smul.addr %s138, 2
          %s140 = smul.addr %s139, 4
          %s141 = scalar_lea.vmem %s0, %s140
          %s142 = smul.u32 61, %s9
          %s143 = ssub.s32 121, %s142
          %p144 = scmp.lt.s32.totalorder %s143, 61
          %s145 = scalar_select %p144, %s143, 61
          %s146 = smul.u32 64, %s145
          %s147 = smul.u32 %s146, 2
        $region28: #{cnn_policy_forward.2} parent=23 // pred_fallthru
          _
      $region24: #{cnn_policy_forward.2} parent=5 // pred_fallthru
        _
      %p148 = scmp.le.s32.totalorder 1, %s9
      %p149 = scmp.lt.s32.totalorder %s9, 3
      %p150 = pnand %p148, %p149
      %p151 = pneg %p150
      // Predicated region
      $region29: #{cnn_policy_forward.2} parent=5 // pred_check
        _
      $region30: #{cnn_policy_forward.2} parent=5 // pred_check_branch
        %153 = sbr.rel (%p150) target = $region32
      $region31: #{cnn_policy_forward.2} parent=5 // pred_region
        %s154 = ssub.s32 %s9, 1
        %s155 = smul.u32 61, %s14
        %s156 = ssub.s32 121, %s155
        %p157 = scmp.lt.s32.totalorder %s156, 61
        %s158 = scalar_select %p157, %s156, 61
        %s159 = smul.u32 64, %s158
        %s160 = smul.u32 %s159, 2
        %p161 = scmp.lt.s32.totalorder %s155, 120
        %s162 = scalar_select %p161, %s155, 120
        %s163 = smul.addr %s162, 2
        %s164 = smul.addr %s163, 4
        %s165 = scalar_lea.vmem %s0, %s164
        %p166 = pneg %p35
        %p167 = pneg %p32
        %p168 = pneg %p56
        %p169 = pneg %p53
        %p170 = pneg %p77
        %p171 = pneg %p74
        %p172 = pneg %p103
        %p173 = pneg %p100
        %s174 = sand.u32 %s90, 1
        %s175 = sand.u32 %s90, 1
        %s176 = smul.addr %s175, 244
        %s177 = scalar_lea.vmem [#allocation2], %s176
        %s178 = smul.u32 61, %s14
        %s179 = ssub.s32 121, %s178
        %p180 = scmp.lt.s32.totalorder %s179, 61
        %s181 = scalar_select %p180, %s179, 61
        %s182 = smul.u32 64, %s181
        %s183 = smul.u32 %s182, 2
        %p184 = scmp.lt.s32.totalorder %s178, 120
        %s185 = scalar_select %p184, %s178, 120
        %s186 = smul.addr %s185, 2
        %s187 = smul.addr %s186, 4
        %s188 = scalar_lea.vmem %s0, %s187
        %s189 = smul.u32 61, %s14
        %s190 = ssub.s32 121, %s189
        %p191 = scmp.lt.s32.totalorder %s190, 61
        %s192 = scalar_select %p191, %s190, 61
        %s193 = smul.u32 64, %s192
        %s194 = smul.u32 %s193, 2
        %s195 = smul.u32 61, %s14
        %s196 = ssub.s32 121, %s195
        %p197 = scmp.lt.s32.totalorder %s196, 61
        %s198 = scalar_select %p197, %s196, 61
        %s199 = smul.u32 64, %s198
        %v201 = vld [vmem:[%s188] sm:$0xff]
        %v202 = vld [vmem:[%s188 + $0x8] sm:$0xff]
        %v203 = vld [vmem:[%s188 + $0x10] sm:$0xff]
        %v204 = vld [vmem:[%s188 + $0x18] sm:$0xff]
        %v205 = vld [vmem:[%s188 + $0x20] sm:$0xff]
        %v206 = vld [vmem:[%s188 + $0x28] sm:$0xff]
        %v207 = vld [vmem:[%s188 + $0x30] sm:$0xff]
        %v208 = vld [vmem:[%s188 + $0x38] sm:$0xff]
        %v209 = vld [vmem:[%s188 + $0x40] sm:$0xff]
        %v210 = vld [vmem:[%s188 + $0x48] sm:$0xff]
        %v211 = vld [vmem:[%s188 + $0x50] sm:$0xff]
        %v212 = vld [vmem:[%s188 + $0x58] sm:$0xff]
        %v213 = vld [vmem:[%s188 + $0x60] sm:$0xff]
        %v214 = vld [vmem:[%s188 + $0x68] sm:$0xff]
        %v215 = vld [vmem:[%s188 + $0x70] sm:$0xff]
        %v216 = vld [vmem:[%s188 + $0x78] sm:$0xff]
        %v217 = vld [vmem:[%s188 + $0x80] sm:$0xff]
        %v218 = vld [vmem:[%s188 + $0x88] sm:$0xff]
        %v219 = vld [vmem:[%s188 + $0x90] sm:$0xff]
        %v220 = vld [vmem:[%s188 + $0x98] sm:$0xff]
        %v221 = vld [vmem:[%s188 + $0xa0] sm:$0xff]
        %v222 = vld [vmem:[%s188 + $0xa8] sm:$0xff]
        %v223 = vld [vmem:[%s188 + $0xb0] sm:$0xff]
        %v224 = vld [vmem:[%s188 + $0xb8] sm:$0xff]
        %v225 = vld [vmem:[%s188 + $0xc0] sm:$0xff]
        %v226 = vld [vmem:[%s188 + $0xc8] sm:$0xff]
        %v227 = vld [vmem:[%s188 + $0xd0] sm:$0xff]
        %v228 = vld [vmem:[%s188 + $0xd8] sm:$0xff]
        %v229 = vld [vmem:[%s188 + $0xe0] sm:$0xff]
        %v230 = vld [vmem:[%s188 + $0xe8] sm:$0xff]
        %v231 = vld [vmem:[%s188 + $0xf0] sm:$0xff]
        %v232 = vld [vmem:[%s188 + $0xf8] sm:$0xff]
        %v233 = vld [vmem:[%s188 + $0x100] sm:$0xff]
        %v234 = vld [vmem:[%s188 + $0x108] sm:$0xff]
        %v235 = vld [vmem:[%s188 + $0x110] sm:$0xff]
        %v236 = vld [vmem:[%s188 + $0x118] sm:$0xff]
        %v237 = vld [vmem:[%s188 + $0x120] sm:$0xff]
        %v238 = vld [vmem:[%s188 + $0x128] sm:$0xff]
        %v239 = vld [vmem:[%s188 + $0x130] sm:$0xff]
        %v240 = vld [vmem:[%s188 + $0x138] sm:$0xff]
        %v241 = vld [vmem:[%s188 + $0x140] sm:$0xff]
        %v242 = vld [vmem:[%s188 + $0x148] sm:$0xff]
        %v243 = vld [vmem:[%s188 + $0x150] sm:$0xff]
        %v244 = vld [vmem:[%s188 + $0x158] sm:$0xff]
        %v245 = vld [vmem:[%s188 + $0x160] sm:$0xff]
        %v246 = vld [vmem:[%s188 + $0x168] sm:$0xff]
        %v247 = vld [vmem:[%s188 + $0x170] sm:$0xff]
        %v248 = vld [vmem:[%s188 + $0x178] sm:$0xff]
        %v249 = vld [vmem:[%s188 + $0x180] sm:$0xff]
        %v250 = vld [vmem:[%s188 + $0x188] sm:$0xff]
        %v251 = vld [vmem:[%s188 + $0x190] sm:$0xff]
        %v252 = vld [vmem:[%s188 + $0x198] sm:$0xff]
        %v253 = vld [vmem:[%s188 + $0x1a0] sm:$0xff]
        %v254 = vld [vmem:[%s188 + $0x1a8] sm:$0xff]
        %v255 = vld [vmem:[%s188 + $0x1b0] sm:$0xff]
        %v256 = vld [vmem:[%s188 + $0x1b8] sm:$0xff]
        %v257 = vld [vmem:[%s188 + $0x1c0] sm:$0xff]
        %v258 = vld [vmem:[%s188 + $0x1c8] sm:$0xff]
        %v259 = vld [vmem:[%s188 + $0x1d0] sm:$0xff]
        %v260 = vld [vmem:[%s188 + $0x1d8] sm:$0xff]
        %v261 = vld [vmem:[%s188 + $0x1e0] sm:$0xff]
        %v262 = vld [vmem:[%s1] sm:$0xf]
        %v263 = vld [vmem:[%s1 + $0x4] sm:$0xf]
        %v264 = vld [vmem:[%s1 + $0x8] sm:$0xf]
        %v265 = vld [vmem:[%s1 + $0xc] sm:$0xf]
        %v266 = vld [vmem:[%s1 + $0x10] sm:$0xf]
        %v267 = vld [vmem:[%s1 + $0x14] sm:$0xf]
        %v268 = vld [vmem:[%s1 + $0x18] sm:$0xf]
        %v269 = vld [vmem:[%s1 + $0x1c] sm:$0xf]
        %v270 = vld [vmem:[%s1 + $0x20] sm:$0xf]
        %v271 = vld [vmem:[%s1 + $0x24] sm:$0xf]
        %v272 = vld [vmem:[%s1 + $0x28] sm:$0xf]
        %v273 = vld [vmem:[%s1 + $0x2c] sm:$0xf]
        %v274 = vld [vmem:[%s1 + $0x30] sm:$0xf]
        %v275 = vld [vmem:[%s1 + $0x34] sm:$0xf]
        %v276 = vld [vmem:[%s1 + $0x38] sm:$0xf]
        %v277 = vld [vmem:[%s1 + $0x3c] sm:$0xf]
        %v278 = vld [vmem:[%s1 + $0x40] sm:$0xf]
        %v279 = vld [vmem:[%s1 + $0x44] sm:$0xf]
        %v280 = vld [vmem:[%s1 + $0x48] sm:$0xf]
        %v281 = vld [vmem:[%s1 + $0x4c] sm:$0xf]
        %v282 = vld [vmem:[%s1 + $0x50] sm:$0xf]
        %v283 = vld [vmem:[%s1 + $0x54] sm:$0xf]
        %v284 = vld [vmem:[%s1 + $0x58] sm:$0xf]
        %v285 = vld [vmem:[%s1 + $0x5c] sm:$0xf]
        %v286 = vld [vmem:[%s1 + $0x60] sm:$0xf]
        %v287 = vld [vmem:[%s1 + $0x64] sm:$0xf]
        %v288 = vld [vmem:[%s1 + $0x68] sm:$0xf]
        %v289 = vld [vmem:[%s1 + $0x6c] sm:$0xf]
        %v290 = vld [vmem:[%s1 + $0x70] sm:$0xf]
        %v291 = vld [vmem:[%s1 + $0x74] sm:$0xf]
        %v292 = vld [vmem:[%s1 + $0x78] sm:$0xf]
        %v293 = vld [vmem:[%s1 + $0x7c] sm:$0xf]
        %v294 = vld [vmem:[%s2] sm:$0x1]
        %v296 = vlaneseq
        %v297 = vshrl.u32 %v296, 7
        %v298 = vsub.s32 0, %v297
        %v299 = vrot.slane %v294, %v298
        %v362 = vunpack.c.l.b16 %v201
        %v363 = vunpack.c.h.b16 %v201
        %v364 = vunpack.c.l.b16 %v202
        %v365 = vunpack.c.h.b16 %v202
        %v366 = vunpack.c.l.b16 %v203
        %v367 = vunpack.c.h.b16 %v203
        %v368 = vunpack.c.l.b16 %v204
        %v369 = vunpack.c.h.b16 %v204
        %v370 = vunpack.c.l.b16 %v205
        %v371 = vunpack.c.h.b16 %v205
        %v372 = vunpack.c.l.b16 %v206
        %v373 = vunpack.c.h.b16 %v206
        %v374 = vunpack.c.l.b16 %v207
        %v375 = vunpack.c.h.b16 %v207
        %v376 = vunpack.c.l.b16 %v208
        %v377 = vunpack.c.h.b16 %v208
        %v378 = vunpack.c.l.b16 %v209
        %v379 = vunpack.c.h.b16 %v209
        %v380 = vunpack.c.l.b16 %v210
        %v381 = vunpack.c.h.b16 %v210
        %v382 = vunpack.c.l.b16 %v211
        %v383 = vunpack.c.h.b16 %v211
        %v384 = vunpack.c.l.b16 %v212
        %v385 = vunpack.c.h.b16 %v212
        %v386 = vunpack.c.l.b16 %v213
        %v387 = vunpack.c.h.b16 %v213
        %v388 = vunpack.c.l.b16 %v214
        %v389 = vunpack.c.h.b16 %v214
        %v390 = vunpack.c.l.b16 %v215
        %v391 = vunpack.c.h.b16 %v215
        %v392 = vunpack.c.l.b16 %v216
        %v393 = vunpack.c.h.b16 %v216
        %v394 = vunpack.c.l.b16 %v217
        %v395 = vunpack.c.h.b16 %v217
        %v396 = vunpack.c.l.b16 %v218
        %v397 = vunpack.c.h.b16 %v218
        %v398 = vunpack.c.l.b16 %v219
        %v399 = vunpack.c.h.b16 %v219
        %v400 = vunpack.c.l.b16 %v220
        %v401 = vunpack.c.h.b16 %v220
        %v402 = vunpack.c.l.b16 %v221
        %v403 = vunpack.c.h.b16 %v221
        %v404 = vunpack.c.l.b16 %v222
        %v405 = vunpack.c.h.b16 %v222
        %v406 = vunpack.c.l.b16 %v223
        %v407 = vunpack.c.h.b16 %v223
        %v408 = vunpack.c.l.b16 %v224
        %v409 = vunpack.c.h.b16 %v224
        %v410 = vunpack.c.l.b16 %v225
        %v411 = vunpack.c.h.b16 %v225
        %v412 = vunpack.c.l.b16 %v226
        %v413 = vunpack.c.h.b16 %v226
        %v414 = vunpack.c.l.b16 %v227
        %v415 = vunpack.c.h.b16 %v227
        %v416 = vunpack.c.l.b16 %v228
        %v417 = vunpack.c.h.b16 %v228
        %v418 = vunpack.c.l.b16 %v229
        %v419 = vunpack.c.h.b16 %v229
        %v420 = vunpack.c.l.b16 %v230
        %v421 = vunpack.c.h.b16 %v230
        %v422 = vunpack.c.l.b16 %v231
        %v423 = vunpack.c.h.b16 %v231
        %v424 = vunpack.c.l.b16 %v232
        %v425 = vunpack.c.h.b16 %v232
        %v426 = vunpack.c.l.b16 %v233
        %v427 = vunpack.c.h.b16 %v233
        %v428 = vunpack.c.l.b16 %v234
        %v429 = vunpack.c.h.b16 %v234
        %v430 = vunpack.c.l.b16 %v235
        %v431 = vunpack.c.h.b16 %v235
        %v432 = vunpack.c.l.b16 %v236
        %v433 = vunpack.c.h.b16 %v236
        %v434 = vunpack.c.l.b16 %v237
        %v435 = vunpack.c.h.b16 %v237
        %v436 = vunpack.c.l.b16 %v238
        %v437 = vunpack.c.h.b16 %v238
        %v438 = vunpack.c.l.b16 %v239
        %v439 = vunpack.c.h.b16 %v239
        %v440 = vunpack.c.l.b16 %v240
        %v441 = vunpack.c.h.b16 %v240
        %v442 = vunpack.c.l.b16 %v241
        %v443 = vunpack.c.h.b16 %v241
        %v444 = vunpack.c.l.b16 %v242
        %v445 = vunpack.c.h.b16 %v242
        %v446 = vunpack.c.l.b16 %v243
        %v447 = vunpack.c.h.b16 %v243
        %v448 = vunpack.c.l.b16 %v244
        %v449 = vunpack.c.h.b16 %v244
        %v450 = vunpack.c.l.b16 %v245
        %v451 = vunpack.c.h.b16 %v245
        %v452 = vunpack.c.l.b16 %v246
        %v453 = vunpack.c.h.b16 %v246
        %v454 = vunpack.c.l.b16 %v247
        %v455 = vunpack.c.h.b16 %v247
        %v456 = vunpack.c.l.b16 %v248
        %v457 = vunpack.c.h.b16 %v248
        %v458 = vunpack.c.l.b16 %v249
        %v459 = vunpack.c.h.b16 %v249
        %v460 = vunpack.c.l.b16 %v250
        %v461 = vunpack.c.h.b16 %v250
        %v462 = vunpack.c.l.b16 %v251
        %v463 = vunpack.c.h.b16 %v251
        %v464 = vunpack.c.l.b16 %v252
        %v465 = vunpack.c.h.b16 %v252
        %v466 = vunpack.c.l.b16 %v253
        %v467 = vunpack.c.h.b16 %v253
        %v468 = vunpack.c.l.b16 %v254
        %v469 = vunpack.c.h.b16 %v254
        %v470 = vunpack.c.l.b16 %v255
        %v471 = vunpack.c.h.b16 %v255
        %v472 = vunpack.c.l.b16 %v256
        %v473 = vunpack.c.h.b16 %v256
        %v474 = vunpack.c.l.b16 %v257
        %v475 = vunpack.c.h.b16 %v257
        %v476 = vunpack.c.l.b16 %v258
        %v477 = vunpack.c.h.b16 %v258
        %v478 = vunpack.c.l.b16 %v259
        %v479 = vunpack.c.h.b16 %v259
        %v480 = vunpack.c.l.b16 %v260
        %v481 = vunpack.c.h.b16 %v260
        %v482 = vunpack.c.l.b16 %v261
        %v483 = vunpack.c.h.b16 %v261
        %v484 = vpack.c.b16 %v364, %v362
        %v485 = vpack.c.b16 %v365, %v363
        %v486 = vpack.c.b16 %v368, %v366
        %v487 = vpack.c.b16 %v369, %v367
        %v488 = vpack.c.b16 %v372, %v370
        %v489 = vpack.c.b16 %v373, %v371
        %v490 = vpack.c.b16 %v376, %v374
        %v491 = vpack.c.b16 %v377, %v375
        %v492 = vpack.c.b16 %v380, %v378
        %v493 = vpack.c.b16 %v381, %v379
        %v494 = vpack.c.b16 %v384, %v382
        %v495 = vpack.c.b16 %v385, %v383
        %v496 = vpack.c.b16 %v388, %v386
        %v497 = vpack.c.b16 %v389, %v387
        %v498 = vpack.c.b16 %v392, %v390
        %v499 = vpack.c.b16 %v393, %v391
        %v500 = vpack.c.b16 %v396, %v394
        %v501 = vpack.c.b16 %v397, %v395
        %v502 = vpack.c.b16 %v400, %v398
        %v503 = vpack.c.b16 %v401, %v399
        %v504 = vpack.c.b16 %v404, %v402
        %v505 = vpack.c.b16 %v405, %v403
        %v506 = vpack.c.b16 %v408, %v406
        %v507 = vpack.c.b16 %v409, %v407
        %v508 = vpack.c.b16 %v412, %v410
        %v509 = vpack.c.b16 %v413, %v411
        %v510 = vpack.c.b16 %v416, %v414
        %v511 = vpack.c.b16 %v417, %v415
        %v512 = vpack.c.b16 %v420, %v418
        %v513 = vpack.c.b16 %v421, %v419
        %v514 = vpack.c.b16 %v424, %v422
        %v515 = vpack.c.b16 %v425, %v423
        %v516 = vpack.c.b16 %v428, %v426
        %v517 = vpack.c.b16 %v429, %v427
        %v518 = vpack.c.b16 %v432, %v430
        %v519 = vpack.c.b16 %v433, %v431
        %v520 = vpack.c.b16 %v436, %v434
        %v521 = vpack.c.b16 %v437, %v435
        %v522 = vpack.c.b16 %v440, %v438
        %v523 = vpack.c.b16 %v441, %v439
        %v524 = vpack.c.b16 %v444, %v442
        %v525 = vpack.c.b16 %v445, %v443
        %v526 = vpack.c.b16 %v448, %v446
        %v527 = vpack.c.b16 %v449, %v447
        %v528 = vpack.c.b16 %v452, %v450
        %v529 = vpack.c.b16 %v453, %v451
        %v530 = vpack.c.b16 %v456, %v454
        %v531 = vpack.c.b16 %v457, %v455
        %v532 = vpack.c.b16 %v460, %v458
        %v533 = vpack.c.b16 %v461, %v459
        %v534 = vpack.c.b16 %v464, %v462
        %v535 = vpack.c.b16 %v465, %v463
        %v536 = vpack.c.b16 %v468, %v466
        %v537 = vpack.c.b16 %v469, %v467
        %v538 = vpack.c.b16 %v472, %v470
        %v539 = vpack.c.b16 %v473, %v471
        %v540 = vpack.c.b16 %v476, %v474
        %v541 = vpack.c.b16 %v477, %v475
        %v542 = vpack.c.b16 %v480, %v478
        %v543 = vpack.c.b16 %v481, %v479
        %v544 = vpack.c.b16 %v482, %v482
        %v545 = vpack.c.b16 %v483, %v483
        %v640 = vunpack.c.l.b16 %v262
        %v641 = vunpack.c.l.b16 %v263
        %v642 = vunpack.c.l.b16 %v264
        %v643 = vunpack.c.l.b16 %v265
        %v644 = vunpack.c.l.b16 %v266
        %v645 = vunpack.c.l.b16 %v267
        %v646 = vunpack.c.l.b16 %v268
        %v647 = vunpack.c.l.b16 %v269
        %v648 = vunpack.c.l.b16 %v270
        %v649 = vunpack.c.l.b16 %v271
        %v650 = vunpack.c.l.b16 %v272
        %v651 = vunpack.c.l.b16 %v273
        %v652 = vunpack.c.l.b16 %v274
        %v653 = vunpack.c.l.b16 %v275
        %v654 = vunpack.c.l.b16 %v276
        %v655 = vunpack.c.l.b16 %v277
        %v656 = vunpack.c.l.b16 %v278
        %v657 = vunpack.c.l.b16 %v279
        %v658 = vunpack.c.l.b16 %v280
        %v659 = vunpack.c.l.b16 %v281
        %v660 = vunpack.c.l.b16 %v282
        %v661 = vunpack.c.l.b16 %v283
        %v662 = vunpack.c.l.b16 %v284
        %v663 = vunpack.c.l.b16 %v285
        %v664 = vunpack.c.l.b16 %v286
        %v665 = vunpack.c.l.b16 %v287
        %v666 = vunpack.c.l.b16 %v288
        %v667 = vunpack.c.l.b16 %v289
        %v668 = vunpack.c.l.b16 %v290
        %v669 = vunpack.c.l.b16 %v291
        %v670 = vunpack.c.l.b16 %v292
        %v671 = vunpack.c.l.b16 %v293
        %v672 = vpack.c.b16 %v641, %v640
        %v673 = vpack.c.b16 %v643, %v642
        %v674 = vpack.c.b16 %v645, %v644
        %v675 = vpack.c.b16 %v647, %v646
        %v676 = vpack.c.b16 %v649, %v648
        %v677 = vpack.c.b16 %v651, %v650
        %v678 = vpack.c.b16 %v653, %v652
        %v679 = vpack.c.b16 %v655, %v654
        %v680 = vpack.c.b16 %v657, %v656
        %v681 = vpack.c.b16 %v659, %v658
        %v682 = vpack.c.b16 %v661, %v660
        %v683 = vpack.c.b16 %v663, %v662
        %v684 = vpack.c.b16 %v665, %v664
        %v685 = vpack.c.b16 %v667, %v666
        %v686 = vpack.c.b16 %v669, %v668
        %v687 = vpack.c.b16 %v671, %v670
        %704 = vmatprep.subr.bf16.mxu0 0
        %705 = vmatpush1.bf16.msra.mxu0 %v672
        %706 = vmatprep.subr.bf16.mxu0 0
        %707 = vmatpush1.bf16.msra.mxu0 %v673
        %708 = vmatprep.subr.bf16.mxu0 0
        %709 = vmatpush1.bf16.msra.mxu0 %v674
        %710 = vmatprep.subr.bf16.mxu0 0
        %711 = vmatpush1.bf16.msra.mxu0 %v675
        %712 = vmatprep.subr.bf16.mxu0 0
        %713 = vmatpush1.bf16.msra.mxu0 %v676
        %714 = vmatprep.subr.bf16.mxu0 0
        %715 = vmatpush1.bf16.msra.mxu0 %v677
        %716 = vmatprep.subr.bf16.mxu0 0
        %717 = vmatpush1.bf16.msra.mxu0 %v678
        %718 = vmatprep.subr.bf16.mxu0 0
        %719 = vmatpush1.bf16.msra.mxu0 %v679
        %720 = vmatprep.subr.bf16.mxu0 0
        %721 = vmatpush1.bf16.msra.mxu0 %v680
        %722 = vmatprep.subr.bf16.mxu0 0
        %723 = vmatpush1.bf16.msra.mxu0 %v681
        %724 = vmatprep.subr.bf16.mxu0 0
        %725 = vmatpush1.bf16.msra.mxu0 %v682
        %726 = vmatprep.subr.bf16.mxu0 0
        %727 = vmatpush1.bf16.msra.mxu0 %v683
        %728 = vmatprep.subr.bf16.mxu0 0
        %729 = vmatpush1.bf16.msra.mxu0 %v684
        %730 = vmatprep.subr.bf16.mxu0 0
        %731 = vmatpush1.bf16.msra.mxu0 %v685
        %732 = vmatprep.subr.bf16.mxu0 0
        %733 = vmatpush1.bf16.msra.mxu0 %v686
        %734 = vmatprep.subr.bf16.mxu0 0
        %735 = vmatpush1.bf16.msra.mxu0 %v687
        %736 = vmatprep.mubr.bf16.mxu0 %v485
        %737 = vmatmul.mubr.bf16.gmra.mrb[0].mxu0 %v484
        %v738 = vpop.f32.mrb[0].mxu0
        %v739 = vadd.f32 %v299, %v738
        %v740 = vpop.f32.mrb[0].mxu0
        %v741 = vpop.f32.mrb[0].mxu0
        %v742 = vadd.f32 %v299, %v741
        %v743 = vpop.f32.mrb[0].mxu0
        %744 = vmatprep.mubr.bf16.mxu0 %v487
        %745 = vmatmul.mubr.bf16.gmra.mrb[0].mxu0 %v486
        %v746 = vpop.f32.mrb[0].mxu0
        %v747 = vadd.f32 %v299, %v746
        %v748 = vpop.f32.mrb[0].mxu0
        %v749 = vpop.f32.mrb[0].mxu0
        %v750 = vadd.f32 %v299, %v749
        %v751 = vpop.f32.mrb[0].mxu0
        %752 = vmatprep.mubr.bf16.mxu0 %v489
        %753 = vmatmul.mubr.bf16.gmra.mrb[0].mxu0 %v488
        %v754 = vpop.f32.mrb[0].mxu0
        %v755 = vadd.f32 %v299, %v754
        %v756 = vpop.f32.mrb[0].mxu0
        %v757 = vpop.f32.mrb[0].mxu0
        %v758 = vadd.f32 %v299, %v757
        %v759 = vpop.f32.mrb[0].mxu0
        %760 = vmatprep.mubr.bf16.mxu0 %v491
        %761 = vmatmul.mubr.bf16.gmra.mrb[0].mxu0 %v490
        %v762 = vpop.f32.mrb[0].mxu0
        %v763 = vadd.f32 %v299, %v762
        %v764 = vpop.f32.mrb[0].mxu0
        %v765 = vpop.f32.mrb[0].mxu0
        %v766 = vadd.f32 %v299, %v765
        %v767 = vpop.f32.mrb[0].mxu0
        %768 = vmatprep.mubr.bf16.mxu0 %v493
        %769 = vmatmul.mubr.bf16.gmra.mrb[0].mxu0 %v492
        %v770 = vpop.f32.mrb[0].mxu0
        %v771 = vadd.f32 %v299, %v770
        %v772 = vpop.f32.mrb[0].mxu0
        %v773 = vpop.f32.mrb[0].mxu0
        %v774 = vadd.f32 %v299, %v773
        %v775 = vpop.f32.mrb[0].mxu0
        %776 = vmatprep.mubr.bf16.mxu0 %v495
        %777 = vmatmul.mubr.bf16.gmra.mrb[0].mxu0 %v494
        %v778 = vpop.f32.mrb[0].mxu0
        %v779 = vadd.f32 %v299, %v778
        %v780 = vpop.f32.mrb[0].mxu0
        %v781 = vpop.f32.mrb[0].mxu0
        %v782 = vadd.f32 %v299, %v781
        %v783 = vpop.f32.mrb[0].mxu0
        %784 = vmatprep.mubr.bf16.mxu0 %v497
        %785 = vmatmul.mubr.bf16.gmra.mrb[0].mxu0 %v496
        %v786 = vpop.f32.mrb[0].mxu0
        %v787 = vadd.f32 %v299, %v786
        %v788 = vpop.f32.mrb[0].mxu0
        %v789 = vpop.f32.mrb[0].mxu0
        %v790 = vadd.f32 %v299, %v789
        %v791 = vpop.f32.mrb[0].mxu0
        %792 = vmatprep.mubr.bf16.mxu0 %v499
        %793 = vmatmul.mubr.bf16.gmra.mrb[0].mxu0 %v498
        %v794 = vpop.f32.mrb[0].mxu0
        %v795 = vadd.f32 %v299, %v794
        %v796 = vpop.f32.mrb[0].mxu0
        %v797 = vpop.f32.mrb[0].mxu0
        %v798 = vadd.f32 %v299, %v797
        %v799 = vpop.f32.mrb[0].mxu0
        %800 = vmatprep.mubr.bf16.mxu0 %v501
        %801 = vmatmul.mubr.bf16.gmra.mrb[0].mxu0 %v500
        %v802 = vpop.f32.mrb[0].mxu0
        %v803 = vadd.f32 %v299, %v802
        %v804 = vpop.f32.mrb[0].mxu0
        %v805 = vpop.f32.mrb[0].mxu0
        %v806 = vadd.f32 %v299, %v805
        %v807 = vpop.f32.mrb[0].mxu0
        %808 = vmatprep.mubr.bf16.mxu0 %v503
        %809 = vmatmul.mubr.bf16.gmra.mrb[0].mxu0 %v502
        %v810 = vpop.f32.mrb[0].mxu0
        %v811 = vadd.f32 %v299, %v810
        %v812 = vpop.f32.mrb[0].mxu0
        %v813 = vpop.f32.mrb[0].mxu0
        %v814 = vadd.f32 %v299, %v813
        %v815 = vpop.f32.mrb[0].mxu0
        %816 = vmatprep.mubr.bf16.mxu0 %v505
        %817 = vmatmul.mubr.bf16.gmra.mrb[0].mxu0 %v504
        %v818 = vpop.f32.mrb[0].mxu0
        %v819 = vadd.f32 %v299, %v818
        %v820 = vpop.f32.mrb[0].mxu0
        %v821 = vpop.f32.mrb[0].mxu0
        %v822 = vadd.f32 %v299, %v821
        %v823 = vpop.f32.mrb[0].mxu0
        %824 = vmatprep.mubr.bf16.mxu0 %v507
        %825 = vmatmul.mubr.bf16.gmra.mrb[0].mxu0 %v506
        %v826 = vpop.f32.mrb[0].mxu0
        %v827 = vadd.f32 %v299, %v826
        %v828 = vpop.f32.mrb[0].mxu0
        %v829 = vpop.f32.mrb[0].mxu0
        %v830 = vadd.f32 %v299, %v829
        %v831 = vpop.f32.mrb[0].mxu0
        %832 = vmatprep.mubr.bf16.mxu0 %v509
        %833 = vmatmul.mubr.bf16.gmra.mrb[0].mxu0 %v508
        %v834 = vpop.f32.mrb[0].mxu0
        %v835 = vadd.f32 %v299, %v834
        %v836 = vpop.f32.mrb[0].mxu0
        %v837 = vpop.f32.mrb[0].mxu0
        %v838 = vadd.f32 %v299, %v837
        %v839 = vpop.f32.mrb[0].mxu0
        %840 = vmatprep.mubr.bf16.mxu0 %v511
        %841 = vmatmul.mubr.bf16.gmra.mrb[0].mxu0 %v510
        %v842 = vpop.f32.mrb[0].mxu0
        %v843 = vadd.f32 %v299, %v842
        %v844 = vpop.f32.mrb[0].mxu0
        %v845 = vpop.f32.mrb[0].mxu0
        %v846 = vadd.f32 %v299, %v845
        %v847 = vpop.f32.mrb[0].mxu0
        %848 = vmatprep.mubr.bf16.mxu0 %v513
        %849 = vmatmul.mubr.bf16.gmra.mrb[0].mxu0 %v512
        %v850 = vpop.f32.mrb[0].mxu0
        %v851 = vadd.f32 %v299, %v850
        %v852 = vpop.f32.mrb[0].mxu0
        %v853 = vpop.f32.mrb[0].mxu0
        %v854 = vadd.f32 %v299, %v853
        %v855 = vpop.f32.mrb[0].mxu0
        %856 = vmatprep.mubr.bf16.mxu0 %v515
        %857 = vmatmul.mubr.bf16.gmra.mrb[0].mxu0 %v514
        %v858 = vpop.f32.mrb[0].mxu0
        %v859 = vadd.f32 %v299, %v858
        %v860 = vpop.f32.mrb[0].mxu0
        %v861 = vpop.f32.mrb[0].mxu0
        %v862 = vadd.f32 %v299, %v861
        %v863 = vpop.f32.mrb[0].mxu0
        %864 = vmatprep.mubr.bf16.mxu0 %v517
        %865 = vmatmul.mubr.bf16.gmra.mrb[0].mxu0 %v516
        %v866 = vpop.f32.mrb[0].mxu0
        %v867 = vadd.f32 %v299, %v866
        %v868 = vpop.f32.mrb[0].mxu0
        %v869 = vpop.f32.mrb[0].mxu0
        %v870 = vadd.f32 %v299, %v869
        %v871 = vpop.f32.mrb[0].mxu0
        %872 = vmatprep.mubr.bf16.mxu0 %v519
        %873 = vmatmul.mubr.bf16.gmra.mrb[0].mxu0 %v518
        %v874 = vpop.f32.mrb[0].mxu0
        %v875 = vadd.f32 %v299, %v874
        %v876 = vpop.f32.mrb[0].mxu0
        %v877 = vpop.f32.mrb[0].mxu0
        %v878 = vadd.f32 %v299, %v877
        %v879 = vpop.f32.mrb[0].mxu0
        %880 = vmatprep.mubr.bf16.mxu0 %v521
        %881 = vmatmul.mubr.bf16.gmra.mrb[0].mxu0 %v520
        %v882 = vpop.f32.mrb[0].mxu0
        %v883 = vadd.f32 %v299, %v882
        %v884 = vpop.f32.mrb[0].mxu0
        %v885 = vpop.f32.mrb[0].mxu0
        %v886 = vadd.f32 %v299, %v885
        %v887 = vpop.f32.mrb[0].mxu0
        %888 = vmatprep.mubr.bf16.mxu0 %v523
        %889 = vmatmul.mubr.bf16.gmra.mrb[0].mxu0 %v522
        %v890 = vpop.f32.mrb[0].mxu0
        %v891 = vadd.f32 %v299, %v890
        %v892 = vpop.f32.mrb[0].mxu0
        %v893 = vpop.f32.mrb[0].mxu0
        %v894 = vadd.f32 %v299, %v893
        %v895 = vpop.f32.mrb[0].mxu0
        %896 = vmatprep.mubr.bf16.mxu0 %v525
        %897 = vmatmul.mubr.bf16.gmra.mrb[0].mxu0 %v524
        %v898 = vpop.f32.mrb[0].mxu0
        %v899 = vadd.f32 %v299, %v898
        %v900 = vpop.f32.mrb[0].mxu0
        %v901 = vpop.f32.mrb[0].mxu0
        %v902 = vadd.f32 %v299, %v901
        %v903 = vpop.f32.mrb[0].mxu0
        %904 = vmatprep.mubr.bf16.mxu0 %v527
        %905 = vmatmul.mubr.bf16.gmra.mrb[0].mxu0 %v526
        %v906 = vpop.f32.mrb[0].mxu0
        %v907 = vadd.f32 %v299, %v906
        %v908 = vpop.f32.mrb[0].mxu0
        %v909 = vpop.f32.mrb[0].mxu0
        %v910 = vadd.f32 %v299, %v909
        %v911 = vpop.f32.mrb[0].mxu0
        %912 = vmatprep.mubr.bf16.mxu0 %v529
        %913 = vmatmul.mubr.bf16.gmra.mrb[0].mxu0 %v528
        %v914 = vpop.f32.mrb[0].mxu0
        %v915 = vadd.f32 %v299, %v914
        %v916 = vpop.f32.mrb[0].mxu0
        %v917 = vpop.f32.mrb[0].mxu0
        %v918 = vadd.f32 %v299, %v917
        %v919 = vpop.f32.mrb[0].mxu0
        %920 = vmatprep.mubr.bf16.mxu0 %v531
        %921 = vmatmul.mubr.bf16.gmra.mrb[0].mxu0 %v530
        %v922 = vpop.f32.mrb[0].mxu0
        %v923 = vadd.f32 %v299, %v922
        %v924 = vpop.f32.mrb[0].mxu0
        %v925 = vpop.f32.mrb[0].mxu0
        %v926 = vadd.f32 %v299, %v925
        %v927 = vpop.f32.mrb[0].mxu0
        %928 = vmatprep.mubr.bf16.mxu0 %v533
        %929 = vmatmul.mubr.bf16.gmra.mrb[0].mxu0 %v532
        %v930 = vpop.f32.mrb[0].mxu0
        %v931 = vadd.f32 %v299, %v930
        %v932 = vpop.f32.mrb[0].mxu0
        %v933 = vpop.f32.mrb[0].mxu0
        %v934 = vadd.f32 %v299, %v933
        %v935 = vpop.f32.mrb[0].mxu0
        %936 = vmatprep.mubr.bf16.mxu0 %v535
        %937 = vmatmul.mubr.bf16.gmra.mrb[0].mxu0 %v534
        %v938 = vpop.f32.mrb[0].mxu0
        %v939 = vadd.f32 %v299, %v938
        %v940 = vpop.f32.mrb[0].mxu0
        %v941 = vpop.f32.mrb[0].mxu0
        %v942 = vadd.f32 %v299, %v941
        %v943 = vpop.f32.mrb[0].mxu0
        %944 = vmatprep.mubr.bf16.mxu0 %v537
        %945 = vmatmul.mubr.bf16.gmra.mrb[0].mxu0 %v536
        %v946 = vpop.f32.mrb[0].mxu0
        %v947 = vadd.f32 %v299, %v946
        %v948 = vpop.f32.mrb[0].mxu0
        %v949 = vpop.f32.mrb[0].mxu0
        %v950 = vadd.f32 %v299, %v949
        %v951 = vpop.f32.mrb[0].mxu0
        %952 = vmatprep.mubr.bf16.mxu0 %v539
        %953 = vmatmul.mubr.bf16.gmra.mrb[0].mxu0 %v538
        %v954 = vpop.f32.mrb[0].mxu0
        %v955 = vadd.f32 %v299, %v954
        %v956 = vpop.f32.mrb[0].mxu0
        %v957 = vpop.f32.mrb[0].mxu0
        %v958 = vadd.f32 %v299, %v957
        %v959 = vpop.f32.mrb[0].mxu0
        %960 = vmatprep.mubr.bf16.mxu0 %v541
        %961 = vmatmul.mubr.bf16.gmra.mrb[0].mxu0 %v540
        %v962 = vpop.f32.mrb[0].mxu0
        %v963 = vadd.f32 %v299, %v962
        %v964 = vpop.f32.mrb[0].mxu0
        %v965 = vpop.f32.mrb[0].mxu0
        %v966 = vadd.f32 %v299, %v965
        %v967 = vpop.f32.mrb[0].mxu0
        %968 = vmatprep.mubr.bf16.mxu0 %v543
        %969 = vmatmul.mubr.bf16.gmra.mrb[0].mxu0 %v542
        %v970 = vpop.f32.mrb[0].mxu0
        %v971 = vadd.f32 %v299, %v970
        %v972 = vpop.f32.mrb[0].mxu0
        %v973 = vpop.f32.mrb[0].mxu0
        %v974 = vadd.f32 %v299, %v973
        %v975 = vpop.f32.mrb[0].mxu0
        %976 = vmatprep.mubr.bf16.mxu0 %v545
        %977 = vmatmul.mubr.bf16.gmra.mrb[0].mxu0 %v544
        %v978 = vpop.f32.mrb[0].mxu0
        %v979 = vadd.f32 %v299, %v978
        %v980 = vpop.f32.mrb[0].mxu0
        %v981 = vpop.f32.mrb[0].mxu0
        %v982 = vpop.f32.mrb[0].mxu0
        %983 = vdwg.mxu0
        %v984 = vmax.f32 %v739, 0.0
        %v985 = vmax.f32 %v742, 0.0
        %v986 = vmax.f32 %v747, 0.0
        %v987 = vmax.f32 %v750, 0.0
        %v988 = vmax.f32 %v755, 0.0
        %v989 = vmax.f32 %v758, 0.0
        %v990 = vmax.f32 %v763, 0.0
        %v991 = vmax.f32 %v766, 0.0
        %v992 = vmax.f32 %v771, 0.0
        %v993 = vmax.f32 %v774, 0.0
        %v994 = vmax.f32 %v779, 0.0
        %v995 = vmax.f32 %v782, 0.0
        %v996 = vmax.f32 %v787, 0.0
        %v997 = vmax.f32 %v790, 0.0
        %v998 = vmax.f32 %v795, 0.0
        %v999 = vmax.f32 %v798, 0.0
        %v1000 = vmax.f32 %v803, 0.0
        %v1001 = vmax.f32 %v806, 0.0
        %v1002 = vmax.f32 %v811, 0.0
        %v1003 = vmax.f32 %v814, 0.0
        %v1004 = vmax.f32 %v819, 0.0
        %v1005 = vmax.f32 %v822, 0.0
        %v1006 = vmax.f32 %v827, 0.0
        %v1007 = vmax.f32 %v830, 0.0
        %v1008 = vmax.f32 %v835, 0.0
        %v1009 = vmax.f32 %v838, 0.0
        %v1010 = vmax.f32 %v843, 0.0
        %v1011 = vmax.f32 %v846, 0.0
        %v1012 = vmax.f32 %v851, 0.0
        %v1013 = vmax.f32 %v854, 0.0
        %v1014 = vmax.f32 %v859, 0.0
        %v1015 = vmax.f32 %v862, 0.0
        %v1016 = vmax.f32 %v867, 0.0
        %v1017 = vmax.f32 %v870, 0.0
        %v1018 = vmax.f32 %v875, 0.0
        %v1019 = vmax.f32 %v878, 0.0
        %v1020 = vmax.f32 %v883, 0.0
        %v1021 = vmax.f32 %v886, 0.0
        %v1022 = vmax.f32 %v891, 0.0
        %v1023 = vmax.f32 %v894, 0.0
        %v1024 = vmax.f32 %v899, 0.0
        %v1025 = vmax.f32 %v902, 0.0
        %v1026 = vmax.f32 %v907, 0.0
        %v1027 = vmax.f32 %v910, 0.0
        %v1028 = vmax.f32 %v915, 0.0
        %v1029 = vmax.f32 %v918, 0.0
        %v1030 = vmax.f32 %v923, 0.0
        %v1031 = vmax.f32 %v926, 0.0
        %v1032 = vmax.f32 %v931, 0.0
        %v1033 = vmax.f32 %v934, 0.0
        %v1034 = vmax.f32 %v939, 0.0
        %v1035 = vmax.f32 %v942, 0.0
        %v1036 = vmax.f32 %v947, 0.0
        %v1037 = vmax.f32 %v950, 0.0
        %v1038 = vmax.f32 %v955, 0.0
        %v1039 = vmax.f32 %v958, 0.0
        %v1040 = vmax.f32 %v963, 0.0
        %v1041 = vmax.f32 %v966, 0.0
        %v1042 = vmax.f32 %v971, 0.0
        %v1043 = vmax.f32 %v974, 0.0
        %v1044 = vmax.f32 %v979, 0.0
        %v1045 = vpack.c.bf16 %v985, %v984
        %v1046 = vpack.c.bf16 %v987, %v986
        %v1047 = vpack.c.bf16 %v989, %v988
        %v1048 = vpack.c.bf16 %v991, %v990
        %v1049 = vpack.c.bf16 %v993, %v992
        %v1050 = vpack.c.bf16 %v995, %v994
        %v1051 = vpack.c.bf16 %v997, %v996
        %v1052 = vpack.c.bf16 %v999, %v998
        %v1053 = vpack.c.bf16 %v1001, %v1000
        %v1054 = vpack.c.bf16 %v1003, %v1002
        %v1055 = vpack.c.bf16 %v1005, %v1004
        %v1056 = vpack.c.bf16 %v1007, %v1006
        %v1057 = vpack.c.bf16 %v1009, %v1008
        %v1058 = vpack.c.bf16 %v1011, %v1010
        %v1059 = vpack.c.bf16 %v1013, %v1012
        %v1060 = vpack.c.bf16 %v1015, %v1014
        %v1061 = vpack.c.bf16 %v1017, %v1016
        %v1062 = vpack.c.bf16 %v1019, %v1018
        %v1063 = vpack.c.bf16 %v1021, %v1020
        %v1064 = vpack.c.bf16 %v1023, %v1022
        %v1065 = vpack.c.bf16 %v1025, %v1024
        %v1066 = vpack.c.bf16 %v1027, %v1026
        %v1067 = vpack.c.bf16 %v1029, %v1028
        %v1068 = vpack.c.bf16 %v1031, %v1030
        %v1069 = vpack.c.bf16 %v1033, %v1032
        %v1070 = vpack.c.bf16 %v1035, %v1034
        %v1071 = vpack.c.bf16 %v1037, %v1036
        %v1072 = vpack.c.bf16 %v1039, %v1038
        %v1073 = vpack.c.bf16 %v1041, %v1040
        %v1074 = vpack.c.bf16 %v1043, %v1042
        %v1075 = vpack.c.bf16 %v1044, %v1044
        %v1107 = vunpack.c.l.b16 %v1045
        %v1108 = vunpack.c.h.b16 %v1045
        %v1109 = vunpack.c.l.b16 %v1046
        %v1110 = vunpack.c.h.b16 %v1046
        %v1111 = vunpack.c.l.b16 %v1047
        %v1112 = vunpack.c.h.b16 %v1047
        %v1113 = vunpack.c.l.b16 %v1048
        %v1114 = vunpack.c.h.b16 %v1048
        %v1115 = vunpack.c.l.b16 %v1049
        %v1116 = vunpack.c.h.b16 %v1049
        %v1117 = vunpack.c.l.b16 %v1050
        %v1118 = vunpack.c.h.b16 %v1050
        %v1119 = vunpack.c.l.b16 %v1051
        %v1120 = vunpack.c.h.b16 %v1051
        %v1121 = vunpack.c.l.b16 %v1052
        %v1122 = vunpack.c.h.b16 %v1052
        %v1123 = vunpack.c.l.b16 %v1053
        %v1124 = vunpack.c.h.b16 %v1053
        %v1125 = vunpack.c.l.b16 %v1054
        %v1126 = vunpack.c.h.b16 %v1054
        %v1127 = vunpack.c.l.b16 %v1055
        %v1128 = vunpack.c.h.b16 %v1055
        %v1129 = vunpack.c.l.b16 %v1056
        %v1130 = vunpack.c.h.b16 %v1056
        %v1131 = vunpack.c.l.b16 %v1057
        %v1132 = vunpack.c.h.b16 %v1057
        %v1133 = vunpack.c.l.b16 %v1058
        %v1134 = vunpack.c.h.b16 %v1058
        %v1135 = vunpack.c.l.b16 %v1059
        %v1136 = vunpack.c.h.b16 %v1059
        %v1137 = vunpack.c.l.b16 %v1060
        %v1138 = vunpack.c.h.b16 %v1060
        %v1139 = vunpack.c.l.b16 %v1061
        %v1140 = vunpack.c.h.b16 %v1061
        %v1141 = vunpack.c.l.b16 %v1062
        %v1142 = vunpack.c.h.b16 %v1062
        %v1143 = vunpack.c.l.b16 %v1063
        %v1144 = vunpack.c.h.b16 %v1063
        %v1145 = vunpack.c.l.b16 %v1064
        %v1146 = vunpack.c.h.b16 %v1064
        %v1147 = vunpack.c.l.b16 %v1065
        %v1148 = vunpack.c.h.b16 %v1065
        %v1149 = vunpack.c.l.b16 %v1066
        %v1150 = vunpack.c.h.b16 %v1066
        %v1151 = vunpack.c.l.b16 %v1067
        %v1152 = vunpack.c.h.b16 %v1067
        %v1153 = vunpack.c.l.b16 %v1068
        %v1154 = vunpack.c.h.b16 %v1068
        %v1155 = vunpack.c.l.b16 %v1069
        %v1156 = vunpack.c.h.b16 %v1069
        %v1157 = vunpack.c.l.b16 %v1070
        %v1158 = vunpack.c.h.b16 %v1070
        %v1159 = vunpack.c.l.b16 %v1071
        %v1160 = vunpack.c.h.b16 %v1071
        %v1161 = vunpack.c.l.b16 %v1072
        %v1162 = vunpack.c.h.b16 %v1072
        %v1163 = vunpack.c.l.b16 %v1073
        %v1164 = vunpack.c.h.b16 %v1073
        %v1165 = vunpack.c.l.b16 %v1074
        %v1166 = vunpack.c.h.b16 %v1074
        %v1167 = vunpack.c.l.b16 %v1075
        %v1168 = vpack.c.b16 %v1107, %v1107
        %v1169 = vpack.c.b16 %v1108, %v1108
        %v1170 = vpack.c.b16 %v1109, %v1109
        %v1171 = vpack.c.b16 %v1110, %v1110
        %v1172 = vpack.c.b16 %v1111, %v1111
        %v1173 = vpack.c.b16 %v1112, %v1112
        %v1174 = vpack.c.b16 %v1113, %v1113
        %v1175 = vpack.c.b16 %v1114, %v1114
        %v1176 = vpack.c.b16 %v1115, %v1115
        %v1177 = vpack.c.b16 %v1116, %v1116
        %v1178 = vpack.c.b16 %v1117, %v1117
        %v1179 = vpack.c.b16 %v1118, %v1118
        %v1180 = vpack.c.b16 %v1119, %v1119
        %v1181 = vpack.c.b16 %v1120, %v1120
        %v1182 = vpack.c.b16 %v1121, %v1121
        %v1183 = vpack.c.b16 %v1122, %v1122
        %v1184 = vpack.c.b16 %v1123, %v1123
        %v1185 = vpack.c.b16 %v1124, %v1124
        %v1186 = vpack.c.b16 %v1125, %v1125
        %v1187 = vpack.c.b16 %v1126, %v1126
        %v1188 = vpack.c.b16 %v1127, %v1127
        %v1189 = vpack.c.b16 %v1128, %v1128
        %v1190 = vpack.c.b16 %v1129, %v1129
        %v1191 = vpack.c.b16 %v1130, %v1130
        %v1192 = vpack.c.b16 %v1131, %v1131
        %v1193 = vpack.c.b16 %v1132, %v1132
        %v1194 = vpack.c.b16 %v1133, %v1133
        %v1195 = vpack.c.b16 %v1134, %v1134
        %v1196 = vpack.c.b16 %v1135, %v1135
        %v1197 = vpack.c.b16 %v1136, %v1136
        %v1198 = vpack.c.b16 %v1137, %v1137
        %v1199 = vpack.c.b16 %v1138, %v1138
        %v1200 = vpack.c.b16 %v1139, %v1139
        %v1201 = vpack.c.b16 %v1140, %v1140
        %v1202 = vpack.c.b16 %v1141, %v1141
        %v1203 = vpack.c.b16 %v1142, %v1142
        %v1204 = vpack.c.b16 %v1143, %v1143
        %v1205 = vpack.c.b16 %v1144, %v1144
        %v1206 = vpack.c.b16 %v1145, %v1145
        %v1207 = vpack.c.b16 %v1146, %v1146
        %v1208 = vpack.c.b16 %v1147, %v1147
        %v1209 = vpack.c.b16 %v1148, %v1148
        %v1210 = vpack.c.b16 %v1149, %v1149
        %v1211 = vpack.c.b16 %v1150, %v1150
        %v1212 = vpack.c.b16 %v1151, %v1151
        %v1213 = vpack.c.b16 %v1152, %v1152
        %v1214 = vpack.c.b16 %v1153, %v1153
        %v1215 = vpack.c.b16 %v1154, %v1154
        %v1216 = vpack.c.b16 %v1155, %v1155
        %v1217 = vpack.c.b16 %v1156, %v1156
        %v1218 = vpack.c.b16 %v1157, %v1157
        %v1219 = vpack.c.b16 %v1158, %v1158
        %v1220 = vpack.c.b16 %v1159, %v1159
        %v1221 = vpack.c.b16 %v1160, %v1160
        %v1222 = vpack.c.b16 %v1161, %v1161
        %v1223 = vpack.c.b16 %v1162, %v1162
        %v1224 = vpack.c.b16 %v1163, %v1163
        %v1225 = vpack.c.b16 %v1164, %v1164
        %v1226 = vpack.c.b16 %v1165, %v1165
        %v1227 = vpack.c.b16 %v1166, %v1166
        %v1228 = vpack.c.b16 %v1167, %v1167
        %vm1290 = vcmask 125952
        %1291 = vst.msk [vmem:[%s177] sm:$0xf] %vm1290, %v1168
        %1292 = vst.msk [vmem:[%s177 + $0x4] sm:$0xf] %vm1290, %v1169
        %1293 = vst.msk [vmem:[%s177 + $0x8] sm:$0xf] %vm1290, %v1170
        %1294 = vst.msk [vmem:[%s177 + $0xc] sm:$0xf] %vm1290, %v1171
        %1295 = vst.msk [vmem:[%s177 + $0x10] sm:$0xf] %vm1290, %v1172
        %1296 = vst.msk [vmem:[%s177 + $0x14] sm:$0xf] %vm1290, %v1173
        %1297 = vst.msk [vmem:[%s177 + $0x18] sm:$0xf] %vm1290, %v1174
        %1298 = vst.msk [vmem:[%s177 + $0x1c] sm:$0xf] %vm1290, %v1175
        %1299 = vst.msk [vmem:[%s177 + $0x20] sm:$0xf] %vm1290, %v1176
        %1300 = vst.msk [vmem:[%s177 + $0x24] sm:$0xf] %vm1290, %v1177
        %1301 = vst.msk [vmem:[%s177 + $0x28] sm:$0xf] %vm1290, %v1178
        %1302 = vst.msk [vmem:[%s177 + $0x2c] sm:$0xf] %vm1290, %v1179
        %1303 = vst.msk [vmem:[%s177 + $0x30] sm:$0xf] %vm1290, %v1180
        %1304 = vst.msk [vmem:[%s177 + $0x34] sm:$0xf] %vm1290, %v1181
        %1305 = vst.msk [vmem:[%s177 + $0x38] sm:$0xf] %vm1290, %v1182
        %1306 = vst.msk [vmem:[%s177 + $0x3c] sm:$0xf] %vm1290, %v1183
        %1307 = vst.msk [vmem:[%s177 + $0x40] sm:$0xf] %vm1290, %v1184
        %1308 = vst.msk [vmem:[%s177 + $0x44] sm:$0xf] %vm1290, %v1185
        %1309 = vst.msk [vmem:[%s177 + $0x48] sm:$0xf] %vm1290, %v1186
        %1310 = vst.msk [vmem:[%s177 + $0x4c] sm:$0xf] %vm1290, %v1187
        %1311 = vst.msk [vmem:[%s177 + $0x50] sm:$0xf] %vm1290, %v1188
        %1312 = vst.msk [vmem:[%s177 + $0x54] sm:$0xf] %vm1290, %v1189
        %1313 = vst.msk [vmem:[%s177 + $0x58] sm:$0xf] %vm1290, %v1190
        %1314 = vst.msk [vmem:[%s177 + $0x5c] sm:$0xf] %vm1290, %v1191
        %1315 = vst.msk [vmem:[%s177 + $0x60] sm:$0xf] %vm1290, %v1192
        %1316 = vst.msk [vmem:[%s177 + $0x64] sm:$0xf] %vm1290, %v1193
        %1317 = vst.msk [vmem:[%s177 + $0x68] sm:$0xf] %vm1290, %v1194
        %1318 = vst.msk [vmem:[%s177 + $0x6c] sm:$0xf] %vm1290, %v1195
        %1319 = vst.msk [vmem:[%s177 + $0x70] sm:$0xf] %vm1290, %v1196
        %1320 = vst.msk [vmem:[%s177 + $0x74] sm:$0xf] %vm1290, %v1197
        %1321 = vst.msk [vmem:[%s177 + $0x78] sm:$0xf] %vm1290, %v1198
        %1322 = vst.msk [vmem:[%s177 + $0x7c] sm:$0xf] %vm1290, %v1199
        %1323 = vst.msk [vmem:[%s177 + $0x80] sm:$0xf] %vm1290, %v1200
        %1324 = vst.msk [vmem:[%s177 + $0x84] sm:$0xf] %vm1290, %v1201
        %1325 = vst.msk [vmem:[%s177 + $0x88] sm:$0xf] %vm1290, %v1202
        %1326 = vst.msk [vmem:[%s177 + $0x8c] sm:$0xf] %vm1290, %v1203
        %1327 = vst.msk [vmem:[%s177 + $0x90] sm:$0xf] %vm1290, %v1204
        %1328 = vst.msk [vmem:[%s177 + $0x94] sm:$0xf] %vm1290, %v1205
        %1329 = vst.msk [vmem:[%s177 + $0x98] sm:$0xf] %vm1290, %v1206
        %1330 = vst.msk [vmem:[%s177 + $0x9c] sm:$0xf] %vm1290, %v1207
        %1331 = vst.msk [vmem:[%s177 + $0xa0] sm:$0xf] %vm1290, %v1208
        %1332 = vst.msk [vmem:[%s177 + $0xa4] sm:$0xf] %vm1290, %v1209
        %1333 = vst.msk [vmem:[%s177 + $0xa8] sm:$0xf] %vm1290, %v1210
        %1334 = vst.msk [vmem:[%s177 + $0xac] sm:$0xf] %vm1290, %v1211
        %1335 = vst.msk [vmem:[%s177 + $0xb0] sm:$0xf] %vm1290, %v1212
        %1336 = vst.msk [vmem:[%s177 + $0xb4] sm:$0xf] %vm1290, %v1213
        %1337 = vst.msk [vmem:[%s177 + $0xb8] sm:$0xf] %vm1290, %v1214
        %1338 = vst.msk [vmem:[%s177 + $0xbc] sm:$0xf] %vm1290, %v1215
        %1339 = vst.msk [vmem:[%s177 + $0xc0] sm:$0xf] %vm1290, %v1216
        %1340 = vst.msk [vmem:[%s177 + $0xc4] sm:$0xf] %vm1290, %v1217
        %1341 = vst.msk [vmem:[%s177 + $0xc8] sm:$0xf] %vm1290, %v1218
        %1342 = vst.msk [vmem:[%s177 + $0xcc] sm:$0xf] %vm1290, %v1219
        %1343 = vst.msk [vmem:[%s177 + $0xd0] sm:$0xf] %vm1290, %v1220
        %1344 = vst.msk [vmem:[%s177 + $0xd4] sm:$0xf] %vm1290, %v1221
        %1345 = vst.msk [vmem:[%s177 + $0xd8] sm:$0xf] %vm1290, %v1222
        %1346 = vst.msk [vmem:[%s177 + $0xdc] sm:$0xf] %vm1290, %v1223
        %1347 = vst.msk [vmem:[%s177 + $0xe0] sm:$0xf] %vm1290, %v1224
        %1348 = vst.msk [vmem:[%s177 + $0xe4] sm:$0xf] %vm1290, %v1225
        %1349 = vst.msk [vmem:[%s177 + $0xe8] sm:$0xf] %vm1290, %v1226
        %1350 = vst.msk [vmem:[%s177 + $0xec] sm:$0xf] %vm1290, %v1227
        %1351 = vst.msk [vmem:[%s177 + $0xf0] sm:$0xf] %vm1290, %v1228
        %s1352 = sand.u32 %s90, 1
        %s1353 = sand.u32 %s90, 1
        %s1354 = smul.addr %s1353, 244
        %s1355 = scalar_lea.vmem [#allocation2], %s1354
        // Predicated region
        $region33: #{cnn_policy_forward.2} parent=31 // pred_check
          %p1356 = pneg %p100
        $region34: #{cnn_policy_forward.2} parent=31 // pred_check_branch
          %1358 = sbr.rel (%p1356) target = $region36
        $region35: #{cnn_policy_forward.2} parent=31 // pred_region
          %s1359 = smul.u32 61, %s14
          %s1360 = ssub.s32 121, %s1359
          %p1361 = scmp.lt.s32.totalorder %s1360, 61
          %s1362 = scalar_select %p1361, %s1360, 61
          %s1363 = smul.u32 64, %s1362
          %p1364 = scmp.ne.s32.totalorder 0, %s1363
          %s1365 = smul.addr %s1359, 4
          %s1366 = scalar_lea.vmem %s3, %s1365
          // Predicated region
          $region37: #{cnn_policy_forward.2} parent=35 // pred_check
            %p1367 = pneg %p1364
          $region38: #{cnn_policy_forward.2} parent=35 // pred_check_branch
            %1369 = sbr.rel (%p1367) target = $region40
          $region39: #{cnn_policy_forward.2} parent=35 // pred_region
            // Predicated region
            $region41: #{cnn_policy_forward.2} parent=39 // pred_check
              _
            $region42: #{cnn_policy_forward.2} parent=39 // pred_check_branch
              %1371 = sbr.rel target = $region44
            $region43: #{cnn_policy_forward.2} parent=39 // pred_region
              // Predicated region
              $region63: #{cnn_policy_forward.2} parent=43 // pred_check
                _
              $region64: #{cnn_policy_forward.2} parent=43 // pred_check_branch
                %1541 = sbr.rel (0) target = $region66
              $region65: #{cnn_policy_forward.2} parent=43 // pred_region
                %s1543 = sdiv.u32.pop %s1362, 61
                %s1544 = srem.u32.pop %s1362, 61
                // While loop
                $region67: #{cnn_policy_forward.2} parent=65 // loop_pre_header
                  _
                $region68: #{cnn_policy_forward.2} parent=65 // loop_header
                  %s1546 = sphi 0, %s1548
                  %p1547 = scmp.ge.s32.totalorder %s1546, %s1543
                  %s1551 = sphi 0, %s1678
                  %s1552 = sphi %s1355, %s1681
                  %s1553 = sphi %s1366, %s1682
                $region69: #{cnn_policy_forward.2} parent=65 // loop_header_branch
                  %1550 = sbr.rel (%p1547) target = $region73
                $region70: #{cnn_policy_forward.2} parent=65 // loop_body
                  %v1554 = vld [vmem:[%s1552] sm:$0xf]
                  %1555 = vst [vmem:[%s1553] sm:$0xf] %v1554
                  %v1556 = vld [vmem:[%s1552 + $0x4] sm:$0xf]
                  %1557 = vst [vmem:[%s1553 + $0x4] sm:$0xf] %v1556
                  %v1558 = vld [vmem:[%s1552 + $0x8] sm:$0xf]
                  %1559 = vst [vmem:[%s1553 + $0x8] sm:$0xf] %v1558
                  %v1560 = vld [vmem:[%s1552 + $0xc] sm:$0xf]
                  %1561 = vst [vmem:[%s1553 + $0xc] sm:$0xf] %v1560
                  %v1562 = vld [vmem:[%s1552 + $0x10] sm:$0xf]
                  %1563 = vst [vmem:[%s1553 + $0x10] sm:$0xf] %v1562
                  %v1564 = vld [vmem:[%s1552 + $0x14] sm:$0xf]
                  %1565 = vst [vmem:[%s1553 + $0x14] sm:$0xf] %v1564
                  %v1566 = vld [vmem:[%s1552 + $0x18] sm:$0xf]
                  %1567 = vst [vmem:[%s1553 + $0x18] sm:$0xf] %v1566
                  %v1568 = vld [vmem:[%s1552 + $0x1c] sm:$0xf]
                  %1569 = vst [vmem:[%s1553 + $0x1c] sm:$0xf] %v1568
                  %v1570 = vld [vmem:[%s1552 + $0x20] sm:$0xf]
                  %1571 = vst [vmem:[%s1553 + $0x20] sm:$0xf] %v1570
                  %v1572 = vld [vmem:[%s1552 + $0x24] sm:$0xf]
                  %1573 = vst [vmem:[%s1553 + $0x24] sm:$0xf] %v1572
                  %v1574 = vld [vmem:[%s1552 + $0x28] sm:$0xf]
                  %1575 = vst [vmem:[%s1553 + $0x28] sm:$0xf] %v1574
                  %v1576 = vld [vmem:[%s1552 + $0x2c] sm:$0xf]
                  %1577 = vst [vmem:[%s1553 + $0x2c] sm:$0xf] %v1576
                  %v1578 = vld [vmem:[%s1552 + $0x30] sm:$0xf]
                  %1579 = vst [vmem:[%s1553 + $0x30] sm:$0xf] %v1578
                  %v1580 = vld [vmem:[%s1552 + $0x34] sm:$0xf]
                  %1581 = vst [vmem:[%s1553 + $0x34] sm:$0xf] %v1580
                  %v1582 = vld [vmem:[%s1552 + $0x38] sm:$0xf]
                  %1583 = vst [vmem:[%s1553 + $0x38] sm:$0xf] %v1582
                  %v1584 = vld [vmem:[%s1552 + $0x3c] sm:$0xf]
                  %1585 = vst [vmem:[%s1553 + $0x3c] sm:$0xf] %v1584
                  %v1586 = vld [vmem:[%s1552 + $0x40] sm:$0xf]
                  %1587 = vst [vmem:[%s1553 + $0x40] sm:$0xf] %v1586
                  %v1588 = vld [vmem:[%s1552 + $0x44] sm:$0xf]
                  %1589 = vst [vmem:[%s1553 + $0x44] sm:$0xf] %v1588
                  %v1590 = vld [vmem:[%s1552 + $0x48] sm:$0xf]
                  %1591 = vst [vmem:[%s1553 + $0x48] sm:$0xf] %v1590
                  %v1592 = vld [vmem:[%s1552 + $0x4c] sm:$0xf]
                  %1593 = vst [vmem:[%s1553 + $0x4c] sm:$0xf] %v1592
                  %v1594 = vld [vmem:[%s1552 + $0x50] sm:$0xf]
                  %1595 = vst [vmem:[%s1553 + $0x50] sm:$0xf] %v1594
                  %v1596 = vld [vmem:[%s1552 + $0x54] sm:$0xf]
                  %1597 = vst [vmem:[%s1553 + $0x54] sm:$0xf] %v1596
                  %v1598 = vld [vmem:[%s1552 + $0x58] sm:$0xf]
                  %1599 = vst [vmem:[%s1553 + $0x58] sm:$0xf] %v1598
                  %v1600 = vld [vmem:[%s1552 + $0x5c] sm:$0xf]
                  %1601 = vst [vmem:[%s1553 + $0x5c] sm:$0xf] %v1600
                  %v1602 = vld [vmem:[%s1552 + $0x60] sm:$0xf]
                  %1603 = vst [vmem:[%s1553 + $0x60] sm:$0xf] %v1602
                  %v1604 = vld [vmem:[%s1552 + $0x64] sm:$0xf]
                  %1605 = vst [vmem:[%s1553 + $0x64] sm:$0xf] %v1604
                  %v1606 = vld [vmem:[%s1552 + $0x68] sm:$0xf]
                  %1607 = vst [vmem:[%s1553 + $0x68] sm:$0xf] %v1606
                  %v1608 = vld [vmem:[%s1552 + $0x6c] sm:$0xf]
                  %1609 = vst [vmem:[%s1553 + $0x6c] sm:$0xf] %v1608
                  %v1610 = vld [vmem:[%s1552 + $0x70] sm:$0xf]
                  %1611 = vst [vmem:[%s1553 + $0x70] sm:$0xf] %v1610
                  %v1612 = vld [vmem:[%s1552 + $0x74] sm:$0xf]
                  %1613 = vst [vmem:[%s1553 + $0x74] sm:$0xf] %v1612
                  %v1614 = vld [vmem:[%s1552 + $0x78] sm:$0xf]
                  %1615 = vst [vmem:[%s1553 + $0x78] sm:$0xf] %v1614
                  %v1616 = vld [vmem:[%s1552 + $0x7c] sm:$0xf]
                  %1617 = vst [vmem:[%s1553 + $0x7c] sm:$0xf] %v1616
                  %v1618 = vld [vmem:[%s1552 + $0x80] sm:$0xf]
                  %1619 = vst [vmem:[%s1553 + $0x80] sm:$0xf] %v1618
                  %v1620 = vld [vmem:[%s1552 + $0x84] sm:$0xf]
                  %1621 = vst [vmem:[%s1553 + $0x84] sm:$0xf] %v1620
                  %v1622 = vld [vmem:[%s1552 + $0x88] sm:$0xf]
                  %1623 = vst [vmem:[%s1553 + $0x88] sm:$0xf] %v1622
                  %v1624 = vld [vmem:[%s1552 + $0x8c] sm:$0xf]
                  %1625 = vst [vmem:[%s1553 + $0x8c] sm:$0xf] %v1624
                  %v1626 = vld [vmem:[%s1552 + $0x90] sm:$0xf]
                  %1627 = vst [vmem:[%s1553 + $0x90] sm:$0xf] %v1626
                  %v1628 = vld [vmem:[%s1552 + $0x94] sm:$0xf]
                  %1629 = vst [vmem:[%s1553 + $0x94] sm:$0xf] %v1628
                  %v1630 = vld [vmem:[%s1552 + $0x98] sm:$0xf]
                  %1631 = vst [vmem:[%s1553 + $0x98] sm:$0xf] %v1630
                  %v1632 = vld [vmem:[%s1552 + $0x9c] sm:$0xf]
                  %1633 = vst [vmem:[%s1553 + $0x9c] sm:$0xf] %v1632
                  %v1634 = vld [vmem:[%s1552 + $0xa0] sm:$0xf]
                  %1635 = vst [vmem:[%s1553 + $0xa0] sm:$0xf] %v1634
                  %v1636 = vld [vmem:[%s1552 + $0xa4] sm:$0xf]
                  %1637 = vst [vmem:[%s1553 + $0xa4] sm:$0xf] %v1636
                  %v1638 = vld [vmem:[%s1552 + $0xa8] sm:$0xf]
                  %1639 = vst [vmem:[%s1553 + $0xa8] sm:$0xf] %v1638
                  %v1640 = vld [vmem:[%s1552 + $0xac] sm:$0xf]
                  %1641 = vst [vmem:[%s1553 + $0xac] sm:$0xf] %v1640
                  %v1642 = vld [vmem:[%s1552 + $0xb0] sm:$0xf]
                  %1643 = vst [vmem:[%s1553 + $0xb0] sm:$0xf] %v1642
                  %v1644 = vld [vmem:[%s1552 + $0xb4] sm:$0xf]
                  %1645 = vst [vmem:[%s1553 + $0xb4] sm:$0xf] %v1644
                  %v1646 = vld [vmem:[%s1552 + $0xb8] sm:$0xf]
                  %1647 = vst [vmem:[%s1553 + $0xb8] sm:$0xf] %v1646
                  %v1648 = vld [vmem:[%s1552 + $0xbc] sm:$0xf]
                  %1649 = vst [vmem:[%s1553 + $0xbc] sm:$0xf] %v1648
                  %v1650 = vld [vmem:[%s1552 + $0xc0] sm:$0xf]
                  %1651 = vst [vmem:[%s1553 + $0xc0] sm:$0xf] %v1650
                  %v1652 = vld [vmem:[%s1552 + $0xc4] sm:$0xf]
                  %1653 = vst [vmem:[%s1553 + $0xc4] sm:$0xf] %v1652
                  %v1654 = vld [vmem:[%s1552 + $0xc8] sm:$0xf]
                  %1655 = vst [vmem:[%s1553 + $0xc8] sm:$0xf] %v1654
                  %v1656 = vld [vmem:[%s1552 + $0xcc] sm:$0xf]
                  %1657 = vst [vmem:[%s1553 + $0xcc] sm:$0xf] %v1656
                  %v1658 = vld [vmem:[%s1552 + $0xd0] sm:$0xf]
                  %1659 = vst [vmem:[%s1553 + $0xd0] sm:$0xf] %v1658
                  %v1660 = vld [vmem:[%s1552 + $0xd4] sm:$0xf]
                  %1661 = vst [vmem:[%s1553 + $0xd4] sm:$0xf] %v1660
                  %v1662 = vld [vmem:[%s1552 + $0xd8] sm:$0xf]
                  %1663 = vst [vmem:[%s1553 + $0xd8] sm:$0xf] %v1662
                  %v1664 = vld [vmem:[%s1552 + $0xdc] sm:$0xf]
                  %1665 = vst [vmem:[%s1553 + $0xdc] sm:$0xf] %v1664
                  %v1666 = vld [vmem:[%s1552 + $0xe0] sm:$0xf]
                  %1667 = vst [vmem:[%s1553 + $0xe0] sm:$0xf] %v1666
                  %v1668 = vld [vmem:[%s1552 + $0xe4] sm:$0xf]
                  %1669 = vst [vmem:[%s1553 + $0xe4] sm:$0xf] %v1668
                  %v1670 = vld [vmem:[%s1552 + $0xe8] sm:$0xf]
                  %1671 = vst [vmem:[%s1553 + $0xe8] sm:$0xf] %v1670
                  %v1672 = vld [vmem:[%s1552 + $0xec] sm:$0xf]
                  %1673 = vst [vmem:[%s1553 + $0xec] sm:$0xf] %v1672
                  %v1674 = vld [vmem:[%s1552 + $0xf0] sm:$0xf]
                  %1675 = vst [vmem:[%s1553 + $0xf0] sm:$0xf] %v1674
                  %s1676 = sadd.s32 1, %s1551
                  %p1677 = scmp.ge.s32.totalorder %s1676, %s1543
                  %s1678 = scalar_select %p1677, 0, %s1676
                  %s1679 = smul.u32 %s1678, 244
                  %s1680 = smul.u32 %s1678, 244
                  %s1681 = scalar_lea.vmem %s1355, %s1679 [#allocation2]
                  %s1682 = scalar_lea.vmem %s1366, %s1680
                $region71: #{cnn_policy_forward.2} parent=65 // loop_footer
                  %s1548 = sadd.s32 %s1546, 1
                $region72: #{cnn_policy_forward.2} parent=65 // loop_footer_branch
                  %1545 = sbr.rel target = $region68
                $region73: #{cnn_policy_forward.2} parent=65 // loop_exit
                  _
                %s1683 = sdiv.u32.pop %s1362, 61
                %s1684 = srem.u32.pop %s1362, 61
                %s1685 = smul.u32 %s1683, 61
                %s1686 = smul.u32 4, %s1685
                %s1687 = scalar_lea.vmem %s1355, %s1686 [#allocation2]
                %s1688 = smul.u32 4, %s1685
                %s1689 = scalar_lea.vmem %s1366, %s1688
                // While loop
                $region74: #{cnn_policy_forward.2} parent=65 // loop_pre_header
                  _
                $region75: #{cnn_policy_forward.2} parent=65 // loop_header
                  %s1691 = sphi 0, %s1693
                  %p1692 = scmp.ge.s32.totalorder %s1691, %s1684
                  %s1696 = sphi 0, %s1703
                  %s1697 = sphi %s1687, %s1706
                  %s1698 = sphi %s1689, %s1707
                $region76: #{cnn_policy_forward.2} parent=65 // loop_header_branch
                  %1695 = sbr.rel (%p1692) target = $region80
                $region77: #{cnn_policy_forward.2} parent=65 // loop_body
                  %v1699 = vld [vmem:[%s1697] sm:$0xf]
                  %1700 = vst [vmem:[%s1698] sm:$0xf] %v1699
                  %s1701 = sadd.s32 1, %s1696
                  %p1702 = scmp.ge.s32.totalorder %s1701, %s1684
                  %s1703 = scalar_select %p1702, 0, %s1701
                  %s1704 = smul.u32 %s1703, 4
                  %s1705 = smul.u32 %s1703, 4
                  %s1706 = scalar_lea.vmem %s1687, %s1704 [#allocation2]
                  %s1707 = scalar_lea.vmem %s1689, %s1705
                $region78: #{cnn_policy_forward.2} parent=65 // loop_footer
                  %s1693 = sadd.s32 %s1691, 1
                $region79: #{cnn_policy_forward.2} parent=65 // loop_footer_branch
                  %1690 = sbr.rel target = $region75
                $region80: #{cnn_policy_forward.2} parent=65 // loop_exit
                  _
              $region66: #{cnn_policy_forward.2} parent=43 // pred_fallthru
                _
            $region44: #{cnn_policy_forward.2} parent=39 // pred_fallthru
              _
            // Predicated region
            $region45: #{cnn_policy_forward.2} parent=39 // pred_check
              _
            $region46: #{cnn_policy_forward.2} parent=39 // pred_check_branch
              %1373 = sbr.rel (0) target = $region48
            $region47: #{cnn_policy_forward.2} parent=39 // pred_region
              %s1375 = sdiv.u32.pop %s1362, 61
              %s1376 = srem.u32.pop %s1362, 61
              // While loop
              $region49: #{cnn_policy_forward.2} parent=47 // loop_pre_header
                _
              $region50: #{cnn_policy_forward.2} parent=47 // loop_header
                %s1378 = sphi 0, %s1380
                %p1379 = scmp.ge.s32.totalorder %s1378, %s1375
                %s1383 = sphi 0, %s1510
                %s1384 = sphi %s1355, %s1513
                %s1385 = sphi %s1366, %s1514
              $region51: #{cnn_policy_forward.2} parent=47 // loop_header_branch
                %1382 = sbr.rel (%p1379) target = $region55
              $region52: #{cnn_policy_forward.2} parent=47 // loop_body
                %v1386 = vld [vmem:[%s1384] sm:$0xf]
                %1387 = vst [vmem:[%s1385] sm:$0xf] %v1386
                %v1388 = vld [vmem:[%s1384 + $0x4] sm:$0xf]
                %1389 = vst [vmem:[%s1385 + $0x4] sm:$0xf] %v1388
                %v1390 = vld [vmem:[%s1384 + $0x8] sm:$0xf]
                %1391 = vst [vmem:[%s1385 + $0x8] sm:$0xf] %v1390
                %v1392 = vld [vmem:[%s1384 + $0xc] sm:$0xf]
                %1393 = vst [vmem:[%s1385 + $0xc] sm:$0xf] %v1392
                %v1394 = vld [vmem:[%s1384 + $0x10] sm:$0xf]
                %1395 = vst [vmem:[%s1385 + $0x10] sm:$0xf] %v1394
                %v1396 = vld [vmem:[%s1384 + $0x14] sm:$0xf]
                %1397 = vst [vmem:[%s1385 + $0x14] sm:$0xf] %v1396
                %v1398 = vld [vmem:[%s1384 + $0x18] sm:$0xf]
                %1399 = vst [vmem:[%s1385 + $0x18] sm:$0xf] %v1398
                %v1400 = vld [vmem:[%s1384 + $0x1c] sm:$0xf]
                %1401 = vst [vmem:[%s1385 + $0x1c] sm:$0xf] %v1400
                %v1402 = vld [vmem:[%s1384 + $0x20] sm:$0xf]
                %1403 = vst [vmem:[%s1385 + $0x20] sm:$0xf] %v1402
                %v1404 = vld [vmem:[%s1384 + $0x24] sm:$0xf]
                %1405 = vst [vmem:[%s1385 + $0x24] sm:$0xf] %v1404
                %v1406 = vld [vmem:[%s1384 + $0x28] sm:$0xf]
                %1407 = vst [vmem:[%s1385 + $0x28] sm:$0xf] %v1406
                %v1408 = vld [vmem:[%s1384 + $0x2c] sm:$0xf]
                %1409 = vst [vmem:[%s1385 + $0x2c] sm:$0xf] %v1408
                %v1410 = vld [vmem:[%s1384 + $0x30] sm:$0xf]
                %1411 = vst [vmem:[%s1385 + $0x30] sm:$0xf] %v1410
                %v1412 = vld [vmem:[%s1384 + $0x34] sm:$0xf]
                %1413 = vst [vmem:[%s1385 + $0x34] sm:$0xf] %v1412
                %v1414 = vld [vmem:[%s1384 + $0x38] sm:$0xf]
                %1415 = vst [vmem:[%s1385 + $0x38] sm:$0xf] %v1414
                %v1416 = vld [vmem:[%s1384 + $0x3c] sm:$0xf]
                %1417 = vst [vmem:[%s1385 + $0x3c] sm:$0xf] %v1416
                %v1418 = vld [vmem:[%s1384 + $0x40] sm:$0xf]
                %1419 = vst [vmem:[%s1385 + $0x40] sm:$0xf] %v1418
                %v1420 = vld [vmem:[%s1384 + $0x44] sm:$0xf]
                %1421 = vst [vmem:[%s1385 + $0x44] sm:$0xf] %v1420
                %v1422 = vld [vmem:[%s1384 + $0x48] sm:$0xf]
                %1423 = vst [vmem:[%s1385 + $0x48] sm:$0xf] %v1422
                %v1424 = vld [vmem:[%s1384 + $0x4c] sm:$0xf]
                %1425 = vst [vmem:[%s1385 + $0x4c] sm:$0xf] %v1424
                %v1426 = vld [vmem:[%s1384 + $0x50] sm:$0xf]
                %1427 = vst [vmem:[%s1385 + $0x50] sm:$0xf] %v1426
                %v1428 = vld [vmem:[%s1384 + $0x54] sm:$0xf]
                %1429 = vst [vmem:[%s1385 + $0x54] sm:$0xf] %v1428
                %v1430 = vld [vmem:[%s1384 + $0x58] sm:$0xf]
                %1431 = vst [vmem:[%s1385 + $0x58] sm:$0xf] %v1430
                %v1432 = vld [vmem:[%s1384 + $0x5c] sm:$0xf]
                %1433 = vst [vmem:[%s1385 + $0x5c] sm:$0xf] %v1432
                %v1434 = vld [vmem:[%s1384 + $0x60] sm:$0xf]
                %1435 = vst [vmem:[%s1385 + $0x60] sm:$0xf] %v1434
                %v1436 = vld [vmem:[%s1384 + $0x64] sm:$0xf]
                %1437 = vst [vmem:[%s1385 + $0x64] sm:$0xf] %v1436
                %v1438 = vld [vmem:[%s1384 + $0x68] sm:$0xf]
                %1439 = vst [vmem:[%s1385 + $0x68] sm:$0xf] %v1438
                %v1440 = vld [vmem:[%s1384 + $0x6c] sm:$0xf]
                %1441 = vst [vmem:[%s1385 + $0x6c] sm:$0xf] %v1440
                %v1442 = vld [vmem:[%s1384 + $0x70] sm:$0xf]
                %1443 = vst [vmem:[%s1385 + $0x70] sm:$0xf] %v1442
                %v1444 = vld [vmem:[%s1384 + $0x74] sm:$0xf]
                %1445 = vst [vmem:[%s1385 + $0x74] sm:$0xf] %v1444
                %v1446 = vld [vmem:[%s1384 + $0x78] sm:$0xf]
                %1447 = vst [vmem:[%s1385 + $0x78] sm:$0xf] %v1446
                %v1448 = vld [vmem:[%s1384 + $0x7c] sm:$0xf]
                %1449 = vst [vmem:[%s1385 + $0x7c] sm:$0xf] %v1448
                %v1450 = vld [vmem:[%s1384 + $0x80] sm:$0xf]
                %1451 = vst [vmem:[%s1385 + $0x80] sm:$0xf] %v1450
                %v1452 = vld [vmem:[%s1384 + $0x84] sm:$0xf]
                %1453 = vst [vmem:[%s1385 + $0x84] sm:$0xf] %v1452
                %v1454 = vld [vmem:[%s1384 + $0x88] sm:$0xf]
                %1455 = vst [vmem:[%s1385 + $0x88] sm:$0xf] %v1454
                %v1456 = vld [vmem:[%s1384 + $0x8c] sm:$0xf]
                %1457 = vst [vmem:[%s1385 + $0x8c] sm:$0xf] %v1456
                %v1458 = vld [vmem:[%s1384 + $0x90] sm:$0xf]
                %1459 = vst [vmem:[%s1385 + $0x90] sm:$0xf] %v1458
                %v1460 = vld [vmem:[%s1384 + $0x94] sm:$0xf]
                %1461 = vst [vmem:[%s1385 + $0x94] sm:$0xf] %v1460
                %v1462 = vld [vmem:[%s1384 + $0x98] sm:$0xf]
                %1463 = vst [vmem:[%s1385 + $0x98] sm:$0xf] %v1462
                %v1464 = vld [vmem:[%s1384 + $0x9c] sm:$0xf]
                %1465 = vst [vmem:[%s1385 + $0x9c] sm:$0xf] %v1464
                %v1466 = vld [vmem:[%s1384 + $0xa0] sm:$0xf]
                %1467 = vst [vmem:[%s1385 + $0xa0] sm:$0xf] %v1466
                %v1468 = vld [vmem:[%s1384 + $0xa4] sm:$0xf]
                %1469 = vst [vmem:[%s1385 + $0xa4] sm:$0xf] %v1468
                %v1470 = vld [vmem:[%s1384 + $0xa8] sm:$0xf]
                %1471 = vst [vmem:[%s1385 + $0xa8] sm:$0xf] %v1470
                %v1472 = vld [vmem:[%s1384 + $0xac] sm:$0xf]
                %1473 = vst [vmem:[%s1385 + $0xac] sm:$0xf] %v1472
                %v1474 = vld [vmem:[%s1384 + $0xb0] sm:$0xf]
                %1475 = vst [vmem:[%s1385 + $0xb0] sm:$0xf] %v1474
                %v1476 = vld [vmem:[%s1384 + $0xb4] sm:$0xf]
                %1477 = vst [vmem:[%s1385 + $0xb4] sm:$0xf] %v1476
                %v1478 = vld [vmem:[%s1384 + $0xb8] sm:$0xf]
                %1479 = vst [vmem:[%s1385 + $0xb8] sm:$0xf] %v1478
                %v1480 = vld [vmem:[%s1384 + $0xbc] sm:$0xf]
                %1481 = vst [vmem:[%s1385 + $0xbc] sm:$0xf] %v1480
                %v1482 = vld [vmem:[%s1384 + $0xc0] sm:$0xf]
                %1483 = vst [vmem:[%s1385 + $0xc0] sm:$0xf] %v1482
                %v1484 = vld [vmem:[%s1384 + $0xc4] sm:$0xf]
                %1485 = vst [vmem:[%s1385 + $0xc4] sm:$0xf] %v1484
                %v1486 = vld [vmem:[%s1384 + $0xc8] sm:$0xf]
                %1487 = vst [vmem:[%s1385 + $0xc8] sm:$0xf] %v1486
                %v1488 = vld [vmem:[%s1384 + $0xcc] sm:$0xf]
                %1489 = vst [vmem:[%s1385 + $0xcc] sm:$0xf] %v1488
                %v1490 = vld [vmem:[%s1384 + $0xd0] sm:$0xf]
                %1491 = vst [vmem:[%s1385 + $0xd0] sm:$0xf] %v1490
                %v1492 = vld [vmem:[%s1384 + $0xd4] sm:$0xf]
                %1493 = vst [vmem:[%s1385 + $0xd4] sm:$0xf] %v1492
                %v1494 = vld [vmem:[%s1384 + $0xd8] sm:$0xf]
                %1495 = vst [vmem:[%s1385 + $0xd8] sm:$0xf] %v1494
                %v1496 = vld [vmem:[%s1384 + $0xdc] sm:$0xf]
                %1497 = vst [vmem:[%s1385 + $0xdc] sm:$0xf] %v1496
                %v1498 = vld [vmem:[%s1384 + $0xe0] sm:$0xf]
                %1499 = vst [vmem:[%s1385 + $0xe0] sm:$0xf] %v1498
                %v1500 = vld [vmem:[%s1384 + $0xe4] sm:$0xf]
                %1501 = vst [vmem:[%s1385 + $0xe4] sm:$0xf] %v1500
                %v1502 = vld [vmem:[%s1384 + $0xe8] sm:$0xf]
                %1503 = vst [vmem:[%s1385 + $0xe8] sm:$0xf] %v1502
                %v1504 = vld [vmem:[%s1384 + $0xec] sm:$0xf]
                %1505 = vst [vmem:[%s1385 + $0xec] sm:$0xf] %v1504
                %v1506 = vld [vmem:[%s1384 + $0xf0] sm:$0xf]
                %1507 = vst [vmem:[%s1385 + $0xf0] sm:$0xf] %v1506
                %s1508 = sadd.s32 1, %s1383
                %p1509 = scmp.ge.s32.totalorder %s1508, %s1375
                %s1510 = scalar_select %p1509, 0, %s1508
                %s1511 = smul.u32 %s1510, 244
                %s1512 = smul.u32 %s1510, 244
                %s1513 = scalar_lea.vmem %s1355, %s1511 [#allocation2]
                %s1514 = scalar_lea.vmem %s1366, %s1512
              $region53: #{cnn_policy_forward.2} parent=47 // loop_footer
                %s1380 = sadd.s32 %s1378, 1
              $region54: #{cnn_policy_forward.2} parent=47 // loop_footer_branch
                %1377 = sbr.rel target = $region50
              $region55: #{cnn_policy_forward.2} parent=47 // loop_exit
                _
              %s1515 = sdiv.u32.pop %s1362, 61
              %s1516 = srem.u32.pop %s1362, 61
              %s1517 = smul.u32 %s1515, 61
              %s1518 = smul.u32 4, %s1517
              %s1519 = scalar_lea.vmem %s1355, %s1518 [#allocation2]
              %s1520 = smul.u32 4, %s1517
              %s1521 = scalar_lea.vmem %s1366, %s1520
              // While loop
              $region56: #{cnn_policy_forward.2} parent=47 // loop_pre_header
                _
              $region57: #{cnn_policy_forward.2} parent=47 // loop_header
                %s1523 = sphi 0, %s1525
                %p1524 = scmp.ge.s32.totalorder %s1523, %s1516
                %s1528 = sphi 0, %s1535
                %s1529 = sphi %s1519, %s1538
                %s1530 = sphi %s1521, %s1539
              $region58: #{cnn_policy_forward.2} parent=47 // loop_header_branch
                %1527 = sbr.rel (%p1524) target = $region62
              $region59: #{cnn_policy_forward.2} parent=47 // loop_body
                %v1531 = vld [vmem:[%s1529] sm:$0xf]
                %1532 = vst [vmem:[%s1530] sm:$0xf] %v1531
                %s1533 = sadd.s32 1, %s1528
                %p1534 = scmp.ge.s32.totalorder %s1533, %s1516
                %s1535 = scalar_select %p1534, 0, %s1533
                %s1536 = smul.u32 %s1535, 4
                %s1537 = smul.u32 %s1535, 4
                %s1538 = scalar_lea.vmem %s1519, %s1536 [#allocation2]
                %s1539 = scalar_lea.vmem %s1521, %s1537
              $region60: #{cnn_policy_forward.2} parent=47 // loop_footer
                %s1525 = sadd.s32 %s1523, 1
              $region61: #{cnn_policy_forward.2} parent=47 // loop_footer_branch
                %1522 = sbr.rel target = $region57
              $region62: #{cnn_policy_forward.2} parent=47 // loop_exit
                _
            $region48: #{cnn_policy_forward.2} parent=39 // pred_fallthru
              _
          $region40: #{cnn_policy_forward.2} parent=35 // pred_fallthru
            _
          %1708 = vnop
        $region36: #{cnn_policy_forward.2} parent=31 // pred_fallthru
          _
      $region32: #{cnn_policy_forward.2} parent=5 // pred_fallthru
        _
      %p1709 = scmp.le.s32.totalorder 2, %s9
      // Predicated region
      $region81: #{cnn_policy_forward.2} parent=5 // pred_check
        %p1710 = pneg %p1709
      $region82: #{cnn_policy_forward.2} parent=5 // pred_check_branch
        %1712 = sbr.rel (%p1710) target = $region84
      $region83: #{cnn_policy_forward.2} parent=5 // pred_region
        %s1713 = ssub.s32 %s9, 2
        // Predicated region
        $region85: #{cnn_policy_forward.2} parent=83 // pred_check
          %p1714 = pneg %p106
        $region86: #{cnn_policy_forward.2} parent=83 // pred_check_branch
          %1716 = sbr.rel (%p1714) target = $region88
        $region87: #{cnn_policy_forward.2} parent=83 // pred_region
          %s1717 = sand.u32 %s91, 1
          %s1718 = sand.u32 %s91, 1
          %s1719 = smul.addr %s1718, 244
          %s1720 = scalar_lea.vmem [#allocation2], %s1719
        $region88: #{cnn_policy_forward.2} parent=83 // pred_fallthru
          _
      $region84: #{cnn_policy_forward.2} parent=5 // pred_fallthru
        _
    $region6: #{cnn_policy_forward.2} parent=1 // loop_footer
      %s13 = sadd.s32 1, %s9
    $region7: #{cnn_policy_forward.2} parent=1 // loop_footer_branch
      %8 = sbr.rel target = $region3
    $region8: #{cnn_policy_forward.2} parent=1 // loop_exit
      _

// kernel: cnn_policy_forward.3
$region0: #{cnn_policy_forward.3}
  #allocation0 [shape = 'u32[]', space=smem, size = 0x4, offset = 0x4, fixed_abs, tag = 'smem constant byte address 0x4 - core index']
  #allocation1 [shape = 'u32[144,128]{1,0:T(1,128)}', space=vmem, size = 0x12000, scoped, tag = 'internal scratch']
  #allocation2 [shape = 'f32[2,256]{1,0:T(2,128)}', space=vmem, size = 0x800, scoped, tag = 'scratch operand']
  %s0 = inlined_call_operand.vmem [shape: bf16[2,25600], index: 0, kind: input, shape index: {}]
  %s1 = inlined_call_operand.vmem [shape: bf16[2560,384], index: 1, kind: input, shape index: {}]
  %s2 = inlined_call_operand.vmem [shape: f32[1,384], index: 2, kind: input, shape index: {}]
  %s3 = inlined_call_operand.vmem [shape: bf16[3840,256], index: 3, kind: input, shape index: {}]
  %s4 = inlined_call_operand.vmem [shape: f32[1,256], index: 4, kind: input, shape index: {}]
  %s5 = inlined_call_operand.vmem [shape: bf16[256,128], index: 5, kind: input, shape index: {}]
  %s6 = inlined_call_operand.vmem [shape: f32[1,128], index: 6, kind: input, shape index: {}]
  %s7 = inlined_call_operand.vmem [shape: f32[2,128], index: 7, kind: output, shape index: {}]
  %s8 = sld [smem:[#allocation0]]
  $region69: #{cnn_policy_forward.3} parent=0
    _
  %s10 = ssub.s32 1, %s8
  %s11 = scalar_select 0, %s10, %s8
  loop: start=0, step=1, limit=12
  $region2: #{cnn_policy_forward.3} parent=0 // loop_pre_header
    _
  $region3: #{cnn_policy_forward.3} parent=0 // loop_header
    %s13 = sphi 0, %s17
    %p14 = scmp.ge.s32.totalorder %s13, 12
    %s20 = sphi 0, %s32
    %s21 = sphi 0, %s28
    %s22 = sphi 0, %s20
    %s23 = sphi 0, %s21
    %s24 = sphi 0, %s22
    %s25 = sphi 0, %s23
    %s37 = sphi 0, %s39
    %s40 = sphi 0, %s37
    %s41 = sphi 0, %s40
    %s57 = sphi 0, %s41
    %s61 = sphi 0, %s61
    %s63 = sphi 0, %s61
    %s64 = sphi 0, %s63
    %s78 = sphi 0, %s64
    %s82 = sphi 0, %s82
    %s84 = sphi 0, %s82
    %s85 = sphi 0, %s84
    %s99 = sphi 0, %s85
    %s105 = sphi 0, %s107
    %s108 = sphi 0, %s105
    %s109 = sphi 0, %s108
    %s125 = sphi 0, %s109
    %s129 = sphi 0, %s129
    %s131 = sphi 0, %s129
    %s132 = sphi 0, %s131
    %s146 = sphi 0, %s132
    %s150 = sphi 0, %s150
    %s152 = sphi 0, %s150
    %s153 = sphi 0, %s152
    %s167 = sphi 0, %s153
    %s171 = sphi 0, %s171
    %s173 = sphi 0, %s171
    %s174 = sphi 0, %s173
    %s188 = sphi 0, %s174
    %s194 = sphi 0, %s196
    %s197 = sphi 0, %s194
    %s198 = sphi 0, %s197
    %s214 = sphi 0, %s198
  $region4: #{cnn_policy_forward.3} parent=0 // loop_header_branch
    %16 = sbr.rel (%p14) target = $region8
  $region5: #{cnn_policy_forward.3} parent=0 // loop_body
    %s18 = ssub.s32 %s13, 1
    %s19 = ssub.s32 %s13, 2
    %s26 = sadd.s32 1, %s21
    %p27 = scmp.ge.s32.totalorder %s26, 10
    %s28 = scalar_select %p27, 0, %s26
    %s29 = sadd.s32 1, %s20
    %s30 = scalar_select %p27, %s29, %s20
    %p31 = scmp.ge.s32.totalorder %s30, 1
    %s32 = scalar_select %p31, 0, %s30
    %s33 = ssub.s32 %s20, %s32
    %s34 = ssub.s32 %s21, %s28
    %s35 = sor.u32 %s33, %s34
    %p36 = scmp.eq.s32.totalorder %s35, 0
    %s38 = sadd.s32 %s37, 1
    %s39 = scalar_select %p36, %s37, %s38
    %p42 = pneg %p36
    %p43 = scmp.eq.s32.totalorder %s13, 9
    %p44 = por %p42, %p43
    %p45 = scmp.ne.s32.totalorder %s37, %s40
    %p46 = scmp.eq.s32.totalorder %s13, 0
    %p47 = por %p45, %p46
    %p48 = scmp.ne.s32.totalorder %s37, %s40
    %p49 = scmp.eq.s32.totalorder %s18, 9
    %p50 = por %p48, %p49
    %p51 = scmp.ne.s32.totalorder %s40, %s41
    %p52 = scmp.eq.s32.totalorder %s18, 0
    %p53 = por %p51, %p52
    %p54 = scmp.ne.s32.totalorder %s40, %s41
    %p55 = scmp.eq.s32.totalorder %s19, 9
    %p56 = por %p54, %p55
    %p58 = scmp.ne.s32.totalorder %s41, %s57
    %p59 = scmp.eq.s32.totalorder %s19, 0
    %p60 = por %p58, %p59
    %s62 = sadd.s32 %s61, 1
    %p65 = scmp.eq.s32.totalorder %s13, 9
    %p66 = scmp.ne.s32.totalorder %s61, %s63
    %p67 = scmp.eq.s32.totalorder %s13, 0
    %p68 = por %p66, %p67
    %p69 = scmp.ne.s32.totalorder %s61, %s63
    %p70 = scmp.eq.s32.totalorder %s18, 9
    %p71 = por %p69, %p70
    %p72 = scmp.ne.s32.totalorder %s63, %s64
    %p73 = scmp.eq.s32.totalorder %s18, 0
    %p74 = por %p72, %p73
    %p75 = scmp.ne.s32.totalorder %s63, %s64
    %p76 = scmp.eq.s32.totalorder %s19, 9
    %p77 = por %p75, %p76
    %p79 = scmp.ne.s32.totalorder %s64, %s78
    %p80 = scmp.eq.s32.totalorder %s19, 0
    %p81 = por %p79, %p80
    %s83 = sadd.s32 %s82, 1
    %p86 = scmp.eq.s32.totalorder %s13, 9
    %p87 = scmp.ne.s32.totalorder %s82, %s84
    %p88 = scmp.eq.s32.totalorder %s13, 0
    %p89 = por %p87, %p88
    %p90 = scmp.ne.s32.totalorder %s82, %s84
    %p91 = scmp.eq.s32.totalorder %s18, 9
    %p92 = por %p90, %p91
    %p93 = scmp.ne.s32.totalorder %s84, %s85
    %p94 = scmp.eq.s32.totalorder %s18, 0
    %p95 = por %p93, %p94
    %p96 = scmp.ne.s32.totalorder %s84, %s85
    %p97 = scmp.eq.s32.totalorder %s19, 9
    %p98 = por %p96, %p97
    %p100 = scmp.ne.s32.totalorder %s85, %s99
    %p101 = scmp.eq.s32.totalorder %s19, 0
    %p102 = por %p100, %p101
    %s103 = ssub.s32 %s21, %s28
    %p104 = scmp.eq.s32.totalorder %s103, 0
    %s106 = sadd.s32 %s105, 1
    %s107 = scalar_select %p104, %s105, %s106
    %p110 = pneg %p104
    %p111 = scmp.eq.s32.totalorder %s13, 9
    %p112 = por %p110, %p111
    %p113 = scmp.ne.s32.totalorder %s105, %s108
    %p114 = scmp.eq.s32.totalorder %s13, 0
    %p115 = por %p113, %p114
    %p116 = scmp.ne.s32.totalorder %s105, %s108
    %p117 = scmp.eq.s32.totalorder %s18, 9
    %p118 = por %p116, %p117
    %p119 = scmp.ne.s32.totalorder %s108, %s109
    %p120 = scmp.eq.s32.totalorder %s18, 0
    %p121 = por %p119, %p120
    %p122 = scmp.ne.s32.totalorder %s108, %s109
    %p123 = scmp.eq.s32.totalorder %s19, 9
    %p124 = por %p122, %p123
    %p126 = scmp.ne.s32.totalorder %s109, %s125
    %p127 = scmp.eq.s32.totalorder %s19, 0
    %p128 = por %p126, %p127
    %s130 = sadd.s32 %s129, 1
    %p133 = scmp.eq.s32.totalorder %s13, 9
    %p134 = scmp.ne.s32.totalorder %s129, %s131
    %p135 = scmp.eq.s32.totalorder %s13, 0
    %p136 = por %p134, %p135
    %p137 = scmp.ne.s32.totalorder %s129, %s131
    %p138 = scmp.eq.s32.totalorder %s18, 9
    %p139 = por %p137, %p138
    %p140 = scmp.ne.s32.totalorder %s131, %s132
    %p141 = scmp.eq.s32.totalorder %s18, 0
    %p142 = por %p140, %p141
    %p143 = scmp.ne.s32.totalorder %s131, %s132
    %p144 = scmp.eq.s32.totalorder %s19, 9
    %p145 = por %p143, %p144
    %p147 = scmp.ne.s32.totalorder %s132, %s146
    %p148 = scmp.eq.s32.totalorder %s19, 0
    %p149 = por %p147, %p148
    %s151 = sadd.s32 %s150, 1
    %p154 = scmp.eq.s32.totalorder %s13, 9
    %p155 = scmp.ne.s32.totalorder %s150, %s152
    %p156 = scmp.eq.s32.totalorder %s13, 0
    %p157 = por %p155, %p156
    %p158 = scmp.ne.s32.totalorder %s150, %s152
    %p159 = scmp.eq.s32.totalorder %s18, 9
    %p160 = por %p158, %p159
    %p161 = scmp.ne.s32.totalorder %s152, %s153
    %p162 = scmp.eq.s32.totalorder %s18, 0
    %p163 = por %p161, %p162
    %p164 = scmp.ne.s32.totalorder %s152, %s153
    %p165 = scmp.eq.s32.totalorder %s19, 9
    %p166 = por %p164, %p165
    %p168 = scmp.ne.s32.totalorder %s153, %s167
    %p169 = scmp.eq.s32.totalorder %s19, 0
    %p170 = por %p168, %p169
    %s172 = sadd.s32 %s171, 1
    %p175 = scmp.eq.s32.totalorder %s13, 9
    %p176 = scmp.ne.s32.totalorder %s171, %s173
    %p177 = scmp.eq.s32.totalorder %s13, 0
    %p178 = por %p176, %p177
    %p179 = scmp.ne.s32.totalorder %s171, %s173
    %p180 = scmp.eq.s32.totalorder %s18, 9
    %p181 = por %p179, %p180
    %p182 = scmp.ne.s32.totalorder %s173, %s174
    %p183 = scmp.eq.s32.totalorder %s18, 0
    %p184 = por %p182, %p183
    %p185 = scmp.ne.s32.totalorder %s173, %s174
    %p186 = scmp.eq.s32.totalorder %s19, 9
    %p187 = por %p185, %p186
    %p189 = scmp.ne.s32.totalorder %s174, %s188
    %p190 = scmp.eq.s32.totalorder %s19, 0
    %p191 = por %p189, %p190
    %s192 = ssub.s32 %s20, %s32
    %p193 = scmp.eq.s32.totalorder %s192, 0
    %s195 = sadd.s32 %s194, 1
    %s196 = scalar_select %p193, %s194, %s195
    %p199 = pneg %p193
    %p200 = scmp.eq.s32.totalorder %s13, 9
    %p201 = por %p199, %p200
    %p202 = scmp.ne.s32.totalorder %s194, %s197
    %p203 = scmp.eq.s32.totalorder %s13, 0
    %p204 = por %p202, %p203
    %p205 = scmp.ne.s32.totalorder %s194, %s197
    %p206 = scmp.eq.s32.totalorder %s18, 9
    %p207 = por %p205, %p206
    %p208 = scmp.ne.s32.totalorder %s197, %s198
    %p209 = scmp.eq.s32.totalorder %s18, 0
    %p210 = por %p208, %p209
    %p211 = scmp.ne.s32.totalorder %s197, %s198
    %p212 = scmp.eq.s32.totalorder %s19, 9
    %p213 = por %p211, %p212
    %p215 = scmp.ne.s32.totalorder %s198, %s214
    %p216 = scmp.eq.s32.totalorder %s19, 0
    %p217 = por %p215, %p216
    %p218 = scmp.le.s32.totalorder 1, %s13
    %p219 = scmp.lt.s32.totalorder %s13, 11
    %p220 = pnand %p218, %p219
    %p221 = pneg %p220
    // Predicated region
    $region9: #{cnn_policy_forward.3} parent=5 // pred_check
      _
    $region10: #{cnn_policy_forward.3} parent=5 // pred_check_branch
      %223 = sbr.rel (%p220) target = $region12
    $region11: #{cnn_policy_forward.3} parent=5 // pred_region
      %s224 = ssub.s32 %s13, 1
      // Predicated region
      $region13: #{cnn_policy_forward.3} parent=11 // pred_check
        %p225 = pneg %p74
      $region14: #{cnn_policy_forward.3} parent=11 // pred_check_branch
        %227 = sbr.rel (%p225) target = $region16
      $region15: #{cnn_policy_forward.3} parent=11 // pred_region
        _
      $region16: #{cnn_policy_forward.3} parent=11 // pred_fallthru
        _
      // Predicated region
      $region17: #{cnn_policy_forward.3} parent=11 // pred_check
        %p228 = pneg %p95
      $region18: #{cnn_policy_forward.3} parent=11 // pred_check_branch
        %230 = sbr.rel (%p228) target = $region20
      $region19: #{cnn_policy_forward.3} parent=11 // pred_region
        _
      $region20: #{cnn_policy_forward.3} parent=11 // pred_fallthru
        _
      // Predicated region
      $region21: #{cnn_policy_forward.3} parent=11 // pred_check
        %p231 = pneg %p142
      $region22: #{cnn_policy_forward.3} parent=11 // pred_check_branch
        %233 = sbr.rel (%p231) target = $region24
      $region23: #{cnn_policy_forward.3} parent=11 // pred_region
        _
      $region24: #{cnn_policy_forward.3} parent=11 // pred_fallthru
        _
      // Predicated region
      $region25: #{cnn_policy_forward.3} parent=11 // pred_check
        %p234 = pneg %p163
      $region26: #{cnn_policy_forward.3} parent=11 // pred_check_branch
        %236 = sbr.rel (%p234) target = $region28
      $region27: #{cnn_policy_forward.3} parent=11 // pred_region
        _
      $region28: #{cnn_policy_forward.3} parent=11 // pred_fallthru
        _
      // Predicated region
      $region29: #{cnn_policy_forward.3} parent=11 // pred_check
        %p237 = pneg %p184
      $region30: #{cnn_policy_forward.3} parent=11 // pred_check_branch
        %239 = sbr.rel (%p237) target = $region32
      $region31: #{cnn_policy_forward.3} parent=11 // pred_region
        _
      $region32: #{cnn_policy_forward.3} parent=11 // pred_fallthru
        _
    $region12: #{cnn_policy_forward.3} parent=5 // pred_fallthru
      _
    %p240 = scmp.lt.s32.totalorder %s13, 10
    // Predicated region
    $region33: #{cnn_policy_forward.3} parent=5 // pred_check
      %p241 = pneg %p240
    $region34: #{cnn_policy_forward.3} parent=5 // pred_check_branch
      %243 = sbr.rel (%p241) target = $region36
    $region35: #{cnn_policy_forward.3} parent=5 // pred_region
      // Predicated region
      $region37: #{cnn_policy_forward.3} parent=35 // pred_check
        %p244 = pneg %p47
      $region38: #{cnn_policy_forward.3} parent=35 // pred_check_branch
        %246 = sbr.rel (%p244) target = $region40
      $region39: #{cnn_policy_forward.3} parent=35 // pred_region
        %s247 = smul.u32 20, %s21
        %p248 = scmp.lt.s32.totalorder %s20, 0
        %s249 = scalar_select %p248, %s20, 0
        %p250 = scmp.lt.s32.totalorder %s247, 199
        %s251 = scalar_select %p250, %s247, 199
        %s252 = smul.addr %s249, 200
        %s253 = sadd.s32 %s251, %s252
        %s254 = scalar_lea.vmem %s0, %s253
        %s255 = smul.u32 20, %s21
      $region40: #{cnn_policy_forward.3} parent=35 // pred_fallthru
        _
      // Predicated region
      $region41: #{cnn_policy_forward.3} parent=35 // pred_check
        %p256 = pneg %p115
      $region42: #{cnn_policy_forward.3} parent=35 // pred_check_branch
        %258 = sbr.rel (%p256) target = $region44
      $region43: #{cnn_policy_forward.3} parent=35 // pred_region
        %s259 = smul.u32 48, %s21
        %p260 = scmp.lt.s32.totalorder %s259, 479
        %s261 = scalar_select %p260, %s259, 479
        %s262 = smul.addr %s261, 2
        %s263 = smul.addr %s262, 4
        %s264 = scalar_lea.vmem %s3, %s263
        %s265 = smul.u32 48, %s21
      $region44: #{cnn_policy_forward.3} parent=35 // pred_fallthru
        _
    $region36: #{cnn_policy_forward.3} parent=5 // pred_fallthru
      _
    %p266 = scmp.le.s32.totalorder 1, %s13
    %p267 = scmp.lt.s32.totalorder %s13, 11
    %p268 = pnand %p266, %p267
    %p269 = pneg %p268
    // Predicated region
    $region45: #{cnn_policy_forward.3} parent=5 // pred_check
      _
    $region46: #{cnn_policy_forward.3} parent=5 // pred_check_branch
      %271 = sbr.rel (%p268) target = $region48
    $region47: #{cnn_policy_forward.3} parent=5 // pred_region
      %s272 = ssub.s32 %s13, 1
      %s273 = smul.u32 20, %s23
      %p274 = scmp.lt.s32.totalorder %s22, 0
      %s275 = scalar_select %p274, %s22, 0
      %p276 = scmp.lt.s32.totalorder %s273, 199
      %s277 = scalar_select %p276, %s273, 199
      %s278 = smul.addr %s275, 200
      %s279 = sadd.s32 %s277, %s278
      %s280 = scalar_lea.vmem %s0, %s279
      %p281 = pneg %p53
      %p282 = pneg %p50
      %p283 = pneg %p74
      %p284 = pneg %p71
      %p285 = pneg %p95
      %p286 = pneg %p92
      %s287 = smul.u32 48, %s23
      %p288 = scmp.lt.s32.totalorder %s287, 479
      %s289 = scalar_select %p288, %s287, 479
      %s290 = smul.addr %s289, 2
      %s291 = smul.addr %s290, 4
      %s292 = scalar_lea.vmem %s3, %s291
      %p293 = pneg %p121
      %p294 = pneg %p118
      %p295 = pneg %p142
      %p296 = pneg %p139
      %p297 = pneg %p163
      %p298 = pneg %p160
      %p299 = pneg %p184
      %p300 = pneg %p181
      %p301 = pneg %p210
      %p302 = pneg %p207
      %p303 = scmp.lt.s32.totalorder %s22, 0
      %s304 = scalar_select %p303, %s22, 0
      %s305 = smul.addr %s304, 2
      %s306 = scalar_lea.vmem %s7, %s305
      %s307 = smul.u32 20, %s23
      %p308 = scmp.lt.s32.totalorder %s22, 0
      %s309 = scalar_select %p308, %s22, 0
      %p310 = scmp.lt.s32.totalorder %s307, 199
      %s311 = scalar_select %p310, %s307, 199
      %s312 = smul.addr %s309, 200
      %s313 = sadd.s32 %s311, %s312
      %s314 = scalar_lea.vmem %s0, %s313
      %s315 = smul.u32 20, %s23
      %s316 = smul.u32 48, %s23
      %p317 = scmp.lt.s32.totalorder %s316, 479
      %s318 = scalar_select %p317, %s316, 479
      %s319 = smul.addr %s318, 2
      %s320 = smul.addr %s319, 4
      %s321 = scalar_lea.vmem %s3, %s320
      %s322 = smul.u32 48, %s23
      %p323 = scmp.lt.s32.totalorder %s22, 0
      %s324 = scalar_select %p323, %s22, 0
      %s325 = smul.addr %s324, 2
      %s326 = scalar_lea.vmem %s7, %s325
      %p328 = scmp.eq.s32.totalorder %s23, 0
      // Predicated region
      $region49: #{cnn_policy_forward.3} parent=47 // pred_check
        %p329 = pneg %p328
      $region50: #{cnn_policy_forward.3} parent=47 // pred_check_branch
        %331 = sbr.rel (%p329) target = $region52
      $region51: #{cnn_policy_forward.3} parent=47 // pred_region
        %332 = vst [vmem:[#allocation2] sm:$0xf] 0.0
      $region52: #{cnn_policy_forward.3} parent=47 // pred_fallthru
        _
      %v333 = vld [vmem:[%s314] sm:$0xff]
      %v334 = vld [vmem:[%s314 + $0x8] sm:$0xff]
      %v335 = vld [vmem:[%s314 + $0x10] sm:$0xf]
      %v336 = vld [vmem:[%s1] sm:$0xff]
      %v337 = vld [vmem:[%s1 + $0x8] sm:$0xf]
      %v338 = vld [vmem:[%s1 + $0xc] sm:$0xff]
      %v339 = vld [vmem:[%s1 + $0x14] sm:$0xf]
      %v340 = vld [vmem:[%s1 + $0x18] sm:$0xff]
      %v341 = vld [vmem:[%s1 + $0x20] sm:$0xf]
      %v342 = vld [vmem:[%s1 + $0x24] sm:$0xff]
      %v343 = vld [vmem:[%s1 + $0x2c] sm:$0xf]
      %v344 = vld [vmem:[%s1 + $0x30] sm:$0xff]
      %v345 = vld [vmem:[%s1 + $0x38] sm:$0xf]
      %v346 = vld [vmem:[%s1 + $0x3c] sm:$0xff]
      %v347 = vld [vmem:[%s1 + $0x44] sm:$0xf]
      %v348 = vld [vmem:[%s1 + $0x48] sm:$0xff]
      %v349 = vld [vmem:[%s1 + $0x50] sm:$0xf]
      %v350 = vld [vmem:[%s1 + $0x54] sm:$0xff]
      %v351 = vld [vmem:[%s1 + $0x5c] sm:$0xf]
      %v352 = vld [vmem:[%s1 + $0x60] sm:$0xff]
      %v353 = vld [vmem:[%s1 + $0x68] sm:$0xf]
      %v354 = vld [vmem:[%s1 + $0x6c] sm:$0xff]
      %v355 = vld [vmem:[%s1 + $0x74] sm:$0xf]
      %v356 = vld [vmem:[%s1 + $0x78] sm:$0xff]
      %v357 = vld [vmem:[%s1 + $0x80] sm:$0xf]
      %v358 = vld [vmem:[%s1 + $0x84] sm:$0xff]
      %v359 = vld [vmem:[%s1 + $0x8c] sm:$0xf]
      %v360 = vld [vmem:[%s1 + $0x90] sm:$0xff]
      %v361 = vld [vmem:[%s1 + $0x98] sm:$0xf]
      %v362 = vld [vmem:[%s1 + $0x9c] sm:$0xff]
      %v363 = vld [vmem:[%s1 + $0xa4] sm:$0xf]
      %v364 = vld [vmem:[%s1 + $0xa8] sm:$0xff]
      %v365 = vld [vmem:[%s1 + $0xb0] sm:$0xf]
      %v366 = vld [vmem:[%s1 + $0xb4] sm:$0xff]
      %v367 = vld [vmem:[%s1 + $0xbc] sm:$0xf]
      %v368 = vld [vmem:[%s1 + $0xc0] sm:$0xff]
      %v369 = vld [vmem:[%s1 + $0xc8] sm:$0xf]
      %v370 = vld [vmem:[%s1 + $0xcc] sm:$0xff]
      %v371 = vld [vmem:[%s1 + $0xd4] sm:$0xf]
      %v372 = vld [vmem:[%s1 + $0xd8] sm:$0xff]
      %v373 = vld [vmem:[%s1 + $0xe0] sm:$0xf]
      %v374 = vld [vmem:[%s1 + $0xe4] sm:$0xff]
      %v375 = vld [vmem:[%s1 + $0xec] sm:$0xf]
      %v376 = vld [vmem:[%s1 + $0xf0] sm:$0xff]
      %v377 = vld [vmem:[%s1 + $0xf8] sm:$0xf]
      %v378 = vld [vmem:[%s1 + $0xfc] sm:$0xff]
      %v379 = vld [vmem:[%s1 + $0x104] sm:$0xf]
      %v380 = vld [vmem:[%s1 + $0x108] sm:$0xff]
      %v381 = vld [vmem:[%s1 + $0x110] sm:$0xf]
      %v382 = vld [vmem:[%s1 + $0x114] sm:$0xff]
      %v383 = vld [vmem:[%s1 + $0x11c] sm:$0xf]
      %v384 = vld [vmem:[%s1 + $0x120] sm:$0xff]
      %v385 = vld [vmem:[%s1 + $0x128] sm:$0xf]
      %v386 = vld [vmem:[%s1 + $0x12c] sm:$0xff]
      %v387 = vld [vmem:[%s1 + $0x134] sm:$0xf]
      %v388 = vld [vmem:[%s1 + $0x138] sm:$0xff]
      %v389 = vld [vmem:[%s1 + $0x140] sm:$0xf]
      %v390 = vld [vmem:[%s1 + $0x144] sm:$0xff]
      %v391 = vld [vmem:[%s1 + $0x14c] sm:$0xf]
      %v392 = vld [vmem:[%s1 + $0x150] sm:$0xff]
      %v393 = vld [vmem:[%s1 + $0x158] sm:$0xf]
      %v394 = vld [vmem:[%s1 + $0x15c] sm:$0xff]
      %v395 = vld [vmem:[%s1 + $0x164] sm:$0xf]
      %v396 = vld [vmem:[%s1 + $0x168] sm:$0xff]
      %v397 = vld [vmem:[%s1 + $0x170] sm:$0xf]
      %v398 = vld [vmem:[%s1 + $0x174] sm:$0xff]
      %v399 = vld [vmem:[%s1 + $0x17c] sm:$0xf]
      %v400 = vld [vmem:[%s1 + $0x180] sm:$0xff]
      %v401 = vld [vmem:[%s1 + $0x188] sm:$0xf]
      %v402 = vld [vmem:[%s1 + $0x18c] sm:$0xff]
      %v403 = vld [vmem:[%s1 + $0x194] sm:$0xf]
      %v404 = vld [vmem:[%s1 + $0x198] sm:$0xff]
      %v405 = vld [vmem:[%s1 + $0x1a0] sm:$0xf]
      %v406 = vld [vmem:[%s1 + $0x1a4] sm:$0xff]
      %v407 = vld [vmem:[%s1 + $0x1ac] sm:$0xf]
      %v408 = vld [vmem:[%s1 + $0x1b0] sm:$0xff]
      %v409 = vld [vmem:[%s1 + $0x1b8] sm:$0xf]
      %v410 = vld [vmem:[%s1 + $0x1bc] sm:$0xff]
      %v411 = vld [vmem:[%s1 + $0x1c4] sm:$0xf]
      %v412 = vld [vmem:[%s1 + $0x1c8] sm:$0xff]
      %v413 = vld [vmem:[%s1 + $0x1d0] sm:$0xf]
      %v414 = vld [vmem:[%s1 + $0x1d4] sm:$0xff]
      %v415 = vld [vmem:[%s1 + $0x1dc] sm:$0xf]
      %v416 = vld [vmem:[%s1 + $0x1e0] sm:$0xff]
      %v417 = vld [vmem:[%s1 + $0x1e8] sm:$0xf]
      %v418 = vld [vmem:[%s1 + $0x1ec] sm:$0xff]
      %v419 = vld [vmem:[%s1 + $0x1f4] sm:$0xf]
      %v420 = vld [vmem:[%s1 + $0x1f8] sm:$0xff]
      %v421 = vld [vmem:[%s1 + $0x200] sm:$0xf]
      %v422 = vld [vmem:[%s1 + $0x204] sm:$0xff]
      %v423 = vld [vmem:[%s1 + $0x20c] sm:$0xf]
      %v424 = vld [vmem:[%s1 + $0x210] sm:$0xff]
      %v425 = vld [vmem:[%s1 + $0x218] sm:$0xf]
      %v426 = vld [vmem:[%s1 + $0x21c] sm:$0xff]
      %v427 = vld [vmem:[%s1 + $0x224] sm:$0xf]
      %v428 = vld [vmem:[%s1 + $0x228] sm:$0xff]
      %v429 = vld [vmem:[%s1 + $0x230] sm:$0xf]
      %v430 = vld [vmem:[%s1 + $0x234] sm:$0xff]
      %v431 = vld [vmem:[%s1 + $0x23c] sm:$0xf]
      %v432 = vld [vmem:[%s1 + $0x240] sm:$0xff]
      %v433 = vld [vmem:[%s1 + $0x248] sm:$0xf]
      %v434 = vld [vmem:[%s1 + $0x24c] sm:$0xff]
      %v435 = vld [vmem:[%s1 + $0x254] sm:$0xf]
      %v436 = vld [vmem:[%s1 + $0x258] sm:$0xff]
      %v437 = vld [vmem:[%s1 + $0x260] sm:$0xf]
      %v438 = vld [vmem:[%s1 + $0x264] sm:$0xff]
      %v439 = vld [vmem:[%s1 + $0x26c] sm:$0xf]
      %v440 = vld [vmem:[%s1 + $0x270] sm:$0xff]
      %v441 = vld [vmem:[%s1 + $0x278] sm:$0xf]
      %v442 = vld [vmem:[%s1 + $0x27c] sm:$0xff]
      %v443 = vld [vmem:[%s1 + $0x284] sm:$0xf]
      %v444 = vld [vmem:[%s1 + $0x288] sm:$0xff]
      %v445 = vld [vmem:[%s1 + $0x290] sm:$0xf]
      %v446 = vld [vmem:[%s1 + $0x294] sm:$0xff]
      %v447 = vld [vmem:[%s1 + $0x29c] sm:$0xf]
      %v448 = vld [vmem:[%s1 + $0x2a0] sm:$0xff]
      %v449 = vld [vmem:[%s1 + $0x2a8] sm:$0xf]
      %v450 = vld [vmem:[%s1 + $0x2ac] sm:$0xff]
      %v451 = vld [vmem:[%s1 + $0x2b4] sm:$0xf]
      %v452 = vld [vmem:[%s1 + $0x2b8] sm:$0xff]
      %v453 = vld [vmem:[%s1 + $0x2c0] sm:$0xf]
      %v454 = vld [vmem:[%s1 + $0x2c4] sm:$0xff]
      %v455 = vld [vmem:[%s1 + $0x2cc] sm:$0xf]
      %v456 = vld [vmem:[%s1 + $0x2d0] sm:$0xff]
      %v457 = vld [vmem:[%s1 + $0x2d8] sm:$0xf]
      %v458 = vld [vmem:[%s1 + $0x2dc] sm:$0xff]
      %v459 = vld [vmem:[%s1 + $0x2e4] sm:$0xf]
      %v460 = vld [vmem:[%s1 + $0x2e8] sm:$0xff]
      %v461 = vld [vmem:[%s1 + $0x2f0] sm:$0xf]
      %v462 = vld [vmem:[%s1 + $0x2f4] sm:$0xff]
      %v463 = vld [vmem:[%s1 + $0x2fc] sm:$0xf]
      %v464 = vld [vmem:[%s1 + $0x300] sm:$0xff]
      %v465 = vld [vmem:[%s1 + $0x308] sm:$0xf]
      %v466 = vld [vmem:[%s1 + $0x30c] sm:$0xff]
      %v467 = vld [vmem:[%s1 + $0x314] sm:$0xf]
      %v468 = vld [vmem:[%s1 + $0x318] sm:$0xff]
      %v469 = vld [vmem:[%s1 + $0x320] sm:$0xf]
      %v470 = vld [vmem:[%s1 + $0x324] sm:$0xff]
      %v471 = vld [vmem:[%s1 + $0x32c] sm:$0xf]
      %v472 = vld [vmem:[%s1 + $0x330] sm:$0xff]
      %v473 = vld [vmem:[%s1 + $0x338] sm:$0xf]
      %v474 = vld [vmem:[%s1 + $0x33c] sm:$0xff]
      %v475 = vld [vmem:[%s1 + $0x344] sm:$0xf]
      %v476 = vld [vmem:[%s1 + $0x348] sm:$0xff]
      %v477 = vld [vmem:[%s1 + $0x350] sm:$0xf]
      %v478 = vld [vmem:[%s1 + $0x354] sm:$0xff]
      %v479 = vld [vmem:[%s1 + $0x35c] sm:$0xf]
      %v480 = vld [vmem:[%s1 + $0x360] sm:$0xff]
      %v481 = vld [vmem:[%s1 + $0x368] sm:$0xf]
      %v482 = vld [vmem:[%s1 + $0x36c] sm:$0xff]
      %v483 = vld [vmem:[%s1 + $0x374] sm:$0xf]
      %v484 = vld [vmem:[%s1 + $0x378] sm:$0xff]
      %v485 = vld [vmem:[%s1 + $0x380] sm:$0xf]
      %v486 = vld [vmem:[%s1 + $0x384] sm:$0xff]
      %v487 = vld [vmem:[%s1 + $0x38c] sm:$0xf]
      %v488 = vld [vmem:[%s1 + $0x390] sm:$0xff]
      %v489 = vld [vmem:[%s1 + $0x398] sm:$0xf]
      %v490 = vld [vmem:[%s1 + $0x39c] sm:$0xff]
      %v491 = vld [vmem:[%s1 + $0x3a4] sm:$0xf]
      %v492 = vld [vmem:[%s1 + $0x3a8] sm:$0xff]
      %v493 = vld [vmem:[%s1 + $0x3b0] sm:$0xf]
      %v494 = vld [vmem:[%s1 + $0x3b4] sm:$0xff]
      %v495 = vld [vmem:[%s1 + $0x3bc] sm:$0xf]
      %v496 = vld [vmem:[%s1 + $0x3c0] sm:$0xff]
      %v497 = vld [vmem:[%s1 + $0x3c8] sm:$0xf]
      %v498 = vld [vmem:[%s1 + $0x3cc] sm:$0xff]
      %v499 = vld [vmem:[%s1 + $0x3d4] sm:$0xf]
      %v500 = vld [vmem:[%s1 + $0x3d8] sm:$0xff]
      %v501 = vld [vmem:[%s1 + $0x3e0] sm:$0xf]
      %v502 = vld [vmem:[%s1 + $0x3e4] sm:$0xff]
      %v503 = vld [vmem:[%s1 + $0x3ec] sm:$0xf]
      %v504 = vld [vmem:[%s1 + $0x3f0] sm:$0xff]
      %v505 = vld [vmem:[%s1 + $0x3f8] sm:$0xf]
      %v506 = vld [vmem:[%s1 + $0x3fc] sm:$0xff]
      %v507 = vld [vmem:[%s1 + $0x404] sm:$0xf]
      %v508 = vld [vmem:[%s1 + $0x408] sm:$0xff]
      %v509 = vld [vmem:[%s1 + $0x410] sm:$0xf]
      %v510 = vld [vmem:[%s1 + $0x414] sm:$0xff]
      %v511 = vld [vmem:[%s1 + $0x41c] sm:$0xf]
      %v512 = vld [vmem:[%s1 + $0x420] sm:$0xff]
      %v513 = vld [vmem:[%s1 + $0x428] sm:$0xf]
      %v514 = vld [vmem:[%s1 + $0x42c] sm:$0xff]
      %v515 = vld [vmem:[%s1 + $0x434] sm:$0xf]
      %v516 = vld [vmem:[%s1 + $0x438] sm:$0xff]
      %v517 = vld [vmem:[%s1 + $0x440] sm:$0xf]
      %v518 = vld [vmem:[%s1 + $0x444] sm:$0xff]
      %v519 = vld [vmem:[%s1 + $0x44c] sm:$0xf]
      %v520 = vld [vmem:[%s1 + $0x450] sm:$0xff]
      %v521 = vld [vmem:[%s1 + $0x458] sm:$0xf]
      %v522 = vld [vmem:[%s1 + $0x45c] sm:$0xff]
      %v523 = vld [vmem:[%s1 + $0x464] sm:$0xf]
      %v524 = vld [vmem:[%s1 + $0x468] sm:$0xff]
      %v525 = vld [vmem:[%s1 + $0x470] sm:$0xf]
      %v526 = vld [vmem:[%s1 + $0x474] sm:$0xff]
      %v527 = vld [vmem:[%s1 + $0x47c] sm:$0xf]
      %v528 = vld [vmem:[%s1 + $0x480] sm:$0xff]
      %v529 = vld [vmem:[%s1 + $0x488] sm:$0xf]
      %v530 = vld [vmem:[%s1 + $0x48c] sm:$0xff]
      %v531 = vld [vmem:[%s1 + $0x494] sm:$0xf]
      %v532 = vld [vmem:[%s1 + $0x498] sm:$0xff]
      %v533 = vld [vmem:[%s1 + $0x4a0] sm:$0xf]
      %v534 = vld [vmem:[%s1 + $0x4a4] sm:$0xff]
      %v535 = vld [vmem:[%s1 + $0x4ac] sm:$0xf]
      %v536 = vld [vmem:[%s1 + $0x4b0] sm:$0xff]
      %v537 = vld [vmem:[%s1 + $0x4b8] sm:$0xf]
      %v538 = vld [vmem:[%s1 + $0x4bc] sm:$0xff]
      %v539 = vld [vmem:[%s1 + $0x4c4] sm:$0xf]
      %v540 = vld [vmem:[%s1 + $0x4c8] sm:$0xff]
      %v541 = vld [vmem:[%s1 + $0x4d0] sm:$0xf]
      %v542 = vld [vmem:[%s1 + $0x4d4] sm:$0xff]
      %v543 = vld [vmem:[%s1 + $0x4dc] sm:$0xf]
      %v544 = vld [vmem:[%s1 + $0x4e0] sm:$0xff]
      %v545 = vld [vmem:[%s1 + $0x4e8] sm:$0xf]
      %v546 = vld [vmem:[%s1 + $0x4ec] sm:$0xff]
      %v547 = vld [vmem:[%s1 + $0x4f4] sm:$0xf]
      %v548 = vld [vmem:[%s1 + $0x4f8] sm:$0xff]
      %v549 = vld [vmem:[%s1 + $0x500] sm:$0xf]
      %v550 = vld [vmem:[%s1 + $0x504] sm:$0xff]
      %v551 = vld [vmem:[%s1 + $0x50c] sm:$0xf]
      %v552 = vld [vmem:[%s1 + $0x510] sm:$0xff]
      %v553 = vld [vmem:[%s1 + $0x518] sm:$0xf]
      %v554 = vld [vmem:[%s1 + $0x51c] sm:$0xff]
      %v555 = vld [vmem:[%s1 + $0x524] sm:$0xf]
      %v556 = vld [vmem:[%s1 + $0x528] sm:$0xff]
      %v557 = vld [vmem:[%s1 + $0x530] sm:$0xf]
      %v558 = vld [vmem:[%s1 + $0x534] sm:$0xff]
      %v559 = vld [vmem:[%s1 + $0x53c] sm:$0xf]
      %v560 = vld [vmem:[%s1 + $0x540] sm:$0xff]
      %v561 = vld [vmem:[%s1 + $0x548] sm:$0xf]
      %v562 = vld [vmem:[%s1 + $0x54c] sm:$0xff]
      %v563 = vld [vmem:[%s1 + $0x554] sm:$0xf]
      %v564 = vld [vmem:[%s1 + $0x558] sm:$0xff]
      %v565 = vld [vmem:[%s1 + $0x560] sm:$0xf]
      %v566 = vld [vmem:[%s1 + $0x564] sm:$0xff]
      %v567 = vld [vmem:[%s1 + $0x56c] sm:$0xf]
      %v568 = vld [vmem:[%s1 + $0x570] sm:$0xff]
      %v569 = vld [vmem:[%s1 + $0x578] sm:$0xf]
      %v570 = vld [vmem:[%s1 + $0x57c] sm:$0xff]
      %v571 = vld [vmem:[%s1 + $0x584] sm:$0xf]
      %v572 = vld [vmem:[%s1 + $0x588] sm:$0xff]
      %v573 = vld [vmem:[%s1 + $0x590] sm:$0xf]
      %v574 = vld [vmem:[%s1 + $0x594] sm:$0xff]
      %v575 = vld [vmem:[%s1 + $0x59c] sm:$0xf]
      %v576 = vld [vmem:[%s1 + $0x5a0] sm:$0xff]
      %v577 = vld [vmem:[%s1 + $0x5a8] sm:$0xf]
      %v578 = vld [vmem:[%s1 + $0x5ac] sm:$0xff]
      %v579 = vld [vmem:[%s1 + $0x5b4] sm:$0xf]
      %v580 = vld [vmem:[%s1 + $0x5b8] sm:$0xff]
      %v581 = vld [vmem:[%s1 + $0x5c0] sm:$0xf]
      %v582 = vld [vmem:[%s1 + $0x5c4] sm:$0xff]
      %v583 = vld [vmem:[%s1 + $0x5cc] sm:$0xf]
      %v584 = vld [vmem:[%s1 + $0x5d0] sm:$0xff]
      %v585 = vld [vmem:[%s1 + $0x5d8] sm:$0xf]
      %v586 = vld [vmem:[%s1 + $0x5dc] sm:$0xff]
      %v587 = vld [vmem:[%s1 + $0x5e4] sm:$0xf]
      %v588 = vld [vmem:[%s1 + $0x5e8] sm:$0xff]
      %v589 = vld [vmem:[%s1 + $0x5f0] sm:$0xf]
      %v590 = vld [vmem:[%s1 + $0x5f4] sm:$0xff]
      %v591 = vld [vmem:[%s1 + $0x5fc] sm:$0xf]
      %v592 = vld [vmem:[%s1 + $0x600] sm:$0xff]
      %v593 = vld [vmem:[%s1 + $0x608] sm:$0xf]
      %v594 = vld [vmem:[%s1 + $0x60c] sm:$0xff]
      %v595 = vld [vmem:[%s1 + $0x614] sm:$0xf]
      %v596 = vld [vmem:[%s1 + $0x618] sm:$0xff]
      %v597 = vld [vmem:[%s1 + $0x620] sm:$0xf]
      %v598 = vld [vmem:[%s1 + $0x624] sm:$0xff]
      %v599 = vld [vmem:[%s1 + $0x62c] sm:$0xf]
      %v600 = vld [vmem:[%s1 + $0x630] sm:$0xff]
      %v601 = vld [vmem:[%s1 + $0x638] sm:$0xf]
      %v602 = vld [vmem:[%s1 + $0x63c] sm:$0xff]
      %v603 = vld [vmem:[%s1 + $0x644] sm:$0xf]
      %v604 = vld [vmem:[%s1 + $0x648] sm:$0xff]
      %v605 = vld [vmem:[%s1 + $0x650] sm:$0xf]
      %v606 = vld [vmem:[%s1 + $0x654] sm:$0xff]
      %v607 = vld [vmem:[%s1 + $0x65c] sm:$0xf]
      %v608 = vld [vmem:[%s1 + $0x660] sm:$0xff]
      %v609 = vld [vmem:[%s1 + $0x668] sm:$0xf]
      %v610 = vld [vmem:[%s1 + $0x66c] sm:$0xff]
      %v611 = vld [vmem:[%s1 + $0x674] sm:$0xf]
      %v612 = vld [vmem:[%s1 + $0x678] sm:$0xff]
      %v613 = vld [vmem:[%s1 + $0x680] sm:$0xf]
      %v614 = vld [vmem:[%s1 + $0x684] sm:$0xff]
      %v615 = vld [vmem:[%s1 + $0x68c] sm:$0xf]
      %v616 = vld [vmem:[%s1 + $0x690] sm:$0xff]
      %v617 = vld [vmem:[%s1 + $0x698] sm:$0xf]
      %v618 = vld [vmem:[%s1 + $0x69c] sm:$0xff]
      %v619 = vld [vmem:[%s1 + $0x6a4] sm:$0xf]
      %v620 = vld [vmem:[%s1 + $0x6a8] sm:$0xff]
      %v621 = vld [vmem:[%s1 + $0x6b0] sm:$0xf]
      %v622 = vld [vmem:[%s1 + $0x6b4] sm:$0xff]
      %v623 = vld [vmem:[%s1 + $0x6bc] sm:$0xf]
      %v624 = vld [vmem:[%s1 + $0x6c0] sm:$0xff]
      %v625 = vld [vmem:[%s1 + $0x6c8] sm:$0xf]
      %v626 = vld [vmem:[%s1 + $0x6cc] sm:$0xff]
      %v627 = vld [vmem:[%s1 + $0x6d4] sm:$0xf]
      %v628 = vld [vmem:[%s1 + $0x6d8] sm:$0xff]
      %v629 = vld [vmem:[%s1 + $0x6e0] sm:$0xf]
      %v630 = vld [vmem:[%s1 + $0x6e4] sm:$0xff]
      %v631 = vld [vmem:[%s1 + $0x6ec] sm:$0xf]
      %v632 = vld [vmem:[%s1 + $0x6f0] sm:$0xff]
      %v633 = vld [vmem:[%s1 + $0x6f8] sm:$0xf]
      %v634 = vld [vmem:[%s1 + $0x6fc] sm:$0xff]
      %v635 = vld [vmem:[%s1 + $0x704] sm:$0xf]
      %v636 = vld [vmem:[%s1 + $0x708] sm:$0xff]
      %v637 = vld [vmem:[%s1 + $0x710] sm:$0xf]
      %v638 = vld [vmem:[%s1 + $0x714] sm:$0xff]
      %v639 = vld [vmem:[%s1 + $0x71c] sm:$0xf]
      %v640 = vld [vmem:[%s1 + $0x720] sm:$0xff]
      %v641 = vld [vmem:[%s1 + $0x728] sm:$0xf]
      %v642 = vld [vmem:[%s1 + $0x72c] sm:$0xff]
      %v643 = vld [vmem:[%s1 + $0x734] sm:$0xf]
      %v644 = vld [vmem:[%s1 + $0x738] sm:$0xff]
      %v645 = vld [vmem:[%s1 + $0x740] sm:$0xf]
      %v646 = vld [vmem:[%s1 + $0x744] sm:$0xff]
      %v647 = vld [vmem:[%s1 + $0x74c] sm:$0xf]
      %v648 = vld [vmem:[%s1 + $0x750] sm:$0xff]
      %v649 = vld [vmem:[%s1 + $0x758] sm:$0xf]
      %v650 = vld [vmem:[%s1 + $0x75c] sm:$0xff]
      %v651 = vld [vmem:[%s1 + $0x764] sm:$0xf]
      %v652 = vld [vmem:[%s1 + $0x768] sm:$0xff]
      %v653 = vld [vmem:[%s1 + $0x770] sm:$0xf]
      %v654 = vld [vmem:[%s1 + $0x774] sm:$0xff]
      %v655 = vld [vmem:[%s1 + $0x77c] sm:$0xf]
      %v656 = vld [vmem:[%s1 + $0x780] sm:$0xff]
      %v657 = vld [vmem:[%s1 + $0x788] sm:$0xf]
      %v658 = vld [vmem:[%s1 + $0x78c] sm:$0xff]
      %v659 = vld [vmem:[%s1 + $0x794] sm:$0xf]
      %v660 = vld [vmem:[%s1 + $0x798] sm:$0xff]
      %v661 = vld [vmem:[%s1 + $0x7a0] sm:$0xf]
      %v662 = vld [vmem:[%s1 + $0x7a4] sm:$0xff]
      %v663 = vld [vmem:[%s1 + $0x7ac] sm:$0xf]
      %v664 = vld [vmem:[%s1 + $0x7b0] sm:$0xff]
      %v665 = vld [vmem:[%s1 + $0x7b8] sm:$0xf]
      %v666 = vld [vmem:[%s1 + $0x7bc] sm:$0xff]
      %v667 = vld [vmem:[%s1 + $0x7c4] sm:$0xf]
      %v668 = vld [vmem:[%s1 + $0x7c8] sm:$0xff]
      %v669 = vld [vmem:[%s1 + $0x7d0] sm:$0xf]
      %v670 = vld [vmem:[%s1 + $0x7d4] sm:$0xff]
      %v671 = vld [vmem:[%s1 + $0x7dc] sm:$0xf]
      %v672 = vld [vmem:[%s1 + $0x7e0] sm:$0xff]
      %v673 = vld [vmem:[%s1 + $0x7e8] sm:$0xf]
      %v674 = vld [vmem:[%s1 + $0x7ec] sm:$0xff]
      %v675 = vld [vmem:[%s1 + $0x7f4] sm:$0xf]
      %v676 = vld [vmem:[%s1 + $0x7f8] sm:$0xff]
      %v677 = vld [vmem:[%s1 + $0x800] sm:$0xf]
      %v678 = vld [vmem:[%s1 + $0x804] sm:$0xff]
      %v679 = vld [vmem:[%s1 + $0x80c] sm:$0xf]
      %v680 = vld [vmem:[%s1 + $0x810] sm:$0xff]
      %v681 = vld [vmem:[%s1 + $0x818] sm:$0xf]
      %v682 = vld [vmem:[%s1 + $0x81c] sm:$0xff]
      %v683 = vld [vmem:[%s1 + $0x824] sm:$0xf]
      %v684 = vld [vmem:[%s1 + $0x828] sm:$0xff]
      %v685 = vld [vmem:[%s1 + $0x830] sm:$0xf]
      %v686 = vld [vmem:[%s1 + $0x834] sm:$0xff]
      %v687 = vld [vmem:[%s1 + $0x83c] sm:$0xf]
      %v688 = vld [vmem:[%s1 + $0x840] sm:$0xff]
      %v689 = vld [vmem:[%s1 + $0x848] sm:$0xf]
      %v690 = vld [vmem:[%s1 + $0x84c] sm:$0xff]
      %v691 = vld [vmem:[%s1 + $0x854] sm:$0xf]
      %v692 = vld [vmem:[%s1 + $0x858] sm:$0xff]
      %v693 = vld [vmem:[%s1 + $0x860] sm:$0xf]
      %v694 = vld [vmem:[%s1 + $0x864] sm:$0xff]
      %v695 = vld [vmem:[%s1 + $0x86c] sm:$0xf]
      %v696 = vld [vmem:[%s1 + $0x870] sm:$0xff]
      %v697 = vld [vmem:[%s1 + $0x878] sm:$0xf]
      %v698 = vld [vmem:[%s1 + $0x87c] sm:$0xff]
      %v699 = vld [vmem:[%s1 + $0x884] sm:$0xf]
      %v700 = vld [vmem:[%s1 + $0x888] sm:$0xff]
      %v701 = vld [vmem:[%s1 + $0x890] sm:$0xf]
      %v702 = vld [vmem:[%s1 + $0x894] sm:$0xff]
      %v703 = vld [vmem:[%s1 + $0x89c] sm:$0xf]
      %v704 = vld [vmem:[%s1 + $0x8a0] sm:$0xff]
      %v705 = vld [vmem:[%s1 + $0x8a8] sm:$0xf]
      %v706 = vld [vmem:[%s1 + $0x8ac] sm:$0xff]
      %v707 = vld [vmem:[%s1 + $0x8b4] sm:$0xf]
      %v708 = vld [vmem:[%s1 + $0x8b8] sm:$0xff]
      %v709 = vld [vmem:[%s1 + $0x8c0] sm:$0xf]
      %v710 = vld [vmem:[%s1 + $0x8c4] sm:$0xff]
      %v711 = vld [vmem:[%s1 + $0x8cc] sm:$0xf]
      %v712 = vld [vmem:[%s1 + $0x8d0] sm:$0xff]
      %v713 = vld [vmem:[%s1 + $0x8d8] sm:$0xf]
      %v714 = vld [vmem:[%s1 + $0x8dc] sm:$0xff]
      %v715 = vld [vmem:[%s1 + $0x8e4] sm:$0xf]
      %v716 = vld [vmem:[%s1 + $0x8e8] sm:$0xff]
      %v717 = vld [vmem:[%s1 + $0x8f0] sm:$0xf]
      %v718 = vld [vmem:[%s1 + $0x8f4] sm:$0xff]
      %v719 = vld [vmem:[%s1 + $0x8fc] sm:$0xf]
      %v720 = vld [vmem:[%s1 + $0x900] sm:$0xff]
      %v721 = vld [vmem:[%s1 + $0x908] sm:$0xf]
      %v722 = vld [vmem:[%s1 + $0x90c] sm:$0xff]
      %v723 = vld [vmem:[%s1 + $0x914] sm:$0xf]
      %v724 = vld [vmem:[%s1 + $0x918] sm:$0xff]
      %v725 = vld [vmem:[%s1 + $0x920] sm:$0xf]
      %v726 = vld [vmem:[%s1 + $0x924] sm:$0xff]
      %v727 = vld [vmem:[%s1 + $0x92c] sm:$0xf]
      %v728 = vld [vmem:[%s1 + $0x930] sm:$0xff]
      %v729 = vld [vmem:[%s1 + $0x938] sm:$0xf]
      %v730 = vld [vmem:[%s1 + $0x93c] sm:$0xff]
      %v731 = vld [vmem:[%s1 + $0x944] sm:$0xf]
      %v732 = vld [vmem:[%s1 + $0x948] sm:$0xff]
      %v733 = vld [vmem:[%s1 + $0x950] sm:$0xf]
      %v734 = vld [vmem:[%s1 + $0x954] sm:$0xff]
      %v735 = vld [vmem:[%s1 + $0x95c] sm:$0xf]
      %v736 = vld [vmem:[%s1 + $0x960] sm:$0xff]
      %v737 = vld [vmem:[%s1 + $0x968] sm:$0xf]
      %v738 = vld [vmem:[%s1 + $0x96c] sm:$0xff]
      %v739 = vld [vmem:[%s1 + $0x974] sm:$0xf]
      %v740 = vld [vmem:[%s1 + $0x978] sm:$0xff]
      %v741 = vld [vmem:[%s1 + $0x980] sm:$0xf]
      %v742 = vld [vmem:[%s1 + $0x984] sm:$0xff]
      %v743 = vld [vmem:[%s1 + $0x98c] sm:$0xf]
      %v744 = vld [vmem:[%s1 + $0x990] sm:$0xff]
      %v745 = vld [vmem:[%s1 + $0x998] sm:$0xf]
      %v746 = vld [vmem:[%s1 + $0x99c] sm:$0xff]
      %v747 = vld [vmem:[%s1 + $0x9a4] sm:$0xf]
      %v748 = vld [vmem:[%s1 + $0x9a8] sm:$0xff]
      %v749 = vld [vmem:[%s1 + $0x9b0] sm:$0xf]
      %v750 = vld [vmem:[%s1 + $0x9b4] sm:$0xff]
      %v751 = vld [vmem:[%s1 + $0x9bc] sm:$0xf]
      %v752 = vld [vmem:[%s1 + $0x9c0] sm:$0xff]
      %v753 = vld [vmem:[%s1 + $0x9c8] sm:$0xf]
      %v754 = vld [vmem:[%s1 + $0x9cc] sm:$0xff]
      %v755 = vld [vmem:[%s1 + $0x9d4] sm:$0xf]
      %v756 = vld [vmem:[%s1 + $0x9d8] sm:$0xff]
      %v757 = vld [vmem:[%s1 + $0x9e0] sm:$0xf]
      %v758 = vld [vmem:[%s1 + $0x9e4] sm:$0xff]
      %v759 = vld [vmem:[%s1 + $0x9ec] sm:$0xf]
      %v760 = vld [vmem:[%s1 + $0x9f0] sm:$0xff]
      %v761 = vld [vmem:[%s1 + $0x9f8] sm:$0xf]
      %v762 = vld [vmem:[%s1 + $0x9fc] sm:$0xff]
      %v763 = vld [vmem:[%s1 + $0xa04] sm:$0xf]
      %v764 = vld [vmem:[%s1 + $0xa08] sm:$0xff]
      %v765 = vld [vmem:[%s1 + $0xa10] sm:$0xf]
      %v766 = vld [vmem:[%s1 + $0xa14] sm:$0xff]
      %v767 = vld [vmem:[%s1 + $0xa1c] sm:$0xf]
      %v768 = vld [vmem:[%s1 + $0xa20] sm:$0xff]
      %v769 = vld [vmem:[%s1 + $0xa28] sm:$0xf]
      %v770 = vld [vmem:[%s1 + $0xa2c] sm:$0xff]
      %v771 = vld [vmem:[%s1 + $0xa34] sm:$0xf]
      %v772 = vld [vmem:[%s1 + $0xa38] sm:$0xff]
      %v773 = vld [vmem:[%s1 + $0xa40] sm:$0xf]
      %v774 = vld [vmem:[%s1 + $0xa44] sm:$0xff]
      %v775 = vld [vmem:[%s1 + $0xa4c] sm:$0xf]
      %v776 = vld [vmem:[%s1 + $0xa50] sm:$0xff]
      %v777 = vld [vmem:[%s1 + $0xa58] sm:$0xf]
      %v778 = vld [vmem:[%s1 + $0xa5c] sm:$0xff]
      %v779 = vld [vmem:[%s1 + $0xa64] sm:$0xf]
      %v780 = vld [vmem:[%s1 + $0xa68] sm:$0xff]
      %v781 = vld [vmem:[%s1 + $0xa70] sm:$0xf]
      %v782 = vld [vmem:[%s1 + $0xa74] sm:$0xff]
      %v783 = vld [vmem:[%s1 + $0xa7c] sm:$0xf]
      %v784 = vld [vmem:[%s1 + $0xa80] sm:$0xff]
      %v785 = vld [vmem:[%s1 + $0xa88] sm:$0xf]
      %v786 = vld [vmem:[%s1 + $0xa8c] sm:$0xff]
      %v787 = vld [vmem:[%s1 + $0xa94] sm:$0xf]
      %v788 = vld [vmem:[%s1 + $0xa98] sm:$0xff]
      %v789 = vld [vmem:[%s1 + $0xaa0] sm:$0xf]
      %v790 = vld [vmem:[%s1 + $0xaa4] sm:$0xff]
      %v791 = vld [vmem:[%s1 + $0xaac] sm:$0xf]
      %v792 = vld [vmem:[%s1 + $0xab0] sm:$0xff]
      %v793 = vld [vmem:[%s1 + $0xab8] sm:$0xf]
      %v794 = vld [vmem:[%s1 + $0xabc] sm:$0xff]
      %v795 = vld [vmem:[%s1 + $0xac4] sm:$0xf]
      %v796 = vld [vmem:[%s1 + $0xac8] sm:$0xff]
      %v797 = vld [vmem:[%s1 + $0xad0] sm:$0xf]
      %v798 = vld [vmem:[%s1 + $0xad4] sm:$0xff]
      %v799 = vld [vmem:[%s1 + $0xadc] sm:$0xf]
      %v800 = vld [vmem:[%s1 + $0xae0] sm:$0xff]
      %v801 = vld [vmem:[%s1 + $0xae8] sm:$0xf]
      %v802 = vld [vmem:[%s1 + $0xaec] sm:$0xff]
      %v803 = vld [vmem:[%s1 + $0xaf4] sm:$0xf]
      %v804 = vld [vmem:[%s1 + $0xaf8] sm:$0xff]
      %v805 = vld [vmem:[%s1 + $0xb00] sm:$0xf]
      %v806 = vld [vmem:[%s1 + $0xb04] sm:$0xff]
      %v807 = vld [vmem:[%s1 + $0xb0c] sm:$0xf]
      %v808 = vld [vmem:[%s1 + $0xb10] sm:$0xff]
      %v809 = vld [vmem:[%s1 + $0xb18] sm:$0xf]
      %v810 = vld [vmem:[%s1 + $0xb1c] sm:$0xff]
      %v811 = vld [vmem:[%s1 + $0xb24] sm:$0xf]
      %v812 = vld [vmem:[%s1 + $0xb28] sm:$0xff]
      %v813 = vld [vmem:[%s1 + $0xb30] sm:$0xf]
      %v814 = vld [vmem:[%s1 + $0xb34] sm:$0xff]
      %v815 = vld [vmem:[%s1 + $0xb3c] sm:$0xf]
      %v816 = vld [vmem:[%s1 + $0xb40] sm:$0xff]
      %v817 = vld [vmem:[%s1 + $0xb48] sm:$0xf]
      %v818 = vld [vmem:[%s1 + $0xb4c] sm:$0xff]
      %v819 = vld [vmem:[%s1 + $0xb54] sm:$0xf]
      %v820 = vld [vmem:[%s1 + $0xb58] sm:$0xff]
      %v821 = vld [vmem:[%s1 + $0xb60] sm:$0xf]
      %v822 = vld [vmem:[%s1 + $0xb64] sm:$0xff]
      %v823 = vld [vmem:[%s1 + $0xb6c] sm:$0xf]
      %v824 = vld [vmem:[%s1 + $0xb70] sm:$0xff]
      %v825 = vld [vmem:[%s1 + $0xb78] sm:$0xf]
      %v826 = vld [vmem:[%s1 + $0xb7c] sm:$0xff]
      %v827 = vld [vmem:[%s1 + $0xb84] sm:$0xf]
      %v828 = vld [vmem:[%s1 + $0xb88] sm:$0xff]
      %v829 = vld [vmem:[%s1 + $0xb90] sm:$0xf]
      %v830 = vld [vmem:[%s1 + $0xb94] sm:$0xff]
      %v831 = vld [vmem:[%s1 + $0xb9c] sm:$0xf]
      %v832 = vld [vmem:[%s1 + $0xba0] sm:$0xff]
      %v833 = vld [vmem:[%s1 + $0xba8] sm:$0xf]
      %v834 = vld [vmem:[%s1 + $0xbac] sm:$0xff]
      %v835 = vld [vmem:[%s1 + $0xbb4] sm:$0xf]
      %v836 = vld [vmem:[%s1 + $0xbb8] sm:$0xff]
      %v837 = vld [vmem:[%s1 + $0xbc0] sm:$0xf]
      %v838 = vld [vmem:[%s1 + $0xbc4] sm:$0xff]
      %v839 = vld [vmem:[%s1 + $0xbcc] sm:$0xf]
      %v840 = vld [vmem:[%s1 + $0xbd0] sm:$0xff]
      %v841 = vld [vmem:[%s1 + $0xbd8] sm:$0xf]
      %v842 = vld [vmem:[%s1 + $0xbdc] sm:$0xff]
      %v843 = vld [vmem:[%s1 + $0xbe4] sm:$0xf]
      %v844 = vld [vmem:[%s1 + $0xbe8] sm:$0xff]
      %v845 = vld [vmem:[%s1 + $0xbf0] sm:$0xf]
      %v846 = vld [vmem:[%s1 + $0xbf4] sm:$0xff]
      %v847 = vld [vmem:[%s1 + $0xbfc] sm:$0xf]
      %v848 = vld [vmem:[%s1 + $0xc00] sm:$0xff]
      %v849 = vld [vmem:[%s1 + $0xc08] sm:$0xf]
      %v850 = vld [vmem:[%s1 + $0xc0c] sm:$0xff]
      %v851 = vld [vmem:[%s1 + $0xc14] sm:$0xf]
      %v852 = vld [vmem:[%s1 + $0xc18] sm:$0xff]
      %v853 = vld [vmem:[%s1 + $0xc20] sm:$0xf]
      %v854 = vld [vmem:[%s1 + $0xc24] sm:$0xff]
      %v855 = vld [vmem:[%s1 + $0xc2c] sm:$0xf]
      %v856 = vld [vmem:[%s1 + $0xc30] sm:$0xff]
      %v857 = vld [vmem:[%s1 + $0xc38] sm:$0xf]
      %v858 = vld [vmem:[%s1 + $0xc3c] sm:$0xff]
      %v859 = vld [vmem:[%s1 + $0xc44] sm:$0xf]
      %v860 = vld [vmem:[%s1 + $0xc48] sm:$0xff]
      %v861 = vld [vmem:[%s1 + $0xc50] sm:$0xf]
      %v862 = vld [vmem:[%s1 + $0xc54] sm:$0xff]
      %v863 = vld [vmem:[%s1 + $0xc5c] sm:$0xf]
      %v864 = vld [vmem:[%s1 + $0xc60] sm:$0xff]
      %v865 = vld [vmem:[%s1 + $0xc68] sm:$0xf]
      %v866 = vld [vmem:[%s1 + $0xc6c] sm:$0xff]
      %v867 = vld [vmem:[%s1 + $0xc74] sm:$0xf]
      %v868 = vld [vmem:[%s1 + $0xc78] sm:$0xff]
      %v869 = vld [vmem:[%s1 + $0xc80] sm:$0xf]
      %v870 = vld [vmem:[%s1 + $0xc84] sm:$0xff]
      %v871 = vld [vmem:[%s1 + $0xc8c] sm:$0xf]
      %v872 = vld [vmem:[%s1 + $0xc90] sm:$0xff]
      %v873 = vld [vmem:[%s1 + $0xc98] sm:$0xf]
      %v874 = vld [vmem:[%s1 + $0xc9c] sm:$0xff]
      %v875 = vld [vmem:[%s1 + $0xca4] sm:$0xf]
      %v876 = vld [vmem:[%s1 + $0xca8] sm:$0xff]
      %v877 = vld [vmem:[%s1 + $0xcb0] sm:$0xf]
      %v878 = vld [vmem:[%s1 + $0xcb4] sm:$0xff]
      %v879 = vld [vmem:[%s1 + $0xcbc] sm:$0xf]
      %v880 = vld [vmem:[%s1 + $0xcc0] sm:$0xff]
      %v881 = vld [vmem:[%s1 + $0xcc8] sm:$0xf]
      %v882 = vld [vmem:[%s1 + $0xccc] sm:$0xff]
      %v883 = vld [vmem:[%s1 + $0xcd4] sm:$0xf]
      %v884 = vld [vmem:[%s1 + $0xcd8] sm:$0xff]
      %v885 = vld [vmem:[%s1 + $0xce0] sm:$0xf]
      %v886 = vld [vmem:[%s1 + $0xce4] sm:$0xff]
      %v887 = vld [vmem:[%s1 + $0xcec] sm:$0xf]
      %v888 = vld [vmem:[%s1 + $0xcf0] sm:$0xff]
      %v889 = vld [vmem:[%s1 + $0xcf8] sm:$0xf]
      %v890 = vld [vmem:[%s1 + $0xcfc] sm:$0xff]
      %v891 = vld [vmem:[%s1 + $0xd04] sm:$0xf]
      %v892 = vld [vmem:[%s1 + $0xd08] sm:$0xff]
      %v893 = vld [vmem:[%s1 + $0xd10] sm:$0xf]
      %v894 = vld [vmem:[%s1 + $0xd14] sm:$0xff]
      %v895 = vld [vmem:[%s1 + $0xd1c] sm:$0xf]
      %v896 = vld [vmem:[%s1 + $0xd20] sm:$0xff]
      %v897 = vld [vmem:[%s1 + $0xd28] sm:$0xf]
      %v898 = vld [vmem:[%s1 + $0xd2c] sm:$0xff]
      %v899 = vld [vmem:[%s1 + $0xd34] sm:$0xf]
      %v900 = vld [vmem:[%s1 + $0xd38] sm:$0xff]
      %v901 = vld [vmem:[%s1 + $0xd40] sm:$0xf]
      %v902 = vld [vmem:[%s1 + $0xd44] sm:$0xff]
      %v903 = vld [vmem:[%s1 + $0xd4c] sm:$0xf]
      %v904 = vld [vmem:[%s1 + $0xd50] sm:$0xff]
      %v905 = vld [vmem:[%s1 + $0xd58] sm:$0xf]
      %v906 = vld [vmem:[%s1 + $0xd5c] sm:$0xff]
      %v907 = vld [vmem:[%s1 + $0xd64] sm:$0xf]
      %v908 = vld [vmem:[%s1 + $0xd68] sm:$0xff]
      %v909 = vld [vmem:[%s1 + $0xd70] sm:$0xf]
      %v910 = vld [vmem:[%s1 + $0xd74] sm:$0xff]
      %v911 = vld [vmem:[%s1 + $0xd7c] sm:$0xf]
      %v912 = vld [vmem:[%s1 + $0xd80] sm:$0xff]
      %v913 = vld [vmem:[%s1 + $0xd88] sm:$0xf]
      %v914 = vld [vmem:[%s1 + $0xd8c] sm:$0xff]
      %v915 = vld [vmem:[%s1 + $0xd94] sm:$0xf]
      %v916 = vld [vmem:[%s1 + $0xd98] sm:$0xff]
      %v917 = vld [vmem:[%s1 + $0xda0] sm:$0xf]
      %v918 = vld [vmem:[%s1 + $0xda4] sm:$0xff]
      %v919 = vld [vmem:[%s1 + $0xdac] sm:$0xf]
      %v920 = vld [vmem:[%s1 + $0xdb0] sm:$0xff]
      %v921 = vld [vmem:[%s1 + $0xdb8] sm:$0xf]
      %v922 = vld [vmem:[%s1 + $0xdbc] sm:$0xff]
      %v923 = vld [vmem:[%s1 + $0xdc4] sm:$0xf]
      %v924 = vld [vmem:[%s1 + $0xdc8] sm:$0xff]
      %v925 = vld [vmem:[%s1 + $0xdd0] sm:$0xf]
      %v926 = vld [vmem:[%s1 + $0xdd4] sm:$0xff]
      %v927 = vld [vmem:[%s1 + $0xddc] sm:$0xf]
      %v928 = vld [vmem:[%s1 + $0xde0] sm:$0xff]
      %v929 = vld [vmem:[%s1 + $0xde8] sm:$0xf]
      %v930 = vld [vmem:[%s1 + $0xdec] sm:$0xff]
      %v931 = vld [vmem:[%s1 + $0xdf4] sm:$0xf]
      %v932 = vld [vmem:[%s1 + $0xdf8] sm:$0xff]
      %v933 = vld [vmem:[%s1 + $0xe00] sm:$0xf]
      %v934 = vld [vmem:[%s1 + $0xe04] sm:$0xff]
      %v935 = vld [vmem:[%s1 + $0xe0c] sm:$0xf]
      %v936 = vld [vmem:[%s1 + $0xe10] sm:$0xff]
      %v937 = vld [vmem:[%s1 + $0xe18] sm:$0xf]
      %v938 = vld [vmem:[%s1 + $0xe1c] sm:$0xff]
      %v939 = vld [vmem:[%s1 + $0xe24] sm:$0xf]
      %v940 = vld [vmem:[%s1 + $0xe28] sm:$0xff]
      %v941 = vld [vmem:[%s1 + $0xe30] sm:$0xf]
      %v942 = vld [vmem:[%s1 + $0xe34] sm:$0xff]
      %v943 = vld [vmem:[%s1 + $0xe3c] sm:$0xf]
      %v944 = vld [vmem:[%s1 + $0xe40] sm:$0xff]
      %v945 = vld [vmem:[%s1 + $0xe48] sm:$0xf]
      %v946 = vld [vmem:[%s1 + $0xe4c] sm:$0xff]
      %v947 = vld [vmem:[%s1 + $0xe54] sm:$0xf]
      %v948 = vld [vmem:[%s1 + $0xe58] sm:$0xff]
      %v949 = vld [vmem:[%s1 + $0xe60] sm:$0xf]
      %v950 = vld [vmem:[%s1 + $0xe64] sm:$0xff]
      %v951 = vld [vmem:[%s1 + $0xe6c] sm:$0xf]
      %v952 = vld [vmem:[%s1 + $0xe70] sm:$0xff]
      %v953 = vld [vmem:[%s1 + $0xe78] sm:$0xf]
      %v954 = vld [vmem:[%s1 + $0xe7c] sm:$0xff]
      %v955 = vld [vmem:[%s1 + $0xe84] sm:$0xf]
      %v956 = vld [vmem:[%s1 + $0xe88] sm:$0xff]
      %v957 = vld [vmem:[%s1 + $0xe90] sm:$0xf]
      %v958 = vld [vmem:[%s1 + $0xe94] sm:$0xff]
      %v959 = vld [vmem:[%s1 + $0xe9c] sm:$0xf]
      %v960 = vld [vmem:[%s1 + $0xea0] sm:$0xff]
      %v961 = vld [vmem:[%s1 + $0xea8] sm:$0xf]
      %v962 = vld [vmem:[%s1 + $0xeac] sm:$0xff]
      %v963 = vld [vmem:[%s1 + $0xeb4] sm:$0xf]
      %v964 = vld [vmem:[%s1 + $0xeb8] sm:$0xff]
      %v965 = vld [vmem:[%s1 + $0xec0] sm:$0xf]
      %v966 = vld [vmem:[%s1 + $0xec4] sm:$0xff]
      %v967 = vld [vmem:[%s1 + $0xecc] sm:$0xf]
      %v968 = vld [vmem:[%s1 + $0xed0] sm:$0xff]
      %v969 = vld [vmem:[%s1 + $0xed8] sm:$0xf]
      %v970 = vld [vmem:[%s1 + $0xedc] sm:$0xff]
      %v971 = vld [vmem:[%s1 + $0xee4] sm:$0xf]
      %v972 = vld [vmem:[%s1 + $0xee8] sm:$0xff]
      %v973 = vld [vmem:[%s1 + $0xef0] sm:$0xf]
      %v974 = vld [vmem:[%s1 + $0xef4] sm:$0xff]
      %v975 = vld [vmem:[%s1 + $0xefc] sm:$0xf]
      %v976 = vld [vmem:[%s2] sm:$0x7]
      %v978 = vlaneseq
      %v979 = vshrl.u32 %v978, 7
      %v980 = vsub.s32 0, %v979
      %v981 = vrot.slane %v976, %v980
      %v982 = vlaneseq
      %v983 = vshrl.u32 %v982, 7
      %v984 = vsub.s32 1, %v983
      %v985 = vrot.slane %v976, %v984
      %v986 = vlaneseq
      %v987 = vshrl.u32 %v986, 7
      %v988 = vsub.s32 2, %v987
      %v989 = vrot.slane %v976, %v988
      %v996 = vcombine.high %v333, %v333
      %v998 = vunpack.c.l.s4 1966171168
      %v999 = vunpack.c.0.s8 %v998
      %v1000 = vlaneseq
      %v1001 = vshrl.u32 %v1000, 7
      %v1002 = vsub.s32 %v999, %v1001
      %v1003 = vrot.slane %v333, %v1002
      %v1005 = vunpack.c.l.s4 1966171168
      %v1006 = vunpack.c.0.s8 %v1005
      %v1007 = vlaneseq
      %v1008 = vshrl.u32 %v1007, 7
      %v1009 = vsub.s32 %v1006, %v1008
      %v1010 = vrot.slane %v996, %v1009
      %v1011 = vcombine.high %v1003, %v1003
      %v1012 = vcombine.high %v1010, %v1010
      %v1014 = vunpack.c.l.s4 1966171168
      %v1015 = vunpack.c.0.s8 %v1014
      %v1016 = vlaneseq
      %v1017 = vshrl.u32 %v1016, 7
      %v1018 = vsub.s32 %v1015, %v1017
      %v1019 = vrot.slane %v1003, %v1018
      %v1021 = vunpack.c.l.s4 1966171168
      %v1022 = vunpack.c.0.s8 %v1021
      %v1023 = vlaneseq
      %v1024 = vshrl.u32 %v1023, 7
      %v1025 = vsub.s32 %v1022, %v1024
      %v1026 = vrot.slane %v1010, %v1025
      %v1028 = vunpack.c.l.s4 1966171168
      %v1029 = vunpack.c.0.s8 %v1028
      %v1030 = vlaneseq
      %v1031 = vshrl.u32 %v1030, 7
      %v1032 = vsub.s32 %v1029, %v1031
      %v1033 = vrot.slane %v1011, %v1032
      %v1035 = vunpack.c.l.s4 1966171168
      %v1036 = vunpack.c.0.s8 %v1035
      %v1037 = vlaneseq
      %v1038 = vshrl.u32 %v1037, 7
      %v1039 = vsub.s32 %v1036, %v1038
      %v1040 = vrot.slane %v1012, %v1039
      %v1041 = vcombine.high %v1019, %v1019
      %v1042 = vcombine.high %v1026, %v1026
      %v1043 = vcombine.high %v1033, %v1033
      %v1044 = vcombine.high %v1040, %v1040
      %v1045 = vcombine.high %v334, %v334
      %v1047 = vunpack.c.l.s4 1966171168
      %v1048 = vunpack.c.0.s8 %v1047
      %v1049 = vlaneseq
      %v1050 = vshrl.u32 %v1049, 7
      %v1051 = vsub.s32 %v1048, %v1050
      %v1052 = vrot.slane %v334, %v1051
      %v1054 = vunpack.c.l.s4 1966171168
      %v1055 = vunpack.c.0.s8 %v1054
      %v1056 = vlaneseq
      %v1057 = vshrl.u32 %v1056, 7
      %v1058 = vsub.s32 %v1055, %v1057
      %v1059 = vrot.slane %v1045, %v1058
      %v1060 = vcombine.high %v1052, %v1052
      %v1061 = vcombine.high %v1059, %v1059
      %v1063 = vunpack.c.l.s4 1966171168
      %v1064 = vunpack.c.0.s8 %v1063
      %v1065 = vlaneseq
      %v1066 = vshrl.u32 %v1065, 7
      %v1067 = vsub.s32 %v1064, %v1066
      %v1068 = vrot.slane %v1052, %v1067
      %v1070 = vunpack.c.l.s4 1966171168
      %v1071 = vunpack.c.0.s8 %v1070
      %v1072 = vlaneseq
      %v1073 = vshrl.u32 %v1072, 7
      %v1074 = vsub.s32 %v1071, %v1073
      %v1075 = vrot.slane %v1059, %v1074
      %v1077 = vunpack.c.l.s4 1966171168
      %v1078 = vunpack.c.0.s8 %v1077
      %v1079 = vlaneseq
      %v1080 = vshrl.u32 %v1079, 7
      %v1081 = vsub.s32 %v1078, %v1080
      %v1082 = vrot.slane %v1060, %v1081
      %v1084 = vunpack.c.l.s4 1966171168
      %v1085 = vunpack.c.0.s8 %v1084
      %v1086 = vlaneseq
      %v1087 = vshrl.u32 %v1086, 7
      %v1088 = vsub.s32 %v1085, %v1087
      %v1089 = vrot.slane %v1061, %v1088
      %v1090 = vcombine.high %v1068, %v1068
      %v1091 = vcombine.high %v1075, %v1075
      %v1092 = vcombine.high %v1082, %v1082
      %v1093 = vcombine.high %v1089, %v1089
      %v1095 = vunpack.c.l.s4 1966171168
      %v1096 = vunpack.c.0.s8 %v1095
      %v1097 = vlaneseq
      %v1098 = vshrl.u32 %v1097, 7
      %v1099 = vsub.s32 %v1096, %v1098
      %v1100 = vrot.slane %v335, %v1099
      %v1101 = vcombine.high %v1100, %v1100
      %v1103 = vunpack.c.l.s4 1966171168
      %v1104 = vunpack.c.0.s8 %v1103
      %v1105 = vlaneseq
      %v1106 = vshrl.u32 %v1105, 7
      %v1107 = vsub.s32 %v1104, %v1106
      %v1108 = vrot.slane %v1100, %v1107
      %v1110 = vunpack.c.l.s4 1966171168
      %v1111 = vunpack.c.0.s8 %v1110
      %v1112 = vlaneseq
      %v1113 = vshrl.u32 %v1112, 7
      %v1114 = vsub.s32 %v1111, %v1113
      %v1115 = vrot.slane %v1101, %v1114
      %v1116 = vcombine.high %v1108, %v1108
      %v1117 = vcombine.high %v1115, %v1115
      %v1778 = vunpack.c.l.b16 %v336
      %v1779 = vunpack.c.h.b16 %v336
      %v1780 = vunpack.c.l.b16 %v337
      %v1781 = vunpack.c.l.b16 %v338
      %v1782 = vunpack.c.h.b16 %v338
      %v1783 = vunpack.c.l.b16 %v339
      %v1784 = vunpack.c.l.b16 %v340
      %v1785 = vunpack.c.h.b16 %v340
      %v1786 = vunpack.c.l.b16 %v341
      %v1787 = vunpack.c.l.b16 %v342
      %v1788 = vunpack.c.h.b16 %v342
      %v1789 = vunpack.c.l.b16 %v343
      %v1790 = vunpack.c.l.b16 %v344
      %v1791 = vunpack.c.h.b16 %v344
      %v1792 = vunpack.c.l.b16 %v345
      %v1793 = vunpack.c.l.b16 %v346
      %v1794 = vunpack.c.h.b16 %v346
      %v1795 = vunpack.c.l.b16 %v347
      %v1796 = vunpack.c.l.b16 %v348
      %v1797 = vunpack.c.h.b16 %v348
      %v1798 = vunpack.c.l.b16 %v349
      %v1799 = vunpack.c.l.b16 %v350
      %v1800 = vunpack.c.h.b16 %v350
      %v1801 = vunpack.c.l.b16 %v351
      %v1802 = vunpack.c.l.b16 %v352
      %v1803 = vunpack.c.h.b16 %v352
      %v1804 = vunpack.c.l.b16 %v353
      %v1805 = vunpack.c.l.b16 %v354
      %v1806 = vunpack.c.h.b16 %v354
      %v1807 = vunpack.c.l.b16 %v355
      %v1808 = vunpack.c.l.b16 %v356
      %v1809 = vunpack.c.h.b16 %v356
      %v1810 = vunpack.c.l.b16 %v357
      %v1811 = vunpack.c.l.b16 %v358
      %v1812 = vunpack.c.h.b16 %v358
      %v1813 = vunpack.c.l.b16 %v359
      %v1814 = vunpack.c.l.b16 %v360
      %v1815 = vunpack.c.h.b16 %v360
      %v1816 = vunpack.c.l.b16 %v361
      %v1817 = vunpack.c.l.b16 %v362
      %v1818 = vunpack.c.h.b16 %v362
      %v1819 = vunpack.c.l.b16 %v363
      %v1820 = vunpack.c.l.b16 %v364
      %v1821 = vunpack.c.h.b16 %v364
      %v1822 = vunpack.c.l.b16 %v365
      %v1823 = vunpack.c.l.b16 %v366
      %v1824 = vunpack.c.h.b16 %v366
      %v1825 = vunpack.c.l.b16 %v367
      %v1826 = vunpack.c.l.b16 %v368
      %v1827 = vunpack.c.h.b16 %v368
      %v1828 = vunpack.c.l.b16 %v369
      %v1829 = vunpack.c.l.b16 %v370
      %v1830 = vunpack.c.h.b16 %v370
      %v1831 = vunpack.c.l.b16 %v371
      %v1832 = vunpack.c.l.b16 %v372
      %v1833 = vunpack.c.h.b16 %v372
      %v1834 = vunpack.c.l.b16 %v373
      %v1835 = vunpack.c.l.b16 %v374
      %v1836 = vunpack.c.h.b16 %v374
      %v1837 = vunpack.c.l.b16 %v375
      %v1838 = vunpack.c.l.b16 %v376
      %v1839 = vunpack.c.h.b16 %v376
      %v1840 = vunpack.c.l.b16 %v377
      %v1841 = vunpack.c.l.b16 %v378
      %v1842 = vunpack.c.h.b16 %v378
      %v1843 = vunpack.c.l.b16 %v379
      %v1844 = vunpack.c.l.b16 %v380
      %v1845 = vunpack.c.h.b16 %v380
      %v1846 = vunpack.c.l.b16 %v381
      %v1847 = vunpack.c.l.b16 %v382
      %v1848 = vunpack.c.h.b16 %v382
      %v1849 = vunpack.c.l.b16 %v383
      %v1850 = vunpack.c.l.b16 %v384
      %v1851 = vunpack.c.h.b16 %v384
      %v1852 = vunpack.c.l.b16 %v385
      %v1853 = vunpack.c.l.b16 %v386
      %v1854 = vunpack.c.h.b16 %v386
      %v1855 = vunpack.c.l.b16 %v387
      %v1856 = vunpack.c.l.b16 %v388
      %v1857 = vunpack.c.h.b16 %v388
      %v1858 = vunpack.c.l.b16 %v389
      %v1859 = vunpack.c.l.b16 %v390
      %v1860 = vunpack.c.h.b16 %v390
      %v1861 = vunpack.c.l.b16 %v391
      %v1862 = vunpack.c.l.b16 %v392
      %v1863 = vunpack.c.h.b16 %v392
      %v1864 = vunpack.c.l.b16 %v393
      %v1865 = vunpack.c.l.b16 %v394
      %v1866 = vunpack.c.h.b16 %v394
      %v1867 = vunpack.c.l.b16 %v395
      %v1868 = vunpack.c.l.b16 %v396
      %v1869 = vunpack.c.h.b16 %v396
      %v1870 = vunpack.c.l.b16 %v397
      %v1871 = vunpack.c.l.b16 %v398
      %v1872 = vunpack.c.h.b16 %v398
      %v1873 = vunpack.c.l.b16 %v399
      %v1874 = vunpack.c.l.b16 %v400
      %v1875 = vunpack.c.h.b16 %v400
      %v1876 = vunpack.c.l.b16 %v401
      %v1877 = vunpack.c.l.b16 %v402
      %v1878 = vunpack.c.h.b16 %v402
      %v1879 = vunpack.c.l.b16 %v403
      %v1880 = vunpack.c.l.b16 %v404
      %v1881 = vunpack.c.h.b16 %v404
      %v1882 = vunpack.c.l.b16 %v405
      %v1883 = vunpack.c.l.b16 %v406
      %v1884 = vunpack.c.h.b16 %v406
      %v1885 = vunpack.c.l.b16 %v407
      %v1886 = vunpack.c.l.b16 %v408
      %v1887 = vunpack.c.h.b16 %v408
      %v1888 = vunpack.c.l.b16 %v409
      %v1889 = vunpack.c.l.b16 %v410
      %v1890 = vunpack.c.h.b16 %v410
      %v1891 = vunpack.c.l.b16 %v411
      %v1892 = vunpack.c.l.b16 %v412
      %v1893 = vunpack.c.h.b16 %v412
      %v1894 = vunpack.c.l.b16 %v413
      %v1895 = vunpack.c.l.b16 %v414
      %v1896 = vunpack.c.h.b16 %v414
      %v1897 = vunpack.c.l.b16 %v415
      %v1898 = vunpack.c.l.b16 %v416
      %v1899 = vunpack.c.h.b16 %v416
      %v1900 = vunpack.c.l.b16 %v417
      %v1901 = vunpack.c.l.b16 %v418
      %v1902 = vunpack.c.h.b16 %v418
      %v1903 = vunpack.c.l.b16 %v419
      %v1904 = vunpack.c.l.b16 %v420
      %v1905 = vunpack.c.h.b16 %v420
      %v1906 = vunpack.c.l.b16 %v421
      %v1907 = vunpack.c.l.b16 %v422
      %v1908 = vunpack.c.h.b16 %v422
      %v1909 = vunpack.c.l.b16 %v423
      %v1910 = vunpack.c.l.b16 %v424
      %v1911 = vunpack.c.h.b16 %v424
      %v1912 = vunpack.c.l.b16 %v425
      %v1913 = vunpack.c.l.b16 %v426
      %v1914 = vunpack.c.h.b16 %v426
      %v1915 = vunpack.c.l.b16 %v427
      %v1916 = vunpack.c.l.b16 %v428
      %v1917 = vunpack.c.h.b16 %v428
      %v1918 = vunpack.c.l.b16 %v429
      %v1919 = vunpack.c.l.b16 %v430
      %v1920 = vunpack.c.h.b16 %v430
      %v1921 = vunpack.c.l.b16 %v431
      %v1922 = vunpack.c.l.b16 %v432
      %v1923 = vunpack.c.h.b16 %v432
      %v1924 = vunpack.c.l.b16 %v433
      %v1925 = vunpack.c.l.b16 %v434
      %v1926 = vunpack.c.h.b16 %v434
      %v1927 = vunpack.c.l.b16 %v435
      %v1928 = vunpack.c.l.b16 %v436
      %v1929 = vunpack.c.h.b16 %v436
      %v1930 = vunpack.c.l.b16 %v437
      %v1931 = vunpack.c.l.b16 %v438
      %v1932 = vunpack.c.h.b16 %v438
      %v1933 = vunpack.c.l.b16 %v439
      %v1934 = vunpack.c.l.b16 %v440
      %v1935 = vunpack.c.h.b16 %v440
      %v1936 = vunpack.c.l.b16 %v441
      %v1937 = vunpack.c.l.b16 %v442
      %v1938 = vunpack.c.h.b16 %v442
      %v1939 = vunpack.c.l.b16 %v443
      %v1940 = vunpack.c.l.b16 %v444
      %v1941 = vunpack.c.h.b16 %v444
      %v1942 = vunpack.c.l.b16 %v445
      %v1943 = vunpack.c.l.b16 %v446
      %v1944 = vunpack.c.h.b16 %v446
      %v1945 = vunpack.c.l.b16 %v447
      %v1946 = vunpack.c.l.b16 %v448
      %v1947 = vunpack.c.h.b16 %v448
      %v1948 = vunpack.c.l.b16 %v449
      %v1949 = vunpack.c.l.b16 %v450
      %v1950 = vunpack.c.h.b16 %v450
      %v1951 = vunpack.c.l.b16 %v451
      %v1952 = vunpack.c.l.b16 %v452
      %v1953 = vunpack.c.h.b16 %v452
      %v1954 = vunpack.c.l.b16 %v453
      %v1955 = vunpack.c.l.b16 %v454
      %v1956 = vunpack.c.h.b16 %v454
      %v1957 = vunpack.c.l.b16 %v455
      %v1958 = vunpack.c.l.b16 %v456
      %v1959 = vunpack.c.h.b16 %v456
      %v1960 = vunpack.c.l.b16 %v457
      %v1961 = vunpack.c.l.b16 %v458
      %v1962 = vunpack.c.h.b16 %v458
      %v1963 = vunpack.c.l.b16 %v459
      %v1964 = vunpack.c.l.b16 %v460
      %v1965 = vunpack.c.h.b16 %v460
      %v1966 = vunpack.c.l.b16 %v461
      %v1967 = vunpack.c.l.b16 %v462
      %v1968 = vunpack.c.h.b16 %v462
      %v1969 = vunpack.c.l.b16 %v463
      %v1970 = vunpack.c.l.b16 %v464
      %v1971 = vunpack.c.h.b16 %v464
      %v1972 = vunpack.c.l.b16 %v465
      %v1973 = vunpack.c.l.b16 %v466
      %v1974 = vunpack.c.h.b16 %v466
      %v1975 = vunpack.c.l.b16 %v467
      %v1976 = vunpack.c.l.b16 %v468
      %v1977 = vunpack.c.h.b16 %v468
      %v1978 = vunpack.c.l.b16 %v469
      %v1979 = vunpack.c.l.b16 %v470
      %v1980 = vunpack.c.h.b16 %v470
      %v1981 = vunpack.c.l.b16 %v471
      %v1982 = vunpack.c.l.b16 %v472
      %v1983 = vunpack.c.h.b16 %v472
      %v1984 = vunpack.c.l.b16 %v473
      %v1985 = vunpack.c.l.b16 %v474
      %v1986 = vunpack.c.h.b16 %v474
      %v1987 = vunpack.c.l.b16 %v475
      %v1988 = vunpack.c.l.b16 %v476
      %v1989 = vunpack.c.h.b16 %v476
      %v1990 = vunpack.c.l.b16 %v477
      %v1991 = vunpack.c.l.b16 %v478
      %v1992 = vunpack.c.h.b16 %v478
      %v1993 = vunpack.c.l.b16 %v479
      %v1994 = vunpack.c.l.b16 %v480
      %v1995 = vunpack.c.h.b16 %v480
      %v1996 = vunpack.c.l.b16 %v481
      %v1997 = vunpack.c.l.b16 %v482
      %v1998 = vunpack.c.h.b16 %v482
      %v1999 = vunpack.c.l.b16 %v483
      %v2000 = vunpack.c.l.b16 %v484
      %v2001 = vunpack.c.h.b16 %v484
      %v2002 = vunpack.c.l.b16 %v485
      %v2003 = vunpack.c.l.b16 %v486
      %v2004 = vunpack.c.h.b16 %v486
      %v2005 = vunpack.c.l.b16 %v487
      %v2006 = vunpack.c.l.b16 %v488
      %v2007 = vunpack.c.h.b16 %v488
      %v2008 = vunpack.c.l.b16 %v489
      %v2009 = vunpack.c.l.b16 %v490
      %v2010 = vunpack.c.h.b16 %v490
      %v2011 = vunpack.c.l.b16 %v491
      %v2012 = vunpack.c.l.b16 %v492
      %v2013 = vunpack.c.h.b16 %v492
      %v2014 = vunpack.c.l.b16 %v493
      %v2015 = vunpack.c.l.b16 %v494
      %v2016 = vunpack.c.h.b16 %v494
      %v2017 = vunpack.c.l.b16 %v495
      %v2018 = vunpack.c.l.b16 %v496
      %v2019 = vunpack.c.h.b16 %v496
      %v2020 = vunpack.c.l.b16 %v497
      %v2021 = vunpack.c.l.b16 %v498
      %v2022 = vunpack.c.h.b16 %v498
      %v2023 = vunpack.c.l.b16 %v499
      %v2024 = vunpack.c.l.b16 %v500
      %v2025 = vunpack.c.h.b16 %v500
      %v2026 = vunpack.c.l.b16 %v501
      %v2027 = vunpack.c.l.b16 %v502
      %v2028 = vunpack.c.h.b16 %v502
      %v2029 = vunpack.c.l.b16 %v503
      %v2030 = vunpack.c.l.b16 %v504
      %v2031 = vunpack.c.h.b16 %v504
      %v2032 = vunpack.c.l.b16 %v505
      %v2033 = vunpack.c.l.b16 %v506
      %v2034 = vunpack.c.h.b16 %v506
      %v2035 = vunpack.c.l.b16 %v507
      %v2036 = vunpack.c.l.b16 %v508
      %v2037 = vunpack.c.h.b16 %v508
      %v2038 = vunpack.c.l.b16 %v509
      %v2039 = vunpack.c.l.b16 %v510
      %v2040 = vunpack.c.h.b16 %v510
      %v2041 = vunpack.c.l.b16 %v511
      %v2042 = vunpack.c.l.b16 %v512
      %v2043 = vunpack.c.h.b16 %v512
      %v2044 = vunpack.c.l.b16 %v513
      %v2045 = vunpack.c.l.b16 %v514
      %v2046 = vunpack.c.h.b16 %v514
      %v2047 = vunpack.c.l.b16 %v515
      %v2048 = vunpack.c.l.b16 %v516
      %v2049 = vunpack.c.h.b16 %v516
      %v2050 = vunpack.c.l.b16 %v517
      %v2051 = vunpack.c.l.b16 %v518
      %v2052 = vunpack.c.h.b16 %v518
      %v2053 = vunpack.c.l.b16 %v519
      %v2054 = vunpack.c.l.b16 %v520
      %v2055 = vunpack.c.h.b16 %v520
      %v2056 = vunpack.c.l.b16 %v521
      %v2057 = vunpack.c.l.b16 %v522
      %v2058 = vunpack.c.h.b16 %v522
      %v2059 = vunpack.c.l.b16 %v523
      %v2060 = vunpack.c.l.b16 %v524
      %v2061 = vunpack.c.h.b16 %v524
      %v2062 = vunpack.c.l.b16 %v525
      %v2063 = vunpack.c.l.b16 %v526
      %v2064 = vunpack.c.h.b16 %v526
      %v2065 = vunpack.c.l.b16 %v527
      %v2066 = vunpack.c.l.b16 %v528
      %v2067 = vunpack.c.h.b16 %v528
      %v2068 = vunpack.c.l.b16 %v529
      %v2069 = vunpack.c.l.b16 %v530
      %v2070 = vunpack.c.h.b16 %v530
      %v2071 = vunpack.c.l.b16 %v531
      %v2072 = vunpack.c.l.b16 %v532
      %v2073 = vunpack.c.h.b16 %v532
      %v2074 = vunpack.c.l.b16 %v533
      %v2075 = vunpack.c.l.b16 %v534
      %v2076 = vunpack.c.h.b16 %v534
      %v2077 = vunpack.c.l.b16 %v535
      %v2078 = vunpack.c.l.b16 %v536
      %v2079 = vunpack.c.h.b16 %v536
      %v2080 = vunpack.c.l.b16 %v537
      %v2081 = vunpack.c.l.b16 %v538
      %v2082 = vunpack.c.h.b16 %v538
      %v2083 = vunpack.c.l.b16 %v539
      %v2084 = vunpack.c.l.b16 %v540
      %v2085 = vunpack.c.h.b16 %v540
      %v2086 = vunpack.c.l.b16 %v541
      %v2087 = vunpack.c.l.b16 %v542
      %v2088 = vunpack.c.h.b16 %v542
      %v2089 = vunpack.c.l.b16 %v543
      %v2090 = vunpack.c.l.b16 %v544
      %v2091 = vunpack.c.h.b16 %v544
      %v2092 = vunpack.c.l.b16 %v545
      %v2093 = vunpack.c.l.b16 %v546
      %v2094 = vunpack.c.h.b16 %v546
      %v2095 = vunpack.c.l.b16 %v547
      %v2096 = vunpack.c.l.b16 %v548
      %v2097 = vunpack.c.h.b16 %v548
      %v2098 = vunpack.c.l.b16 %v549
      %v2099 = vunpack.c.l.b16 %v550
      %v2100 = vunpack.c.h.b16 %v550
      %v2101 = vunpack.c.l.b16 %v551
      %v2102 = vunpack.c.l.b16 %v552
      %v2103 = vunpack.c.h.b16 %v552
      %v2104 = vunpack.c.l.b16 %v553
      %v2105 = vunpack.c.l.b16 %v554
      %v2106 = vunpack.c.h.b16 %v554
      %v2107 = vunpack.c.l.b16 %v555
      %v2108 = vunpack.c.l.b16 %v556
      %v2109 = vunpack.c.h.b16 %v556
      %v2110 = vunpack.c.l.b16 %v557
      %v2111 = vunpack.c.l.b16 %v558
      %v2112 = vunpack.c.h.b16 %v558
      %v2113 = vunpack.c.l.b16 %v559
      %v2114 = vunpack.c.l.b16 %v560
      %v2115 = vunpack.c.h.b16 %v560
      %v2116 = vunpack.c.l.b16 %v561
      %v2117 = vunpack.c.l.b16 %v562
      %v2118 = vunpack.c.h.b16 %v562
      %v2119 = vunpack.c.l.b16 %v563
      %v2120 = vunpack.c.l.b16 %v564
      %v2121 = vunpack.c.h.b16 %v564
      %v2122 = vunpack.c.l.b16 %v565
      %v2123 = vunpack.c.l.b16 %v566
      %v2124 = vunpack.c.h.b16 %v566
      %v2125 = vunpack.c.l.b16 %v567
      %v2126 = vunpack.c.l.b16 %v568
      %v2127 = vunpack.c.h.b16 %v568
      %v2128 = vunpack.c.l.b16 %v569
      %v2129 = vunpack.c.l.b16 %v570
      %v2130 = vunpack.c.h.b16 %v570
      %v2131 = vunpack.c.l.b16 %v571
      %v2132 = vunpack.c.l.b16 %v572
      %v2133 = vunpack.c.h.b16 %v572
      %v2134 = vunpack.c.l.b16 %v573
      %v2135 = vunpack.c.l.b16 %v574
      %v2136 = vunpack.c.h.b16 %v574
      %v2137 = vunpack.c.l.b16 %v575
      %v2138 = vunpack.c.l.b16 %v576
      %v2139 = vunpack.c.h.b16 %v576
      %v2140 = vunpack.c.l.b16 %v577
      %v2141 = vunpack.c.l.b16 %v578
      %v2142 = vunpack.c.h.b16 %v578
      %v2143 = vunpack.c.l.b16 %v579
      %v2144 = vunpack.c.l.b16 %v580
      %v2145 = vunpack.c.h.b16 %v580
      %v2146 = vunpack.c.l.b16 %v581
      %v2147 = vunpack.c.l.b16 %v582
      %v2148 = vunpack.c.h.b16 %v582
      %v2149 = vunpack.c.l.b16 %v583
      %v2150 = vunpack.c.l.b16 %v584
      %v2151 = vunpack.c.h.b16 %v584
      %v2152 = vunpack.c.l.b16 %v585
      %v2153 = vunpack.c.l.b16 %v586
      %v2154 = vunpack.c.h.b16 %v586
      %v2155 = vunpack.c.l.b16 %v587
      %v2156 = vunpack.c.l.b16 %v588
      %v2157 = vunpack.c.h.b16 %v588
      %v2158 = vunpack.c.l.b16 %v589
      %v2159 = vunpack.c.l.b16 %v590
      %v2160 = vunpack.c.h.b16 %v590
      %v2161 = vunpack.c.l.b16 %v591
      %v2162 = vunpack.c.l.b16 %v592
      %v2163 = vunpack.c.h.b16 %v592
      %v2164 = vunpack.c.l.b16 %v593
      %v2165 = vunpack.c.l.b16 %v594
      %v2166 = vunpack.c.h.b16 %v594
      %v2167 = vunpack.c.l.b16 %v595
      %v2168 = vunpack.c.l.b16 %v596
      %v2169 = vunpack.c.h.b16 %v596
      %v2170 = vunpack.c.l.b16 %v597
      %v2171 = vunpack.c.l.b16 %v598
      %v2172 = vunpack.c.h.b16 %v598
      %v2173 = vunpack.c.l.b16 %v599
      %v2174 = vunpack.c.l.b16 %v600
      %v2175 = vunpack.c.h.b16 %v600
      %v2176 = vunpack.c.l.b16 %v601
      %v2177 = vunpack.c.l.b16 %v602
      %v2178 = vunpack.c.h.b16 %v602
      %v2179 = vunpack.c.l.b16 %v603
      %v2180 = vunpack.c.l.b16 %v604
      %v2181 = vunpack.c.h.b16 %v604
      %v2182 = vunpack.c.l.b16 %v605
      %v2183 = vunpack.c.l.b16 %v606
      %v2184 = vunpack.c.h.b16 %v606
      %v2185 = vunpack.c.l.b16 %v607
      %v2186 = vunpack.c.l.b16 %v608
      %v2187 = vunpack.c.h.b16 %v608
      %v2188 = vunpack.c.l.b16 %v609
      %v2189 = vunpack.c.l.b16 %v610
      %v2190 = vunpack.c.h.b16 %v610
      %v2191 = vunpack.c.l.b16 %v611
      %v2192 = vunpack.c.l.b16 %v612
      %v2193 = vunpack.c.h.b16 %v612
      %v2194 = vunpack.c.l.b16 %v613
      %v2195 = vunpack.c.l.b16 %v614
      %v2196 = vunpack.c.h.b16 %v614
      %v2197 = vunpack.c.l.b16 %v615
      %v2198 = vunpack.c.l.b16 %v616
      %v2199 = vunpack.c.h.b16 %v616
      %v2200 = vunpack.c.l.b16 %v617
      %v2201 = vunpack.c.l.b16 %v618
      %v2202 = vunpack.c.h.b16 %v618
      %v2203 = vunpack.c.l.b16 %v619
      %v2204 = vunpack.c.l.b16 %v620
      %v2205 = vunpack.c.h.b16 %v620
      %v2206 = vunpack.c.l.b16 %v621
      %v2207 = vunpack.c.l.b16 %v622
      %v2208 = vunpack.c.h.b16 %v622
      %v2209 = vunpack.c.l.b16 %v623
      %v2210 = vunpack.c.l.b16 %v624
      %v2211 = vunpack.c.h.b16 %v624
      %v2212 = vunpack.c.l.b16 %v625
      %v2213 = vunpack.c.l.b16 %v626
      %v2214 = vunpack.c.h.b16 %v626
      %v2215 = vunpack.c.l.b16 %v627
      %v2216 = vunpack.c.l.b16 %v628
      %v2217 = vunpack.c.h.b16 %v628
      %v2218 = vunpack.c.l.b16 %v629
      %v2219 = vunpack.c.l.b16 %v630
      %v2220 = vunpack.c.h.b16 %v630
      %v2221 = vunpack.c.l.b16 %v631
      %v2222 = vunpack.c.l.b16 %v632
      %v2223 = vunpack.c.h.b16 %v632
      %v2224 = vunpack.c.l.b16 %v633
      %v2225 = vunpack.c.l.b16 %v634
      %v2226 = vunpack.c.h.b16 %v634
      %v2227 = vunpack.c.l.b16 %v635
      %v2228 = vunpack.c.l.b16 %v636
      %v2229 = vunpack.c.h.b16 %v636
      %v2230 = vunpack.c.l.b16 %v637
      %v2231 = vunpack.c.l.b16 %v638
      %v2232 = vunpack.c.h.b16 %v638
      %v2233 = vunpack.c.l.b16 %v639
      %v2234 = vunpack.c.l.b16 %v640
      %v2235 = vunpack.c.h.b16 %v640
      %v2236 = vunpack.c.l.b16 %v641
      %v2237 = vunpack.c.l.b16 %v642
      %v2238 = vunpack.c.h.b16 %v642
      %v2239 = vunpack.c.l.b16 %v643
      %v2240 = vunpack.c.l.b16 %v644
      %v2241 = vunpack.c.h.b16 %v644
      %v2242 = vunpack.c.l.b16 %v645
      %v2243 = vunpack.c.l.b16 %v646
      %v2244 = vunpack.c.h.b16 %v646
      %v2245 = vunpack.c.l.b16 %v647
      %v2246 = vunpack.c.l.b16 %v648
      %v2247 = vunpack.c.h.b16 %v648
      %v2248 = vunpack.c.l.b16 %v649
      %v2249 = vunpack.c.l.b16 %v650
      %v2250 = vunpack.c.h.b16 %v650
      %v2251 = vunpack.c.l.b16 %v651
      %v2252 = vunpack.c.l.b16 %v652
      %v2253 = vunpack.c.h.b16 %v652
      %v2254 = vunpack.c.l.b16 %v653
      %v2255 = vunpack.c.l.b16 %v654
      %v2256 = vunpack.c.h.b16 %v654
      %v2257 = vunpack.c.l.b16 %v655
      %v2258 = vunpack.c.l.b16 %v656
      %v2259 = vunpack.c.h.b16 %v656
      %v2260 = vunpack.c.l.b16 %v657
      %v2261 = vunpack.c.l.b16 %v658
      %v2262 = vunpack.c.h.b16 %v658
      %v2263 = vunpack.c.l.b16 %v659
      %v2264 = vunpack.c.l.b16 %v660
      %v2265 = vunpack.c.h.b16 %v660
      %v2266 = vunpack.c.l.b16 %v661
      %v2267 = vunpack.c.l.b16 %v662
      %v2268 = vunpack.c.h.b16 %v662
      %v2269 = vunpack.c.l.b16 %v663
      %v2270 = vunpack.c.l.b16 %v664
      %v2271 = vunpack.c.h.b16 %v664
      %v2272 = vunpack.c.l.b16 %v665
      %v2273 = vunpack.c.l.b16 %v666
      %v2274 = vunpack.c.h.b16 %v666
      %v2275 = vunpack.c.l.b16 %v667
      %v2276 = vunpack.c.l.b16 %v668
      %v2277 = vunpack.c.h.b16 %v668
      %v2278 = vunpack.c.l.b16 %v669
      %v2279 = vunpack.c.l.b16 %v670
      %v2280 = vunpack.c.h.b16 %v670
      %v2281 = vunpack.c.l.b16 %v671
      %v2282 = vunpack.c.l.b16 %v672
      %v2283 = vunpack.c.h.b16 %v672
      %v2284 = vunpack.c.l.b16 %v673
      %v2285 = vunpack.c.l.b16 %v674
      %v2286 = vunpack.c.h.b16 %v674
      %v2287 = vunpack.c.l.b16 %v675
      %v2288 = vunpack.c.l.b16 %v676
      %v2289 = vunpack.c.h.b16 %v676
      %v2290 = vunpack.c.l.b16 %v677
      %v2291 = vunpack.c.l.b16 %v678
      %v2292 = vunpack.c.h.b16 %v678
      %v2293 = vunpack.c.l.b16 %v679
      %v2294 = vunpack.c.l.b16 %v680
      %v2295 = vunpack.c.h.b16 %v680
      %v2296 = vunpack.c.l.b16 %v681
      %v2297 = vunpack.c.l.b16 %v682
      %v2298 = vunpack.c.h.b16 %v682
      %v2299 = vunpack.c.l.b16 %v683
      %v2300 = vunpack.c.l.b16 %v684
      %v2301 = vunpack.c.h.b16 %v684
      %v2302 = vunpack.c.l.b16 %v685
      %v2303 = vunpack.c.l.b16 %v686
      %v2304 = vunpack.c.h.b16 %v686
      %v2305 = vunpack.c.l.b16 %v687
      %v2306 = vunpack.c.l.b16 %v688
      %v2307 = vunpack.c.h.b16 %v688
      %v2308 = vunpack.c.l.b16 %v689
      %v2309 = vunpack.c.l.b16 %v690
      %v2310 = vunpack.c.h.b16 %v690
      %v2311 = vunpack.c.l.b16 %v691
      %v2312 = vunpack.c.l.b16 %v692
      %v2313 = vunpack.c.h.b16 %v692
      %v2314 = vunpack.c.l.b16 %v693
      %v2315 = vunpack.c.l.b16 %v694
      %v2316 = vunpack.c.h.b16 %v694
      %v2317 = vunpack.c.l.b16 %v695
      %v2318 = vunpack.c.l.b16 %v696
      %v2319 = vunpack.c.h.b16 %v696
      %v2320 = vunpack.c.l.b16 %v697
      %v2321 = vunpack.c.l.b16 %v698
      %v2322 = vunpack.c.h.b16 %v698
      %v2323 = vunpack.c.l.b16 %v699
      %v2324 = vunpack.c.l.b16 %v700
      %v2325 = vunpack.c.h.b16 %v700
      %v2326 = vunpack.c.l.b16 %v701
      %v2327 = vunpack.c.l.b16 %v702
      %v2328 = vunpack.c.h.b16 %v702
      %v2329 = vunpack.c.l.b16 %v703
      %v2330 = vunpack.c.l.b16 %v704
      %v2331 = vunpack.c.h.b16 %v704
      %v2332 = vunpack.c.l.b16 %v705
      %v2333 = vunpack.c.l.b16 %v706
      %v2334 = vunpack.c.h.b16 %v706
      %v2335 = vunpack.c.l.b16 %v707
      %v2336 = vunpack.c.l.b16 %v708
      %v2337 = vunpack.c.h.b16 %v708
      %v2338 = vunpack.c.l.b16 %v709
      %v2339 = vunpack.c.l.b16 %v710
      %v2340 = vunpack.c.h.b16 %v710
      %v2341 = vunpack.c.l.b16 %v711
      %v2342 = vunpack.c.l.b16 %v712
      %v2343 = vunpack.c.h.b16 %v712
      %v2344 = vunpack.c.l.b16 %v713
      %v2345 = vunpack.c.l.b16 %v714
      %v2346 = vunpack.c.h.b16 %v714
      %v2347 = vunpack.c.l.b16 %v715
      %v2348 = vunpack.c.l.b16 %v716
      %v2349 = vunpack.c.h.b16 %v716
      %v2350 = vunpack.c.l.b16 %v717
      %v2351 = vunpack.c.l.b16 %v718
      %v2352 = vunpack.c.h.b16 %v718
      %v2353 = vunpack.c.l.b16 %v719
      %v2354 = vunpack.c.l.b16 %v720
      %v2355 = vunpack.c.h.b16 %v720
      %v2356 = vunpack.c.l.b16 %v721
      %v2357 = vunpack.c.l.b16 %v722
      %v2358 = vunpack.c.h.b16 %v722
      %v2359 = vunpack.c.l.b16 %v723
      %v2360 = vunpack.c.l.b16 %v724
      %v2361 = vunpack.c.h.b16 %v724
      %v2362 = vunpack.c.l.b16 %v725
      %v2363 = vunpack.c.l.b16 %v726
      %v2364 = vunpack.c.h.b16 %v726
      %v2365 = vunpack.c.l.b16 %v727
      %v2366 = vunpack.c.l.b16 %v728
      %v2367 = vunpack.c.h.b16 %v728
      %v2368 = vunpack.c.l.b16 %v729
      %v2369 = vunpack.c.l.b16 %v730
      %v2370 = vunpack.c.h.b16 %v730
      %v2371 = vunpack.c.l.b16 %v731
      %v2372 = vunpack.c.l.b16 %v732
      %v2373 = vunpack.c.h.b16 %v732
      %v2374 = vunpack.c.l.b16 %v733
      %v2375 = vunpack.c.l.b16 %v734
      %v2376 = vunpack.c.h.b16 %v734
      %v2377 = vunpack.c.l.b16 %v735
      %v2378 = vunpack.c.l.b16 %v736
      %v2379 = vunpack.c.h.b16 %v736
      %v2380 = vunpack.c.l.b16 %v737
      %v2381 = vunpack.c.l.b16 %v738
      %v2382 = vunpack.c.h.b16 %v738
      %v2383 = vunpack.c.l.b16 %v739
      %v2384 = vunpack.c.l.b16 %v740
      %v2385 = vunpack.c.h.b16 %v740
      %v2386 = vunpack.c.l.b16 %v741
      %v2387 = vunpack.c.l.b16 %v742
      %v2388 = vunpack.c.h.b16 %v742
      %v2389 = vunpack.c.l.b16 %v743
      %v2390 = vunpack.c.l.b16 %v744
      %v2391 = vunpack.c.h.b16 %v744
      %v2392 = vunpack.c.l.b16 %v745
      %v2393 = vunpack.c.l.b16 %v746
      %v2394 = vunpack.c.h.b16 %v746
      %v2395 = vunpack.c.l.b16 %v747
      %v2396 = vunpack.c.l.b16 %v748
      %v2397 = vunpack.c.h.b16 %v748
      %v2398 = vunpack.c.l.b16 %v749
      %v2399 = vunpack.c.l.b16 %v750
      %v2400 = vunpack.c.h.b16 %v750
      %v2401 = vunpack.c.l.b16 %v751
      %v2402 = vunpack.c.l.b16 %v752
      %v2403 = vunpack.c.h.b16 %v752
      %v2404 = vunpack.c.l.b16 %v753
      %v2405 = vunpack.c.l.b16 %v754
      %v2406 = vunpack.c.h.b16 %v754
      %v2407 = vunpack.c.l.b16 %v755
      %v2408 = vunpack.c.l.b16 %v756
      %v2409 = vunpack.c.h.b16 %v756
      %v2410 = vunpack.c.l.b16 %v757
      %v2411 = vunpack.c.l.b16 %v758
      %v2412 = vunpack.c.h.b16 %v758
      %v2413 = vunpack.c.l.b16 %v759
      %v2414 = vunpack.c.l.b16 %v760
      %v2415 = vunpack.c.h.b16 %v760
      %v2416 = vunpack.c.l.b16 %v761
      %v2417 = vunpack.c.l.b16 %v762
      %v2418 = vunpack.c.h.b16 %v762
      %v2419 = vunpack.c.l.b16 %v763
      %v2420 = vunpack.c.l.b16 %v764
      %v2421 = vunpack.c.h.b16 %v764
      %v2422 = vunpack.c.l.b16 %v765
      %v2423 = vunpack.c.l.b16 %v766
      %v2424 = vunpack.c.h.b16 %v766
      %v2425 = vunpack.c.l.b16 %v767
      %v2426 = vunpack.c.l.b16 %v768
      %v2427 = vunpack.c.h.b16 %v768
      %v2428 = vunpack.c.l.b16 %v769
      %v2429 = vunpack.c.l.b16 %v770
      %v2430 = vunpack.c.h.b16 %v770
      %v2431 = vunpack.c.l.b16 %v771
      %v2432 = vunpack.c.l.b16 %v772
      %v2433 = vunpack.c.h.b16 %v772
      %v2434 = vunpack.c.l.b16 %v773
      %v2435 = vunpack.c.l.b16 %v774
      %v2436 = vunpack.c.h.b16 %v774
      %v2437 = vunpack.c.l.b16 %v775
      %v2438 = vunpack.c.l.b16 %v776
      %v2439 = vunpack.c.h.b16 %v776
      %v2440 = vunpack.c.l.b16 %v777
      %v2441 = vunpack.c.l.b16 %v778
      %v2442 = vunpack.c.h.b16 %v778
      %v2443 = vunpack.c.l.b16 %v779
      %v2444 = vunpack.c.l.b16 %v780
      %v2445 = vunpack.c.h.b16 %v780
      %v2446 = vunpack.c.l.b16 %v781
      %v2447 = vunpack.c.l.b16 %v782
      %v2448 = vunpack.c.h.b16 %v782
      %v2449 = vunpack.c.l.b16 %v783
      %v2450 = vunpack.c.l.b16 %v784
      %v2451 = vunpack.c.h.b16 %v784
      %v2452 = vunpack.c.l.b16 %v785
      %v2453 = vunpack.c.l.b16 %v786
      %v2454 = vunpack.c.h.b16 %v786
      %v2455 = vunpack.c.l.b16 %v787
      %v2456 = vunpack.c.l.b16 %v788
      %v2457 = vunpack.c.h.b16 %v788
      %v2458 = vunpack.c.l.b16 %v789
      %v2459 = vunpack.c.l.b16 %v790
      %v2460 = vunpack.c.h.b16 %v790
      %v2461 = vunpack.c.l.b16 %v791
      %v2462 = vunpack.c.l.b16 %v792
      %v2463 = vunpack.c.h.b16 %v792
      %v2464 = vunpack.c.l.b16 %v793
      %v2465 = vunpack.c.l.b16 %v794
      %v2466 = vunpack.c.h.b16 %v794
      %v2467 = vunpack.c.l.b16 %v795
      %v2468 = vunpack.c.l.b16 %v796
      %v2469 = vunpack.c.h.b16 %v796
      %v2470 = vunpack.c.l.b16 %v797
      %v2471 = vunpack.c.l.b16 %v798
      %v2472 = vunpack.c.h.b16 %v798
      %v2473 = vunpack.c.l.b16 %v799
      %v2474 = vunpack.c.l.b16 %v800
      %v2475 = vunpack.c.h.b16 %v800
      %v2476 = vunpack.c.l.b16 %v801
      %v2477 = vunpack.c.l.b16 %v802
      %v2478 = vunpack.c.h.b16 %v802
      %v2479 = vunpack.c.l.b16 %v803
      %v2480 = vunpack.c.l.b16 %v804
      %v2481 = vunpack.c.h.b16 %v804
      %v2482 = vunpack.c.l.b16 %v805
      %v2483 = vunpack.c.l.b16 %v806
      %v2484 = vunpack.c.h.b16 %v806
      %v2485 = vunpack.c.l.b16 %v807
      %v2486 = vunpack.c.l.b16 %v808
      %v2487 = vunpack.c.h.b16 %v808
      %v2488 = vunpack.c.l.b16 %v809
      %v2489 = vunpack.c.l.b16 %v810
      %v2490 = vunpack.c.h.b16 %v810
      %v2491 = vunpack.c.l.b16 %v811
      %v2492 = vunpack.c.l.b16 %v812
      %v2493 = vunpack.c.h.b16 %v812
      %v2494 = vunpack.c.l.b16 %v813
      %v2495 = vunpack.c.l.b16 %v814
      %v2496 = vunpack.c.h.b16 %v814
      %v2497 = vunpack.c.l.b16 %v815
      %v2498 = vunpack.c.l.b16 %v816
      %v2499 = vunpack.c.h.b16 %v816
      %v2500 = vunpack.c.l.b16 %v817
      %v2501 = vunpack.c.l.b16 %v818
      %v2502 = vunpack.c.h.b16 %v818
      %v2503 = vunpack.c.l.b16 %v819
      %v2504 = vunpack.c.l.b16 %v820
      %v2505 = vunpack.c.h.b16 %v820
      %v2506 = vunpack.c.l.b16 %v821
      %v2507 = vunpack.c.l.b16 %v822
      %v2508 = vunpack.c.h.b16 %v822
      %v2509 = vunpack.c.l.b16 %v823
      %v2510 = vunpack.c.l.b16 %v824
      %v2511 = vunpack.c.h.b16 %v824
      %v2512 = vunpack.c.l.b16 %v825
      %v2513 = vunpack.c.l.b16 %v826
      %v2514 = vunpack.c.h.b16 %v826
      %v2515 = vunpack.c.l.b16 %v827
      %v2516 = vunpack.c.l.b16 %v828
      %v2517 = vunpack.c.h.b16 %v828
      %v2518 = vunpack.c.l.b16 %v829
      %v2519 = vunpack.c.l.b16 %v830
      %v2520 = vunpack.c.h.b16 %v830
      %v2521 = vunpack.c.l.b16 %v831
      %v2522 = vunpack.c.l.b16 %v832
      %v2523 = vunpack.c.h.b16 %v832
      %v2524 = vunpack.c.l.b16 %v833
      %v2525 = vunpack.c.l.b16 %v834
      %v2526 = vunpack.c.h.b16 %v834
      %v2527 = vunpack.c.l.b16 %v835
      %v2528 = vunpack.c.l.b16 %v836
      %v2529 = vunpack.c.h.b16 %v836
      %v2530 = vunpack.c.l.b16 %v837
      %v2531 = vunpack.c.l.b16 %v838
      %v2532 = vunpack.c.h.b16 %v838
      %v2533 = vunpack.c.l.b16 %v839
      %v2534 = vunpack.c.l.b16 %v840
      %v2535 = vunpack.c.h.b16 %v840
      %v2536 = vunpack.c.l.b16 %v841
      %v2537 = vunpack.c.l.b16 %v842
      %v2538 = vunpack.c.h.b16 %v842
      %v2539 = vunpack.c.l.b16 %v843
      %v2540 = vunpack.c.l.b16 %v844
      %v2541 = vunpack.c.h.b16 %v844
      %v2542 = vunpack.c.l.b16 %v845
      %v2543 = vunpack.c.l.b16 %v846
      %v2544 = vunpack.c.h.b16 %v846
      %v2545 = vunpack.c.l.b16 %v847
      %v2546 = vunpack.c.l.b16 %v848
      %v2547 = vunpack.c.h.b16 %v848
      %v2548 = vunpack.c.l.b16 %v849
      %v2549 = vunpack.c.l.b16 %v850
      %v2550 = vunpack.c.h.b16 %v850
      %v2551 = vunpack.c.l.b16 %v851
      %v2552 = vunpack.c.l.b16 %v852
      %v2553 = vunpack.c.h.b16 %v852
      %v2554 = vunpack.c.l.b16 %v853
      %v2555 = vunpack.c.l.b16 %v854
      %v2556 = vunpack.c.h.b16 %v854
      %v2557 = vunpack.c.l.b16 %v855
      %v2558 = vunpack.c.l.b16 %v856
      %v2559 = vunpack.c.h.b16 %v856
      %v2560 = vunpack.c.l.b16 %v857
      %v2561 = vunpack.c.l.b16 %v858
      %v2562 = vunpack.c.h.b16 %v858
      %v2563 = vunpack.c.l.b16 %v859
      %v2564 = vunpack.c.l.b16 %v860
      %v2565 = vunpack.c.h.b16 %v860
      %v2566 = vunpack.c.l.b16 %v861
      %v2567 = vunpack.c.l.b16 %v862
      %v2568 = vunpack.c.h.b16 %v862
      %v2569 = vunpack.c.l.b16 %v863
      %v2570 = vunpack.c.l.b16 %v864
      %v2571 = vunpack.c.h.b16 %v864
      %v2572 = vunpack.c.l.b16 %v865
      %v2573 = vunpack.c.l.b16 %v866
      %v2574 = vunpack.c.h.b16 %v866
      %v2575 = vunpack.c.l.b16 %v867
      %v2576 = vunpack.c.l.b16 %v868
      %v2577 = vunpack.c.h.b16 %v868
      %v2578 = vunpack.c.l.b16 %v869
      %v2579 = vunpack.c.l.b16 %v870
      %v2580 = vunpack.c.h.b16 %v870
      %v2581 = vunpack.c.l.b16 %v871
      %v2582 = vunpack.c.l.b16 %v872
      %v2583 = vunpack.c.h.b16 %v872
      %v2584 = vunpack.c.l.b16 %v873
      %v2585 = vunpack.c.l.b16 %v874
      %v2586 = vunpack.c.h.b16 %v874
      %v2587 = vunpack.c.l.b16 %v875
      %v2588 = vunpack.c.l.b16 %v876
      %v2589 = vunpack.c.h.b16 %v876
      %v2590 = vunpack.c.l.b16 %v877
      %v2591 = vunpack.c.l.b16 %v878
      %v2592 = vunpack.c.h.b16 %v878
      %v2593 = vunpack.c.l.b16 %v879
      %v2594 = vunpack.c.l.b16 %v880
      %v2595 = vunpack.c.h.b16 %v880
      %v2596 = vunpack.c.l.b16 %v881
      %v2597 = vunpack.c.l.b16 %v882
      %v2598 = vunpack.c.h.b16 %v882
      %v2599 = vunpack.c.l.b16 %v883
      %v2600 = vunpack.c.l.b16 %v884
      %v2601 = vunpack.c.h.b16 %v884
      %v2602 = vunpack.c.l.b16 %v885
      %v2603 = vunpack.c.l.b16 %v886
      %v2604 = vunpack.c.h.b16 %v886
      %v2605 = vunpack.c.l.b16 %v887
      %v2606 = vunpack.c.l.b16 %v888
      %v2607 = vunpack.c.h.b16 %v888
      %v2608 = vunpack.c.l.b16 %v889
      %v2609 = vunpack.c.l.b16 %v890
      %v2610 = vunpack.c.h.b16 %v890
      %v2611 = vunpack.c.l.b16 %v891
      %v2612 = vunpack.c.l.b16 %v892
      %v2613 = vunpack.c.h.b16 %v892
      %v2614 = vunpack.c.l.b16 %v893
      %v2615 = vunpack.c.l.b16 %v894
      %v2616 = vunpack.c.h.b16 %v894
      %v2617 = vunpack.c.l.b16 %v895
      %v2618 = vunpack.c.l.b16 %v896
      %v2619 = vunpack.c.h.b16 %v896
      %v2620 = vunpack.c.l.b16 %v897
      %v2621 = vunpack.c.l.b16 %v898
      %v2622 = vunpack.c.h.b16 %v898
      %v2623 = vunpack.c.l.b16 %v899
      %v2624 = vunpack.c.l.b16 %v900
      %v2625 = vunpack.c.h.b16 %v900
      %v2626 = vunpack.c.l.b16 %v901
      %v2627 = vunpack.c.l.b16 %v902
      %v2628 = vunpack.c.h.b16 %v902
      %v2629 = vunpack.c.l.b16 %v903
      %v2630 = vunpack.c.l.b16 %v904
      %v2631 = vunpack.c.h.b16 %v904
      %v2632 = vunpack.c.l.b16 %v905
      %v2633 = vunpack.c.l.b16 %v906
      %v2634 = vunpack.c.h.b16 %v906
      %v2635 = vunpack.c.l.b16 %v907
      %v2636 = vunpack.c.l.b16 %v908
      %v2637 = vunpack.c.h.b16 %v908
      %v2638 = vunpack.c.l.b16 %v909
      %v2639 = vunpack.c.l.b16 %v910
      %v2640 = vunpack.c.h.b16 %v910
      %v2641 = vunpack.c.l.b16 %v911
      %v2642 = vunpack.c.l.b16 %v912
      %v2643 = vunpack.c.h.b16 %v912
      %v2644 = vunpack.c.l.b16 %v913
      %v2645 = vunpack.c.l.b16 %v914
      %v2646 = vunpack.c.h.b16 %v914
      %v2647 = vunpack.c.l.b16 %v915
      %v2648 = vunpack.c.l.b16 %v916
      %v2649 = vunpack.c.h.b16 %v916
      %v2650 = vunpack.c.l.b16 %v917
      %v2651 = vunpack.c.l.b16 %v918
      %v2652 = vunpack.c.h.b16 %v918
      %v2653 = vunpack.c.l.b16 %v919
      %v2654 = vunpack.c.l.b16 %v920
      %v2655 = vunpack.c.h.b16 %v920
      %v2656 = vunpack.c.l.b16 %v921
      %v2657 = vunpack.c.l.b16 %v922
      %v2658 = vunpack.c.h.b16 %v922
      %v2659 = vunpack.c.l.b16 %v923
      %v2660 = vunpack.c.l.b16 %v924
      %v2661 = vunpack.c.h.b16 %v924
      %v2662 = vunpack.c.l.b16 %v925
      %v2663 = vunpack.c.l.b16 %v926
      %v2664 = vunpack.c.h.b16 %v926
      %v2665 = vunpack.c.l.b16 %v927
      %v2666 = vunpack.c.l.b16 %v928
      %v2667 = vunpack.c.h.b16 %v928
      %v2668 = vunpack.c.l.b16 %v929
      %v2669 = vunpack.c.l.b16 %v930
      %v2670 = vunpack.c.h.b16 %v930
      %v2671 = vunpack.c.l.b16 %v931
      %v2672 = vunpack.c.l.b16 %v932
      %v2673 = vunpack.c.h.b16 %v932
      %v2674 = vunpack.c.l.b16 %v933
      %v2675 = vunpack.c.l.b16 %v934
      %v2676 = vunpack.c.h.b16 %v934
      %v2677 = vunpack.c.l.b16 %v935
      %v2678 = vunpack.c.l.b16 %v936
      %v2679 = vunpack.c.h.b16 %v936
      %v2680 = vunpack.c.l.b16 %v937
      %v2681 = vunpack.c.l.b16 %v938
      %v2682 = vunpack.c.h.b16 %v938
      %v2683 = vunpack.c.l.b16 %v939
      %v2684 = vunpack.c.l.b16 %v940
      %v2685 = vunpack.c.h.b16 %v940
      %v2686 = vunpack.c.l.b16 %v941
      %v2687 = vunpack.c.l.b16 %v942
      %v2688 = vunpack.c.h.b16 %v942
      %v2689 = vunpack.c.l.b16 %v943
      %v2690 = vunpack.c.l.b16 %v944
      %v2691 = vunpack.c.h.b16 %v944
      %v2692 = vunpack.c.l.b16 %v945
      %v2693 = vunpack.c.l.b16 %v946
      %v2694 = vunpack.c.h.b16 %v946
      %v2695 = vunpack.c.l.b16 %v947
      %v2696 = vunpack.c.l.b16 %v948
      %v2697 = vunpack.c.h.b16 %v948
      %v2698 = vunpack.c.l.b16 %v949
      %v2699 = vunpack.c.l.b16 %v950
      %v2700 = vunpack.c.h.b16 %v950
      %v2701 = vunpack.c.l.b16 %v951
      %v2702 = vunpack.c.l.b16 %v952
      %v2703 = vunpack.c.h.b16 %v952
      %v2704 = vunpack.c.l.b16 %v953
      %v2705 = vunpack.c.l.b16 %v954
      %v2706 = vunpack.c.h.b16 %v954
      %v2707 = vunpack.c.l.b16 %v955
      %v2708 = vunpack.c.l.b16 %v956
      %v2709 = vunpack.c.h.b16 %v956
      %v2710 = vunpack.c.l.b16 %v957
      %v2711 = vunpack.c.l.b16 %v958
      %v2712 = vunpack.c.h.b16 %v958
      %v2713 = vunpack.c.l.b16 %v959
      %v2714 = vunpack.c.l.b16 %v960
      %v2715 = vunpack.c.h.b16 %v960
      %v2716 = vunpack.c.l.b16 %v961
      %v2717 = vunpack.c.l.b16 %v962
      %v2718 = vunpack.c.h.b16 %v962
      %v2719 = vunpack.c.l.b16 %v963
      %v2720 = vunpack.c.l.b16 %v964
      %v2721 = vunpack.c.h.b16 %v964
      %v2722 = vunpack.c.l.b16 %v965
      %v2723 = vunpack.c.l.b16 %v966
      %v2724 = vunpack.c.h.b16 %v966
      %v2725 = vunpack.c.l.b16 %v967
      %v2726 = vunpack.c.l.b16 %v968
      %v2727 = vunpack.c.h.b16 %v968
      %v2728 = vunpack.c.l.b16 %v969
      %v2729 = vunpack.c.l.b16 %v970
      %v2730 = vunpack.c.h.b16 %v970
      %v2731 = vunpack.c.l.b16 %v971
      %v2732 = vunpack.c.l.b16 %v972
      %v2733 = vunpack.c.h.b16 %v972
      %v2734 = vunpack.c.l.b16 %v973
      %v2735 = vunpack.c.l.b16 %v974
      %v2736 = vunpack.c.h.b16 %v974
      %v2737 = vunpack.c.l.b16 %v975
      %v2738 = vpack.c.b16 %v1781, %v1778
      %v2739 = vpack.c.b16 %v1782, %v1779
      %v2740 = vpack.c.b16 %v1783, %v1780
      %v2741 = vpack.c.b16 %v1787, %v1784
      %v2742 = vpack.c.b16 %v1788, %v1785
      %v2743 = vpack.c.b16 %v1789, %v1786
      %v2744 = vpack.c.b16 %v1793, %v1790
      %v2745 = vpack.c.b16 %v1794, %v1791
      %v2746 = vpack.c.b16 %v1795, %v1792
      %v2747 = vpack.c.b16 %v1799, %v1796
      %v2748 = vpack.c.b16 %v1800, %v1797
      %v2749 = vpack.c.b16 %v1801, %v1798
      %v2750 = vpack.c.b16 %v1805, %v1802
      %v2751 = vpack.c.b16 %v1806, %v1803
      %v2752 = vpack.c.b16 %v1807, %v1804
      %v2753 = vpack.c.b16 %v1811, %v1808
      %v2754 = vpack.c.b16 %v1812, %v1809
      %v2755 = vpack.c.b16 %v1813, %v1810
      %v2756 = vpack.c.b16 %v1817, %v1814
      %v2757 = vpack.c.b16 %v1818, %v1815
      %v2758 = vpack.c.b16 %v1819, %v1816
      %v2759 = vpack.c.b16 %v1823, %v1820
      %v2760 = vpack.c.b16 %v1824, %v1821
      %v2761 = vpack.c.b16 %v1825, %v1822
      %v2762 = vpack.c.b16 %v1829, %v1826
      %v2763 = vpack.c.b16 %v1830, %v1827
      %v2764 = vpack.c.b16 %v1831, %v1828
      %v2765 = vpack.c.b16 %v1835, %v1832
      %v2766 = vpack.c.b16 %v1836, %v1833
      %v2767 = vpack.c.b16 %v1837, %v1834
      %v2768 = vpack.c.b16 %v1841, %v1838
      %v2769 = vpack.c.b16 %v1842, %v1839
      %v2770 = vpack.c.b16 %v1843, %v1840
      %v2771 = vpack.c.b16 %v1847, %v1844
      %v2772 = vpack.c.b16 %v1848, %v1845
      %v2773 = vpack.c.b16 %v1849, %v1846
      %v2774 = vpack.c.b16 %v1853, %v1850
      %v2775 = vpack.c.b16 %v1854, %v1851
      %v2776 = vpack.c.b16 %v1855, %v1852
      %v2777 = vpack.c.b16 %v1859, %v1856
      %v2778 = vpack.c.b16 %v1860, %v1857
      %v2779 = vpack.c.b16 %v1861, %v1858
      %v2780 = vpack.c.b16 %v1865, %v1862
      %v2781 = vpack.c.b16 %v1866, %v1863
      %v2782 = vpack.c.b16 %v1867, %v1864
      %v2783 = vpack.c.b16 %v1871, %v1868
      %v2784 = vpack.c.b16 %v1872, %v1869
      %v2785 = vpack.c.b16 %v1873, %v1870
      %v2786 = vpack.c.b16 %v1877, %v1874
      %v2787 = vpack.c.b16 %v1878, %v1875
      %v2788 = vpack.c.b16 %v1879, %v1876
      %v2789 = vpack.c.b16 %v1883, %v1880
      %v2790 = vpack.c.b16 %v1884, %v1881
      %v2791 = vpack.c.b16 %v1885, %v1882
      %v2792 = vpack.c.b16 %v1889, %v1886
      %v2793 = vpack.c.b16 %v1890, %v1887
      %v2794 = vpack.c.b16 %v1891, %v1888
      %v2795 = vpack.c.b16 %v1895, %v1892
      %v2796 = vpack.c.b16 %v1896, %v1893
      %v2797 = vpack.c.b16 %v1897, %v1894
      %v2798 = vpack.c.b16 %v1901, %v1898
      %v2799 = vpack.c.b16 %v1902, %v1899
      %v2800 = vpack.c.b16 %v1903, %v1900
      %v2801 = vpack.c.b16 %v1907, %v1904
      %v2802 = vpack.c.b16 %v1908, %v1905
      %v2803 = vpack.c.b16 %v1909, %v1906
      %v2804 = vpack.c.b16 %v1913, %v1910
      %v2805 = vpack.c.b16 %v1914, %v1911
      %v2806 = vpack.c.b16 %v1915, %v1912
      %v2807 = vpack.c.b16 %v1919, %v1916
      %v2808 = vpack.c.b16 %v1920, %v1917
      %v2809 = vpack.c.b16 %v1921, %v1918
      %v2810 = vpack.c.b16 %v1925, %v1922
      %v2811 = vpack.c.b16 %v1926, %v1923
      %v2812 = vpack.c.b16 %v1927, %v1924
      %v2813 = vpack.c.b16 %v1931, %v1928
      %v2814 = vpack.c.b16 %v1932, %v1929
      %v2815 = vpack.c.b16 %v1933, %v1930
      %v2816 = vpack.c.b16 %v1937, %v1934
      %v2817 = vpack.c.b16 %v1938, %v1935
      %v2818 = vpack.c.b16 %v1939, %v1936
      %v2819 = vpack.c.b16 %v1943, %v1940
      %v2820 = vpack.c.b16 %v1944, %v1941
      %v2821 = vpack.c.b16 %v1945, %v1942
      %v2822 = vpack.c.b16 %v1949, %v1946
      %v2823 = vpack.c.b16 %v1950, %v1947
      %v2824 = vpack.c.b16 %v1951, %v1948
      %v2825 = vpack.c.b16 %v1955, %v1952
      %v2826 = vpack.c.b16 %v1956, %v1953
      %v2827 = vpack.c.b16 %v1957, %v1954
      %v2828 = vpack.c.b16 %v1961, %v1958
      %v2829 = vpack.c.b16 %v1962, %v1959
      %v2830 = vpack.c.b16 %v1963, %v1960
      %v2831 = vpack.c.b16 %v1967, %v1964
      %v2832 = vpack.c.b16 %v1968, %v1965
      %v2833 = vpack.c.b16 %v1969, %v1966
      %v2834 = vpack.c.b16 %v1973, %v1970
      %v2835 = vpack.c.b16 %v1974, %v1971
      %v2836 = vpack.c.b16 %v1975, %v1972
      %v2837 = vpack.c.b16 %v1979, %v1976
      %v2838 = vpack.c.b16 %v1980, %v1977
      %v2839 = vpack.c.b16 %v1981, %v1978
      %v2840 = vpack.c.b16 %v1985, %v1982
      %v2841 = vpack.c.b16 %v1986, %v1983
      %v2842 = vpack.c.b16 %v1987, %v1984
      %v2843 = vpack.c.b16 %v1991, %v1988
      %v2844 = vpack.c.b16 %v1992, %v1989
      %v2845 = vpack.c.b16 %v1993, %v1990
      %v2846 = vpack.c.b16 %v1997, %v1994
      %v2847 = vpack.c.b16 %v1998, %v1995
      %v2848 = vpack.c.b16 %v1999, %v1996
      %v2849 = vpack.c.b16 %v2003, %v2000
      %v2850 = vpack.c.b16 %v2004, %v2001
      %v2851 = vpack.c.b16 %v2005, %v2002
      %v2852 = vpack.c.b16 %v2009, %v2006
      %v2853 = vpack.c.b16 %v2010, %v2007
      %v2854 = vpack.c.b16 %v2011, %v2008
      %v2855 = vpack.c.b16 %v2015, %v2012
      %v2856 = vpack.c.b16 %v2016, %v2013
      %v2857 = vpack.c.b16 %v2017, %v2014
      %v2858 = vpack.c.b16 %v2021, %v2018
      %v2859 = vpack.c.b16 %v2022, %v2019
      %v2860 = vpack.c.b16 %v2023, %v2020
      %v2861 = vpack.c.b16 %v2027, %v2024
      %v2862 = vpack.c.b16 %v2028, %v2025
      %v2863 = vpack.c.b16 %v2029, %v2026
      %v2864 = vpack.c.b16 %v2033, %v2030
      %v2865 = vpack.c.b16 %v2034, %v2031
      %v2866 = vpack.c.b16 %v2035, %v2032
      %v2867 = vpack.c.b16 %v2039, %v2036
      %v2868 = vpack.c.b16 %v2040, %v2037
      %v2869 = vpack.c.b16 %v2041, %v2038
      %v2870 = vpack.c.b16 %v2045, %v2042
      %v2871 = vpack.c.b16 %v2046, %v2043
      %v2872 = vpack.c.b16 %v2047, %v2044
      %v2873 = vpack.c.b16 %v2051, %v2048
      %v2874 = vpack.c.b16 %v2052, %v2049
      %v2875 = vpack.c.b16 %v2053, %v2050
      %v2876 = vpack.c.b16 %v2057, %v2054
      %v2877 = vpack.c.b16 %v2058, %v2055
      %v2878 = vpack.c.b16 %v2059, %v2056
      %v2879 = vpack.c.b16 %v2063, %v2060
      %v2880 = vpack.c.b16 %v2064, %v2061
      %v2881 = vpack.c.b16 %v2065, %v2062
      %v2882 = vpack.c.b16 %v2069, %v2066
      %v2883 = vpack.c.b16 %v2070, %v2067
      %v2884 = vpack.c.b16 %v2071, %v2068
      %v2885 = vpack.c.b16 %v2075, %v2072
      %v2886 = vpack.c.b16 %v2076, %v2073
      %v2887 = vpack.c.b16 %v2077, %v2074
      %v2888 = vpack.c.b16 %v2081, %v2078
      %v2889 = vpack.c.b16 %v2082, %v2079
      %v2890 = vpack.c.b16 %v2083, %v2080
      %v2891 = vpack.c.b16 %v2087, %v2084
      %v2892 = vpack.c.b16 %v2088, %v2085
      %v2893 = vpack.c.b16 %v2089, %v2086
      %v2894 = vpack.c.b16 %v2093, %v2090
      %v2895 = vpack.c.b16 %v2094, %v2091
      %v2896 = vpack.c.b16 %v2095, %v2092
      %v2897 = vpack.c.b16 %v2099, %v2096
      %v2898 = vpack.c.b16 %v2100, %v2097
      %v2899 = vpack.c.b16 %v2101, %v2098
      %v2900 = vpack.c.b16 %v2105, %v2102
      %v2901 = vpack.c.b16 %v2106, %v2103
      %v2902 = vpack.c.b16 %v2107, %v2104
      %v2903 = vpack.c.b16 %v2111, %v2108
      %v2904 = vpack.c.b16 %v2112, %v2109
      %v2905 = vpack.c.b16 %v2113, %v2110
      %v2906 = vpack.c.b16 %v2117, %v2114
      %v2907 = vpack.c.b16 %v2118, %v2115
      %v2908 = vpack.c.b16 %v2119, %v2116
      %v2909 = vpack.c.b16 %v2123, %v2120
      %v2910 = vpack.c.b16 %v2124, %v2121
      %v2911 = vpack.c.b16 %v2125, %v2122
      %v2912 = vpack.c.b16 %v2129, %v2126
      %v2913 = vpack.c.b16 %v2130, %v2127
      %v2914 = vpack.c.b16 %v2131, %v2128
      %v2915 = vpack.c.b16 %v2135, %v2132
      %v2916 = vpack.c.b16 %v2136, %v2133
      %v2917 = vpack.c.b16 %v2137, %v2134
      %v2918 = vpack.c.b16 %v2141, %v2138
      %v2919 = vpack.c.b16 %v2142, %v2139
      %v2920 = vpack.c.b16 %v2143, %v2140
      %v2921 = vpack.c.b16 %v2147, %v2144
      %v2922 = vpack.c.b16 %v2148, %v2145
      %v2923 = vpack.c.b16 %v2149, %v2146
      %v2924 = vpack.c.b16 %v2153, %v2150
      %v2925 = vpack.c.b16 %v2154, %v2151
      %v2926 = vpack.c.b16 %v2155, %v2152
      %v2927 = vpack.c.b16 %v2159, %v2156
      %v2928 = vpack.c.b16 %v2160, %v2157
      %v2929 = vpack.c.b16 %v2161, %v2158
      %v2930 = vpack.c.b16 %v2165, %v2162
      %v2931 = vpack.c.b16 %v2166, %v2163
      %v2932 = vpack.c.b16 %v2167, %v2164
      %v2933 = vpack.c.b16 %v2171, %v2168
      %v2934 = vpack.c.b16 %v2172, %v2169
      %v2935 = vpack.c.b16 %v2173, %v2170
      %v2936 = vpack.c.b16 %v2177, %v2174
      %v2937 = vpack.c.b16 %v2178, %v2175
      %v2938 = vpack.c.b16 %v2179, %v2176
      %v2939 = vpack.c.b16 %v2183, %v2180
      %v2940 = vpack.c.b16 %v2184, %v2181
      %v2941 = vpack.c.b16 %v2185, %v2182
      %v2942 = vpack.c.b16 %v2189, %v2186
      %v2943 = vpack.c.b16 %v2190, %v2187
      %v2944 = vpack.c.b16 %v2191, %v2188
      %v2945 = vpack.c.b16 %v2195, %v2192
      %v2946 = vpack.c.b16 %v2196, %v2193
      %v2947 = vpack.c.b16 %v2197, %v2194
      %v2948 = vpack.c.b16 %v2201, %v2198
      %v2949 = vpack.c.b16 %v2202, %v2199
      %v2950 = vpack.c.b16 %v2203, %v2200
      %v2951 = vpack.c.b16 %v2207, %v2204
      %v2952 = vpack.c.b16 %v2208, %v2205
      %v2953 = vpack.c.b16 %v2209, %v2206
      %v2954 = vpack.c.b16 %v2213, %v2210
      %v2955 = vpack.c.b16 %v2214, %v2211
      %v2956 = vpack.c.b16 %v2215, %v2212
      %v2957 = vpack.c.b16 %v2219, %v2216
      %v2958 = vpack.c.b16 %v2220, %v2217
      %v2959 = vpack.c.b16 %v2221, %v2218
      %v2960 = vpack.c.b16 %v2225, %v2222
      %v2961 = vpack.c.b16 %v2226, %v2223
      %v2962 = vpack.c.b16 %v2227, %v2224
      %v2963 = vpack.c.b16 %v2231, %v2228
      %v2964 = vpack.c.b16 %v2232, %v2229
      %v2965 = vpack.c.b16 %v2233, %v2230
      %v2966 = vpack.c.b16 %v2237, %v2234
      %v2967 = vpack.c.b16 %v2238, %v2235
      %v2968 = vpack.c.b16 %v2239, %v2236
      %v2969 = vpack.c.b16 %v2243, %v2240
      %v2970 = vpack.c.b16 %v2244, %v2241
      %v2971 = vpack.c.b16 %v2245, %v2242
      %v2972 = vpack.c.b16 %v2249, %v2246
      %v2973 = vpack.c.b16 %v2250, %v2247
      %v2974 = vpack.c.b16 %v2251, %v2248
      %v2975 = vpack.c.b16 %v2255, %v2252
      %v2976 = vpack.c.b16 %v2256, %v2253
      %v2977 = vpack.c.b16 %v2257, %v2254
      %v2978 = vpack.c.b16 %v2261, %v2258
      %v2979 = vpack.c.b16 %v2262, %v2259
      %v2980 = vpack.c.b16 %v2263, %v2260
      %v2981 = vpack.c.b16 %v2267, %v2264
      %v2982 = vpack.c.b16 %v2268, %v2265
      %v2983 = vpack.c.b16 %v2269, %v2266
      %v2984 = vpack.c.b16 %v2273, %v2270
      %v2985 = vpack.c.b16 %v2274, %v2271
      %v2986 = vpack.c.b16 %v2275, %v2272
      %v2987 = vpack.c.b16 %v2279, %v2276
      %v2988 = vpack.c.b16 %v2280, %v2277
      %v2989 = vpack.c.b16 %v2281, %v2278
      %v2990 = vpack.c.b16 %v2285, %v2282
      %v2991 = vpack.c.b16 %v2286, %v2283
      %v2992 = vpack.c.b16 %v2287, %v2284
      %v2993 = vpack.c.b16 %v2291, %v2288
      %v2994 = vpack.c.b16 %v2292, %v2289
      %v2995 = vpack.c.b16 %v2293, %v2290
      %v2996 = vpack.c.b16 %v2297, %v2294
      %v2997 = vpack.c.b16 %v2298, %v2295
      %v2998 = vpack.c.b16 %v2299, %v2296
      %v2999 = vpack.c.b16 %v2303, %v2300
      %v3000 = vpack.c.b16 %v2304, %v2301
      %v3001 = vpack.c.b16 %v2305, %v2302
      %v3002 = vpack.c.b16 %v2309, %v2306
      %v3003 = vpack.c.b16 %v2310, %v2307
      %v3004 = vpack.c.b16 %v2311, %v2308
      %v3005 = vpack.c.b16 %v2315, %v2312
      %v3006 = vpack.c.b16 %v2316, %v2313
      %v3007 = vpack.c.b16 %v2317, %v2314
      %v3008 = vpack.c.b16 %v2321, %v2318
      %v3009 = vpack.c.b16 %v2322, %v2319
      %v3010 = vpack.c.b16 %v2323, %v2320
      %v3011 = vpack.c.b16 %v2327, %v2324
      %v3012 = vpack.c.b16 %v2328, %v2325
      %v3013 = vpack.c.b16 %v2329, %v2326
      %v3014 = vpack.c.b16 %v2333, %v2330
      %v3015 = vpack.c.b16 %v2334, %v2331
      %v3016 = vpack.c.b16 %v2335, %v2332
      %v3017 = vpack.c.b16 %v2339, %v2336
      %v3018 = vpack.c.b16 %v2340, %v2337
      %v3019 = vpack.c.b16 %v2341, %v2338
      %v3020 = vpack.c.b16 %v2345, %v2342
      %v3021 = vpack.c.b16 %v2346, %v2343
      %v3022 = vpack.c.b16 %v2347, %v2344
      %v3023 = vpack.c.b16 %v2351, %v2348
      %v3024 = vpack.c.b16 %v2352, %v2349
      %v3025 = vpack.c.b16 %v2353, %v2350
      %v3026 = vpack.c.b16 %v2357, %v2354
      %v3027 = vpack.c.b16 %v2358, %v2355
      %v3028 = vpack.c.b16 %v2359, %v2356
      %v3029 = vpack.c.b16 %v2363, %v2360
      %v3030 = vpack.c.b16 %v2364, %v2361
      %v3031 = vpack.c.b16 %v2365, %v2362
      %v3032 = vpack.c.b16 %v2369, %v2366
      %v3033 = vpack.c.b16 %v2370, %v2367
      %v3034 = vpack.c.b16 %v2371, %v2368
      %v3035 = vpack.c.b16 %v2375, %v2372
      %v3036 = vpack.c.b16 %v2376, %v2373
      %v3037 = vpack.c.b16 %v2377, %v2374
      %v3038 = vpack.c.b16 %v2381, %v2378
      %v3039 = vpack.c.b16 %v2382, %v2379
      %v3040 = vpack.c.b16 %v2383, %v2380
      %v3041 = vpack.c.b16 %v2387, %v2384
      %v3042 = vpack.c.b16 %v2388, %v2385
      %v3043 = vpack.c.b16 %v2389, %v2386
      %v3044 = vpack.c.b16 %v2393, %v2390
      %v3045 = vpack.c.b16 %v2394, %v2391
      %v3046 = vpack.c.b16 %v2395, %v2392
      %v3047 = vpack.c.b16 %v2399, %v2396
      %v3048 = vpack.c.b16 %v2400, %v2397
      %v3049 = vpack.c.b16 %v2401, %v2398
      %v3050 = vpack.c.b16 %v2405, %v2402
      %v3051 = vpack.c.b16 %v2406, %v2403
      %v3052 = vpack.c.b16 %v2407, %v2404
      %v3053 = vpack.c.b16 %v2411, %v2408
      %v3054 = vpack.c.b16 %v2412, %v2409
      %v3055 = vpack.c.b16 %v2413, %v2410
      %v3056 = vpack.c.b16 %v2417, %v2414
      %v3057 = vpack.c.b16 %v2418, %v2415
      %v3058 = vpack.c.b16 %v2419, %v2416
      %v3059 = vpack.c.b16 %v2423, %v2420
      %v3060 = vpack.c.b16 %v2424, %v2421
      %v3061 = vpack.c.b16 %v2425, %v2422
      %v3062 = vpack.c.b16 %v2429, %v2426
      %v3063 = vpack.c.b16 %v2430, %v2427
      %v3064 = vpack.c.b16 %v2431, %v2428
      %v3065 = vpack.c.b16 %v2435, %v2432
      %v3066 = vpack.c.b16 %v2436, %v2433
      %v3067 = vpack.c.b16 %v2437, %v2434
      %v3068 = vpack.c.b16 %v2441, %v2438
      %v3069 = vpack.c.b16 %v2442, %v2439
      %v3070 = vpack.c.b16 %v2443, %v2440
      %v3071 = vpack.c.b16 %v2447, %v2444
      %v3072 = vpack.c.b16 %v2448, %v2445
      %v3073 = vpack.c.b16 %v2449, %v2446
      %v3074 = vpack.c.b16 %v2453, %v2450
      %v3075 = vpack.c.b16 %v2454, %v2451
      %v3076 = vpack.c.b16 %v2455, %v2452
      %v3077 = vpack.c.b16 %v2459, %v2456
      %v3078 = vpack.c.b16 %v2460, %v2457
      %v3079 = vpack.c.b16 %v2461, %v2458
      %v3080 = vpack.c.b16 %v2465, %v2462
      %v3081 = vpack.c.b16 %v2466, %v2463
      %v3082 = vpack.c.b16 %v2467, %v2464
      %v3083 = vpack.c.b16 %v2471, %v2468
      %v3084 = vpack.c.b16 %v2472, %v2469
      %v3085 = vpack.c.b16 %v2473, %v2470
      %v3086 = vpack.c.b16 %v2477, %v2474
      %v3087 = vpack.c.b16 %v2478, %v2475
      %v3088 = vpack.c.b16 %v2479, %v2476
      %v3089 = vpack.c.b16 %v2483, %v2480
      %v3090 = vpack.c.b16 %v2484, %v2481
      %v3091 = vpack.c.b16 %v2485, %v2482
      %v3092 = vpack.c.b16 %v2489, %v2486
      %v3093 = vpack.c.b16 %v2490, %v2487
      %v3094 = vpack.c.b16 %v2491, %v2488
      %v3095 = vpack.c.b16 %v2495, %v2492
      %v3096 = vpack.c.b16 %v2496, %v2493
      %v3097 = vpack.c.b16 %v2497, %v2494
      %v3098 = vpack.c.b16 %v2501, %v2498
      %v3099 = vpack.c.b16 %v2502, %v2499
      %v3100 = vpack.c.b16 %v2503, %v2500
      %v3101 = vpack.c.b16 %v2507, %v2504
      %v3102 = vpack.c.b16 %v2508, %v2505
      %v3103 = vpack.c.b16 %v2509, %v2506
      %v3104 = vpack.c.b16 %v2513, %v2510
      %v3105 = vpack.c.b16 %v2514, %v2511
      %v3106 = vpack.c.b16 %v2515, %v2512
      %v3107 = vpack.c.b16 %v2519, %v2516
      %v3108 = vpack.c.b16 %v2520, %v2517
      %v3109 = vpack.c.b16 %v2521, %v2518
      %v3110 = vpack.c.b16 %v2525, %v2522
      %v3111 = vpack.c.b16 %v2526, %v2523
      %v3112 = vpack.c.b16 %v2527, %v2524
      %v3113 = vpack.c.b16 %v2531, %v2528
      %v3114 = vpack.c.b16 %v2532, %v2529
      %v3115 = vpack.c.b16 %v2533, %v2530
      %v3116 = vpack.c.b16 %v2537, %v2534
      %v3117 = vpack.c.b16 %v2538, %v2535
      %v3118 = vpack.c.b16 %v2539, %v2536
      %v3119 = vpack.c.b16 %v2543, %v2540
      %v3120 = vpack.c.b16 %v2544, %v2541
      %v3121 = vpack.c.b16 %v2545, %v2542
      %v3122 = vpack.c.b16 %v2549, %v2546
      %v3123 = vpack.c.b16 %v2550, %v2547
      %v3124 = vpack.c.b16 %v2551, %v2548
      %v3125 = vpack.c.b16 %v2555, %v2552
      %v3126 = vpack.c.b16 %v2556, %v2553
      %v3127 = vpack.c.b16 %v2557, %v2554
      %v3128 = vpack.c.b16 %v2561, %v2558
      %v3129 = vpack.c.b16 %v2562, %v2559
      %v3130 = vpack.c.b16 %v2563, %v2560
      %v3131 = vpack.c.b16 %v2567, %v2564
      %v3132 = vpack.c.b16 %v2568, %v2565
      %v3133 = vpack.c.b16 %v2569, %v2566
      %v3134 = vpack.c.b16 %v2573, %v2570
      %v3135 = vpack.c.b16 %v2574, %v2571
      %v3136 = vpack.c.b16 %v2575, %v2572
      %v3137 = vpack.c.b16 %v2579, %v2576
      %v3138 = vpack.c.b16 %v2580, %v2577
      %v3139 = vpack.c.b16 %v2581, %v2578
      %v3140 = vpack.c.b16 %v2585, %v2582
      %v3141 = vpack.c.b16 %v2586, %v2583
      %v3142 = vpack.c.b16 %v2587, %v2584
      %v3143 = vpack.c.b16 %v2591, %v2588
      %v3144 = vpack.c.b16 %v2592, %v2589
      %v3145 = vpack.c.b16 %v2593, %v2590
      %v3146 = vpack.c.b16 %v2597, %v2594
      %v3147 = vpack.c.b16 %v2598, %v2595
      %v3148 = vpack.c.b16 %v2599, %v2596
      %v3149 = vpack.c.b16 %v2603, %v2600
      %v3150 = vpack.c.b16 %v2604, %v2601
      %v3151 = vpack.c.b16 %v2605, %v2602
      %v3152 = vpack.c.b16 %v2609, %v2606
      %v3153 = vpack.c.b16 %v2610, %v2607
      %v3154 = vpack.c.b16 %v2611, %v2608
      %v3155 = vpack.c.b16 %v2615, %v2612
      %v3156 = vpack.c.b16 %v2616, %v2613
      %v3157 = vpack.c.b16 %v2617, %v2614
      %v3158 = vpack.c.b16 %v2621, %v2618
      %v3159 = vpack.c.b16 %v2622, %v2619
      %v3160 = vpack.c.b16 %v2623, %v2620
      %v3161 = vpack.c.b16 %v2627, %v2624
      %v3162 = vpack.c.b16 %v2628, %v2625
      %v3163 = vpack.c.b16 %v2629, %v2626
      %v3164 = vpack.c.b16 %v2633, %v2630
      %v3165 = vpack.c.b16 %v2634, %v2631
      %v3166 = vpack.c.b16 %v2635, %v2632
      %v3167 = vpack.c.b16 %v2639, %v2636
      %v3168 = vpack.c.b16 %v2640, %v2637
      %v3169 = vpack.c.b16 %v2641, %v2638
      %v3170 = vpack.c.b16 %v2645, %v2642
      %v3171 = vpack.c.b16 %v2646, %v2643
      %v3172 = vpack.c.b16 %v2647, %v2644
      %v3173 = vpack.c.b16 %v2651, %v2648
      %v3174 = vpack.c.b16 %v2652, %v2649
      %v3175 = vpack.c.b16 %v2653, %v2650
      %v3176 = vpack.c.b16 %v2657, %v2654
      %v3177 = vpack.c.b16 %v2658, %v2655
      %v3178 = vpack.c.b16 %v2659, %v2656
      %v3179 = vpack.c.b16 %v2663, %v2660
      %v3180 = vpack.c.b16 %v2664, %v2661
      %v3181 = vpack.c.b16 %v2665, %v2662
      %v3182 = vpack.c.b16 %v2669, %v2666
      %v3183 = vpack.c.b16 %v2670, %v2667
      %v3184 = vpack.c.b16 %v2671, %v2668
      %v3185 = vpack.c.b16 %v2675, %v2672
      %v3186 = vpack.c.b16 %v2676, %v2673
      %v3187 = vpack.c.b16 %v2677, %v2674
      %v3188 = vpack.c.b16 %v2681, %v2678
      %v3189 = vpack.c.b16 %v2682, %v2679
      %v3190 = vpack.c.b16 %v2683, %v2680
      %v3191 = vpack.c.b16 %v2687, %v2684
      %v3192 = vpack.c.b16 %v2688, %v2685
      %v3193 = vpack.c.b16 %v2689, %v2686
      %v3194 = vpack.c.b16 %v2693, %v2690
      %v3195 = vpack.c.b16 %v2694, %v2691
      %v3196 = vpack.c.b16 %v2695, %v2692
      %v3197 = vpack.c.b16 %v2699, %v2696
      %v3198 = vpack.c.b16 %v2700, %v2697
      %v3199 = vpack.c.b16 %v2701, %v2698
      %v3200 = vpack.c.b16 %v2705, %v2702
      %v3201 = vpack.c.b16 %v2706, %v2703
      %v3202 = vpack.c.b16 %v2707, %v2704
      %v3203 = vpack.c.b16 %v2711, %v2708
      %v3204 = vpack.c.b16 %v2712, %v2709
      %v3205 = vpack.c.b16 %v2713, %v2710
      %v3206 = vpack.c.b16 %v2717, %v2714
      %v3207 = vpack.c.b16 %v2718, %v2715
      %v3208 = vpack.c.b16 %v2719, %v2716
      %v3209 = vpack.c.b16 %v2723, %v2720
      %v3210 = vpack.c.b16 %v2724, %v2721
      %v3211 = vpack.c.b16 %v2725, %v2722
      %v3212 = vpack.c.b16 %v2729, %v2726
      %v3213 = vpack.c.b16 %v2730, %v2727
      %v3214 = vpack.c.b16 %v2731, %v2728
      %v3215 = vpack.c.b16 %v2735, %v2732
      %v3216 = vpack.c.b16 %v2736, %v2733
      %v3217 = vpack.c.b16 %v2737, %v2734
      %3698 = vmatprep.subr.bf16.mxu0 %v2739
      %3699 = vmatpush1.bf16.msra.mxu0 %v2738
      %3700 = vmatprep.subr.bf16.mxu0 %v2742
      %3701 = vmatpush1.bf16.msra.mxu0 %v2741
      %3702 = vmatprep.subr.bf16.mxu0 %v2745
      %3703 = vmatpush1.bf16.msra.mxu0 %v2744
      %3704 = vmatprep.subr.bf16.mxu0 %v2748
      %3705 = vmatpush1.bf16.msra.mxu0 %v2747
      %3706 = vmatprep.subr.bf16.mxu0 %v2751
      %3707 = vmatpush1.bf16.msra.mxu0 %v2750
      %3708 = vmatprep.subr.bf16.mxu0 %v2754
      %3709 = vmatpush1.bf16.msra.mxu0 %v2753
      %3710 = vmatprep.subr.bf16.mxu0 %v2757
      %3711 = vmatpush1.bf16.msra.mxu0 %v2756
      %3712 = vmatprep.subr.bf16.mxu0 %v2760
      %3713 = vmatpush1.bf16.msra.mxu0 %v2759
      %3714 = vmatprep.subr.bf16.mxu0 %v2763
      %3715 = vmatpush1.bf16.msra.mxu0 %v2762
      %3716 = vmatprep.subr.bf16.mxu0 %v2766
      %3717 = vmatpush1.bf16.msra.mxu0 %v2765
      %3718 = vmatprep.subr.bf16.mxu0 %v2769
      %3719 = vmatpush1.bf16.msra.mxu0 %v2768
      %3720 = vmatprep.subr.bf16.mxu0 %v2772
      %3721 = vmatpush1.bf16.msra.mxu0 %v2771
      %3722 = vmatprep.subr.bf16.mxu0 %v2775
      %3723 = vmatpush1.bf16.msra.mxu0 %v2774
      %3724 = vmatprep.subr.bf16.mxu0 %v2778
      %3725 = vmatpush1.bf16.msra.mxu0 %v2777
      %3726 = vmatprep.subr.bf16.mxu0 %v2781
      %3727 = vmatpush1.bf16.msra.mxu0 %v2780
      %3728 = vmatprep.subr.bf16.mxu0 %v2784
      %3729 = vmatpush1.bf16.msra.mxu0 %v2783
      %3730 = vmatprep.mubr.bf16.mxu0 %v1033
      %3731 = vmatmul.mubr.bf16.gmra.mrb[0].mxu0 %v1019
      %v3732 = vpop.f32.mrb[0].mxu0
      %v3733 = vadd.f32 %v981, %v3732
      %v3734 = vpop.f32.mrb[0].mxu0
      %v3735 = vadd.f32 %v985, %v3734
      %v3736 = vpop.f32.mrb[0].mxu0
      %v3737 = vpop.f32.mrb[0].mxu0
      %3738 = vdwg.mxu0
      %3739 = vmatprep.subr.bf16.mxu0 %v2787
      %3740 = vmatpush1.bf16.msra.mxu0 %v2786
      %3741 = vmatprep.subr.bf16.mxu0 %v2790
      %3742 = vmatpush1.bf16.msra.mxu0 %v2789
      %3743 = vmatprep.subr.bf16.mxu0 %v2793
      %3744 = vmatpush1.bf16.msra.mxu0 %v2792
      %3745 = vmatprep.subr.bf16.mxu0 %v2796
      %3746 = vmatpush1.bf16.msra.mxu0 %v2795
      %3747 = vmatprep.subr.bf16.mxu0 %v2799
      %3748 = vmatpush1.bf16.msra.mxu0 %v2798
      %3749 = vmatprep.subr.bf16.mxu0 %v2802
      %3750 = vmatpush1.bf16.msra.mxu0 %v2801
      %3751 = vmatprep.subr.bf16.mxu0 %v2805
      %3752 = vmatpush1.bf16.msra.mxu0 %v2804
      %3753 = vmatprep.subr.bf16.mxu0 %v2808
      %3754 = vmatpush1.bf16.msra.mxu0 %v2807
      %3755 = vmatprep.subr.bf16.mxu0 %v2811
      %3756 = vmatpush1.bf16.msra.mxu0 %v2810
      %3757 = vmatprep.subr.bf16.mxu0 %v2814
      %3758 = vmatpush1.bf16.msra.mxu0 %v2813
      %3759 = vmatprep.subr.bf16.mxu0 %v2817
      %3760 = vmatpush1.bf16.msra.mxu0 %v2816
      %3761 = vmatprep.subr.bf16.mxu0 %v2820
      %3762 = vmatpush1.bf16.msra.mxu0 %v2819
      %3763 = vmatprep.subr.bf16.mxu0 %v2823
      %3764 = vmatpush1.bf16.msra.mxu0 %v2822
      %3765 = vmatprep.subr.bf16.mxu0 %v2826
      %3766 = vmatpush1.bf16.msra.mxu0 %v2825
      %3767 = vmatprep.subr.bf16.mxu0 %v2829
      %3768 = vmatpush1.bf16.msra.mxu0 %v2828
      %3769 = vmatprep.subr.bf16.mxu0 %v2832
      %3770 = vmatpush1.bf16.msra.mxu0 %v2831
      %3771 = vmatprep.mubr.bf16.mxu0 %v1043
      %3772 = vmatmul.mubr.bf16.gmra.mrb[0].mxu0 %v1041
      %v3773 = vpop.f32.mrb[0].mxu0
      %v3774 = vadd.f32 %v3733, %v3773
      %v3775 = vpop.f32.mrb[0].mxu0
      %v3776 = vadd.f32 %v3735, %v3775
      %v3777 = vpop.f32.mrb[0].mxu0
      %v3778 = vpop.f32.mrb[0].mxu0
      %3779 = vdwg.mxu0
      %3780 = vmatprep.subr.bf16.mxu0 %v2835
      %3781 = vmatpush1.bf16.msra.mxu0 %v2834
      %3782 = vmatprep.subr.bf16.mxu0 %v2838
      %3783 = vmatpush1.bf16.msra.mxu0 %v2837
      %3784 = vmatprep.subr.bf16.mxu0 %v2841
      %3785 = vmatpush1.bf16.msra.mxu0 %v2840
      %3786 = vmatprep.subr.bf16.mxu0 %v2844
      %3787 = vmatpush1.bf16.msra.mxu0 %v2843
      %3788 = vmatprep.subr.bf16.mxu0 %v2847
      %3789 = vmatpush1.bf16.msra.mxu0 %v2846
      %3790 = vmatprep.subr.bf16.mxu0 %v2850
      %3791 = vmatpush1.bf16.msra.mxu0 %v2849
      %3792 = vmatprep.subr.bf16.mxu0 %v2853
      %3793 = vmatpush1.bf16.msra.mxu0 %v2852
      %3794 = vmatprep.subr.bf16.mxu0 %v2856
      %3795 = vmatpush1.bf16.msra.mxu0 %v2855
      %3796 = vmatprep.subr.bf16.mxu0 %v2859
      %3797 = vmatpush1.bf16.msra.mxu0 %v2858
      %3798 = vmatprep.subr.bf16.mxu0 %v2862
      %3799 = vmatpush1.bf16.msra.mxu0 %v2861
      %3800 = vmatprep.subr.bf16.mxu0 %v2865
      %3801 = vmatpush1.bf16.msra.mxu0 %v2864
      %3802 = vmatprep.subr.bf16.mxu0 %v2868
      %3803 = vmatpush1.bf16.msra.mxu0 %v2867
      %3804 = vmatprep.subr.bf16.mxu0 %v2871
      %3805 = vmatpush1.bf16.msra.mxu0 %v2870
      %3806 = vmatprep.subr.bf16.mxu0 %v2874
      %3807 = vmatpush1.bf16.msra.mxu0 %v2873
      %3808 = vmatprep.subr.bf16.mxu0 %v2877
      %3809 = vmatpush1.bf16.msra.mxu0 %v2876
      %3810 = vmatprep.subr.bf16.mxu0 %v2880
      %3811 = vmatpush1.bf16.msra.mxu0 %v2879
      %3812 = vmatprep.mubr.bf16.mxu0 %v1040
      %3813 = vmatmul.mubr.bf16.gmra.mrb[0].mxu0 %v1026
      %v3814 = vpop.f32.mrb[0].mxu0
      %v3815 = vadd.f32 %v3774, %v3814
      %v3816 = vpop.f32.mrb[0].mxu0
      %v3817 = vadd.f32 %v3776, %v3816
      %v3818 = vpop.f32.mrb[0].mxu0
      %v3819 = vpop.f32.mrb[0].mxu0
      %3820 = vdwg.mxu0
      %3821 = vmatprep.subr.bf16.mxu0 %v2883
      %3822 = vmatpush1.bf16.msra.mxu0 %v2882
      %3823 = vmatprep.subr.bf16.mxu0 %v2886
      %3824 = vmatpush1.bf16.msra.mxu0 %v2885
      %3825 = vmatprep.subr.bf16.mxu0 %v2889
      %3826 = vmatpush1.bf16.msra.mxu0 %v2888
      %3827 = vmatprep.subr.bf16.mxu0 %v2892
      %3828 = vmatpush1.bf16.msra.mxu0 %v2891
      %3829 = vmatprep.subr.bf16.mxu0 %v2895
      %3830 = vmatpush1.bf16.msra.mxu0 %v2894
      %3831 = vmatprep.subr.bf16.mxu0 %v2898
      %3832 = vmatpush1.bf16.msra.mxu0 %v2897
      %3833 = vmatprep.subr.bf16.mxu0 %v2901
      %3834 = vmatpush1.bf16.msra.mxu0 %v2900
      %3835 = vmatprep.subr.bf16.mxu0 %v2904
      %3836 = vmatpush1.bf16.msra.mxu0 %v2903
      %3837 = vmatprep.subr.bf16.mxu0 %v2907
      %3838 = vmatpush1.bf16.msra.mxu0 %v2906
      %3839 = vmatprep.subr.bf16.mxu0 %v2910
      %3840 = vmatpush1.bf16.msra.mxu0 %v2909
      %3841 = vmatprep.subr.bf16.mxu0 %v2913
      %3842 = vmatpush1.bf16.msra.mxu0 %v2912
      %3843 = vmatprep.subr.bf16.mxu0 %v2916
      %3844 = vmatpush1.bf16.msra.mxu0 %v2915
      %3845 = vmatprep.subr.bf16.mxu0 %v2919
      %3846 = vmatpush1.bf16.msra.mxu0 %v2918
      %3847 = vmatprep.subr.bf16.mxu0 %v2922
      %3848 = vmatpush1.bf16.msra.mxu0 %v2921
      %3849 = vmatprep.subr.bf16.mxu0 %v2925
      %3850 = vmatpush1.bf16.msra.mxu0 %v2924
      %3851 = vmatprep.subr.bf16.mxu0 %v2928
      %3852 = vmatpush1.bf16.msra.mxu0 %v2927
      %3853 = vmatprep.mubr.bf16.mxu0 %v1044
      %3854 = vmatmul.mubr.bf16.gmra.mrb[0].mxu0 %v1042
      %v3855 = vpop.f32.mrb[0].mxu0
      %v3856 = vadd.f32 %v3815, %v3855
      %v3857 = vpop.f32.mrb[0].mxu0
      %v3858 = vadd.f32 %v3817, %v3857
      %v3859 = vpop.f32.mrb[0].mxu0
      %v3860 = vpop.f32.mrb[0].mxu0
      %3861 = vdwg.mxu0
      %3862 = vmatprep.subr.bf16.mxu0 %v2931
      %3863 = vmatpush1.bf16.msra.mxu0 %v2930
      %3864 = vmatprep.subr.bf16.mxu0 %v2934
      %3865 = vmatpush1.bf16.msra.mxu0 %v2933
      %3866 = vmatprep.subr.bf16.mxu0 %v2937
      %3867 = vmatpush1.bf16.msra.mxu0 %v2936
      %3868 = vmatprep.subr.bf16.mxu0 %v2940
      %3869 = vmatpush1.bf16.msra.mxu0 %v2939
      %3870 = vmatprep.subr.bf16.mxu0 %v2943
      %3871 = vmatpush1.bf16.msra.mxu0 %v2942
      %3872 = vmatprep.subr.bf16.mxu0 %v2946
      %3873 = vmatpush1.bf16.msra.mxu0 %v2945
      %3874 = vmatprep.subr.bf16.mxu0 %v2949
      %3875 = vmatpush1.bf16.msra.mxu0 %v2948
      %3876 = vmatprep.subr.bf16.mxu0 %v2952
      %3877 = vmatpush1.bf16.msra.mxu0 %v2951
      %3878 = vmatprep.subr.bf16.mxu0 %v2955
      %3879 = vmatpush1.bf16.msra.mxu0 %v2954
      %3880 = vmatprep.subr.bf16.mxu0 %v2958
      %3881 = vmatpush1.bf16.msra.mxu0 %v2957
      %3882 = vmatprep.subr.bf16.mxu0 %v2961
      %3883 = vmatpush1.bf16.msra.mxu0 %v2960
      %3884 = vmatprep.subr.bf16.mxu0 %v2964
      %3885 = vmatpush1.bf16.msra.mxu0 %v2963
      %3886 = vmatprep.subr.bf16.mxu0 %v2967
      %3887 = vmatpush1.bf16.msra.mxu0 %v2966
      %3888 = vmatprep.subr.bf16.mxu0 %v2970
      %3889 = vmatpush1.bf16.msra.mxu0 %v2969
      %3890 = vmatprep.subr.bf16.mxu0 %v2973
      %3891 = vmatpush1.bf16.msra.mxu0 %v2972
      %3892 = vmatprep.subr.bf16.mxu0 %v2976
      %3893 = vmatpush1.bf16.msra.mxu0 %v2975
      %3894 = vmatprep.mubr.bf16.mxu0 %v1082
      %3895 = vmatmul.mubr.bf16.gmra.mrb[0].mxu0 %v1068
      %v3896 = vpop.f32.mrb[0].mxu0
      %v3897 = vadd.f32 %v3856, %v3896
      %v3898 = vpop.f32.mrb[0].mxu0
      %v3899 = vadd.f32 %v3858, %v3898
      %v3900 = vpop.f32.mrb[0].mxu0
      %v3901 = vpop.f32.mrb[0].mxu0
      %3902 = vdwg.mxu0
      %3903 = vmatprep.subr.bf16.mxu0 %v2979
      %3904 = vmatpush1.bf16.msra.mxu0 %v2978
      %3905 = vmatprep.subr.bf16.mxu0 %v2982
      %3906 = vmatpush1.bf16.msra.mxu0 %v2981
      %3907 = vmatprep.subr.bf16.mxu0 %v2985
      %3908 = vmatpush1.bf16.msra.mxu0 %v2984
      %3909 = vmatprep.subr.bf16.mxu0 %v2988
      %3910 = vmatpush1.bf16.msra.mxu0 %v2987
      %3911 = vmatprep.subr.bf16.mxu0 %v2991
      %3912 = vmatpush1.bf16.msra.mxu0 %v2990
      %3913 = vmatprep.subr.bf16.mxu0 %v2994
      %3914 = vmatpush1.bf16.msra.mxu0 %v2993
      %3915 = vmatprep.subr.bf16.mxu0 %v2997
      %3916 = vmatpush1.bf16.msra.mxu0 %v2996
      %3917 = vmatprep.subr.bf16.mxu0 %v3000
      %3918 = vmatpush1.bf16.msra.mxu0 %v2999
      %3919 = vmatprep.subr.bf16.mxu0 %v3003
      %3920 = vmatpush1.bf16.msra.mxu0 %v3002
      %3921 = vmatprep.subr.bf16.mxu0 %v3006
      %3922 = vmatpush1.bf16.msra.mxu0 %v3005
      %3923 = vmatprep.subr.bf16.mxu0 %v3009
      %3924 = vmatpush1.bf16.msra.mxu0 %v3008
      %3925 = vmatprep.subr.bf16.mxu0 %v3012
      %3926 = vmatpush1.bf16.msra.mxu0 %v3011
      %3927 = vmatprep.subr.bf16.mxu0 %v3015
      %3928 = vmatpush1.bf16.msra.mxu0 %v3014
      %3929 = vmatprep.subr.bf16.mxu0 %v3018
      %3930 = vmatpush1.bf16.msra.mxu0 %v3017
      %3931 = vmatprep.subr.bf16.mxu0 %v3021
      %3932 = vmatpush1.bf16.msra.mxu0 %v3020
      %3933 = vmatprep.subr.bf16.mxu0 %v3024
      %3934 = vmatpush1.bf16.msra.mxu0 %v3023
      %3935 = vmatprep.mubr.bf16.mxu0 %v1092
      %3936 = vmatmul.mubr.bf16.gmra.mrb[0].mxu0 %v1090
      %v3937 = vpop.f32.mrb[0].mxu0
      %v3938 = vadd.f32 %v3897, %v3937
      %v3939 = vpop.f32.mrb[0].mxu0
      %v3940 = vadd.f32 %v3899, %v3939
      %v3941 = vpop.f32.mrb[0].mxu0
      %v3942 = vpop.f32.mrb[0].mxu0
      %3943 = vdwg.mxu0
      %3944 = vmatprep.subr.bf16.mxu0 %v3027
      %3945 = vmatpush1.bf16.msra.mxu0 %v3026
      %3946 = vmatprep.subr.bf16.mxu0 %v3030
      %3947 = vmatpush1.bf16.msra.mxu0 %v3029
      %3948 = vmatprep.subr.bf16.mxu0 %v3033
      %3949 = vmatpush1.bf16.msra.mxu0 %v3032
      %3950 = vmatprep.subr.bf16.mxu0 %v3036
      %3951 = vmatpush1.bf16.msra.mxu0 %v3035
      %3952 = vmatprep.subr.bf16.mxu0 %v3039
      %3953 = vmatpush1.bf16.msra.mxu0 %v3038
      %3954 = vmatprep.subr.bf16.mxu0 %v3042
      %3955 = vmatpush1.bf16.msra.mxu0 %v3041
      %3956 = vmatprep.subr.bf16.mxu0 %v3045
      %3957 = vmatpush1.bf16.msra.mxu0 %v3044
      %3958 = vmatprep.subr.bf16.mxu0 %v3048
      %3959 = vmatpush1.bf16.msra.mxu0 %v3047
      %3960 = vmatprep.subr.bf16.mxu0 %v3051
      %3961 = vmatpush1.bf16.msra.mxu0 %v3050
      %3962 = vmatprep.subr.bf16.mxu0 %v3054
      %3963 = vmatpush1.bf16.msra.mxu0 %v3053
      %3964 = vmatprep.subr.bf16.mxu0 %v3057
      %3965 = vmatpush1.bf16.msra.mxu0 %v3056
      %3966 = vmatprep.subr.bf16.mxu0 %v3060
      %3967 = vmatpush1.bf16.msra.mxu0 %v3059
      %3968 = vmatprep.subr.bf16.mxu0 %v3063
      %3969 = vmatpush1.bf16.msra.mxu0 %v3062
      %3970 = vmatprep.subr.bf16.mxu0 %v3066
      %3971 = vmatpush1.bf16.msra.mxu0 %v3065
      %3972 = vmatprep.subr.bf16.mxu0 %v3069
      %3973 = vmatpush1.bf16.msra.mxu0 %v3068
      %3974 = vmatprep.subr.bf16.mxu0 %v3072
      %3975 = vmatpush1.bf16.msra.mxu0 %v3071
      %3976 = vmatprep.mubr.bf16.mxu0 %v1089
      %3977 = vmatmul.mubr.bf16.gmra.mrb[0].mxu0 %v1075
      %v3978 = vpop.f32.mrb[0].mxu0
      %v3979 = vadd.f32 %v3938, %v3978
      %v3980 = vpop.f32.mrb[0].mxu0
      %v3981 = vadd.f32 %v3940, %v3980
      %v3982 = vpop.f32.mrb[0].mxu0
      %v3983 = vpop.f32.mrb[0].mxu0
      %3984 = vdwg.mxu0
      %3985 = vmatprep.subr.bf16.mxu0 %v3075
      %3986 = vmatpush1.bf16.msra.mxu0 %v3074
      %3987 = vmatprep.subr.bf16.mxu0 %v3078
      %3988 = vmatpush1.bf16.msra.mxu0 %v3077
      %3989 = vmatprep.subr.bf16.mxu0 %v3081
      %3990 = vmatpush1.bf16.msra.mxu0 %v3080
      %3991 = vmatprep.subr.bf16.mxu0 %v3084
      %3992 = vmatpush1.bf16.msra.mxu0 %v3083
      %3993 = vmatprep.subr.bf16.mxu0 %v3087
      %3994 = vmatpush1.bf16.msra.mxu0 %v3086
      %3995 = vmatprep.subr.bf16.mxu0 %v3090
      %3996 = vmatpush1.bf16.msra.mxu0 %v3089
      %3997 = vmatprep.subr.bf16.mxu0 %v3093
      %3998 = vmatpush1.bf16.msra.mxu0 %v3092
      %3999 = vmatprep.subr.bf16.mxu0 %v3096
      %4000 = vmatpush1.bf16.msra.mxu0 %v3095
      %4001 = vmatprep.subr.bf16.mxu0 %v3099
      %4002 = vmatpush1.bf16.msra.mxu0 %v3098
      %4003 = vmatprep.subr.bf16.mxu0 %v3102
      %4004 = vmatpush1.bf16.msra.mxu0 %v3101
      %4005 = vmatprep.subr.bf16.mxu0 %v3105
      %4006 = vmatpush1.bf16.msra.mxu0 %v3104
      %4007 = vmatprep.subr.bf16.mxu0 %v3108
      %4008 = vmatpush1.bf16.msra.mxu0 %v3107
      %4009 = vmatprep.subr.bf16.mxu0 %v3111
      %4010 = vmatpush1.bf16.msra.mxu0 %v3110
      %4011 = vmatprep.subr.bf16.mxu0 %v3114
      %4012 = vmatpush1.bf16.msra.mxu0 %v3113
      %4013 = vmatprep.subr.bf16.mxu0 %v3117
      %4014 = vmatpush1.bf16.msra.mxu0 %v3116
      %4015 = vmatprep.subr.bf16.mxu0 %v3120
      %4016 = vmatpush1.bf16.msra.mxu0 %v3119
      %4017 = vmatprep.mubr.bf16.mxu0 %v1093
      %4018 = vmatmul.mubr.bf16.gmra.mrb[0].mxu0 %v1091
      %v4019 = vpop.f32.mrb[0].mxu0
      %v4020 = vadd.f32 %v3979, %v4019
      %v4021 = vpop.f32.mrb[0].mxu0
      %v4022 = vadd.f32 %v3981, %v4021
      %v4023 = vpop.f32.mrb[0].mxu0
      %v4024 = vpop.f32.mrb[0].mxu0
      %4025 = vdwg.mxu0
      %4026 = vmatprep.subr.bf16.mxu0 %v3123
      %4027 = vmatpush1.bf16.msra.mxu0 %v3122
      %4028 = vmatprep.subr.bf16.mxu0 %v3126
      %4029 = vmatpush1.bf16.msra.mxu0 %v3125
      %4030 = vmatprep.subr.bf16.mxu0 %v3129
      %4031 = vmatpush1.bf16.msra.mxu0 %v3128
      %4032 = vmatprep.subr.bf16.mxu0 %v3132
      %4033 = vmatpush1.bf16.msra.mxu0 %v3131
      %4034 = vmatprep.subr.bf16.mxu0 %v3135
      %4035 = vmatpush1.bf16.msra.mxu0 %v3134
      %4036 = vmatprep.subr.bf16.mxu0 %v3138
      %4037 = vmatpush1.bf16.msra.mxu0 %v3137
      %4038 = vmatprep.subr.bf16.mxu0 %v3141
      %4039 = vmatpush1.bf16.msra.mxu0 %v3140
      %4040 = vmatprep.subr.bf16.mxu0 %v3144
      %4041 = vmatpush1.bf16.msra.mxu0 %v3143
      %4042 = vmatprep.subr.bf16.mxu0 %v3147
      %4043 = vmatpush1.bf16.msra.mxu0 %v3146
      %4044 = vmatprep.subr.bf16.mxu0 %v3150
      %4045 = vmatpush1.bf16.msra.mxu0 %v3149
      %4046 = vmatprep.subr.bf16.mxu0 %v3153
      %4047 = vmatpush1.bf16.msra.mxu0 %v3152
      %4048 = vmatprep.subr.bf16.mxu0 %v3156
      %4049 = vmatpush1.bf16.msra.mxu0 %v3155
      %4050 = vmatprep.subr.bf16.mxu0 %v3159
      %4051 = vmatpush1.bf16.msra.mxu0 %v3158
      %4052 = vmatprep.subr.bf16.mxu0 %v3162
      %4053 = vmatpush1.bf16.msra.mxu0 %v3161
      %4054 = vmatprep.subr.bf16.mxu0 %v3165
      %4055 = vmatpush1.bf16.msra.mxu0 %v3164
      %4056 = vmatprep.subr.bf16.mxu0 %v3168
      %4057 = vmatpush1.bf16.msra.mxu0 %v3167
      %4058 = vmatprep.mubr.bf16.mxu0 %v1115
      %4059 = vmatmul.mubr.bf16.gmra.mrb[0].mxu0 %v1108
      %v4060 = vpop.f32.mrb[0].mxu0
      %v4061 = vadd.f32 %v4020, %v4060
      %v4062 = vpop.f32.mrb[0].mxu0
      %v4063 = vadd.f32 %v4022, %v4062
      %v4064 = vpop.f32.mrb[0].mxu0
      %v4065 = vpop.f32.mrb[0].mxu0
      %4066 = vdwg.mxu0
      %4067 = vmatprep.subr.bf16.mxu0 %v3171
      %4068 = vmatpush1.bf16.msra.mxu0 %v3170
      %4069 = vmatprep.subr.bf16.mxu0 %v3174
      %4070 = vmatpush1.bf16.msra.mxu0 %v3173
      %4071 = vmatprep.subr.bf16.mxu0 %v3177
      %4072 = vmatpush1.bf16.msra.mxu0 %v3176
      %4073 = vmatprep.subr.bf16.mxu0 %v3180
      %4074 = vmatpush1.bf16.msra.mxu0 %v3179
      %4075 = vmatprep.subr.bf16.mxu0 %v3183
      %4076 = vmatpush1.bf16.msra.mxu0 %v3182
      %4077 = vmatprep.subr.bf16.mxu0 %v3186
      %4078 = vmatpush1.bf16.msra.mxu0 %v3185
      %4079 = vmatprep.subr.bf16.mxu0 %v3189
      %4080 = vmatpush1.bf16.msra.mxu0 %v3188
      %4081 = vmatprep.subr.bf16.mxu0 %v3192
      %4082 = vmatpush1.bf16.msra.mxu0 %v3191
      %4083 = vmatprep.subr.bf16.mxu0 %v3195
      %4084 = vmatpush1.bf16.msra.mxu0 %v3194
      %4085 = vmatprep.subr.bf16.mxu0 %v3198
      %4086 = vmatpush1.bf16.msra.mxu0 %v3197
      %4087 = vmatprep.subr.bf16.mxu0 %v3201
      %4088 = vmatpush1.bf16.msra.mxu0 %v3200
      %4089 = vmatprep.subr.bf16.mxu0 %v3204
      %4090 = vmatpush1.bf16.msra.mxu0 %v3203
      %4091 = vmatprep.subr.bf16.mxu0 %v3207
      %4092 = vmatpush1.bf16.msra.mxu0 %v3206
      %4093 = vmatprep.subr.bf16.mxu0 %v3210
      %4094 = vmatpush1.bf16.msra.mxu0 %v3209
      %4095 = vmatprep.subr.bf16.mxu0 %v3213
      %4096 = vmatpush1.bf16.msra.mxu0 %v3212
      %4097 = vmatprep.subr.bf16.mxu0 %v3216
      %4098 = vmatpush1.bf16.msra.mxu0 %v3215
      %4099 = vmatprep.mubr.bf16.mxu0 %v1117
      %4100 = vmatmul.mubr.bf16.gmra.mrb[0].mxu0 %v1116
      %v4101 = vpop.f32.mrb[0].mxu0
      %v4102 = vadd.f32 %v4061, %v4101
      %v4103 = vpop.f32.mrb[0].mxu0
      %v4104 = vadd.f32 %v4063, %v4103
      %v4105 = vpop.f32.mrb[0].mxu0
      %v4106 = vpop.f32.mrb[0].mxu0
      %4107 = vdwg.mxu0
      %4108 = vmatprep.subr.bf16.mxu0 0
      %4109 = vmatpush1.bf16.msra.mxu0 %v2740
      %4110 = vmatprep.subr.bf16.mxu0 0
      %4111 = vmatpush1.bf16.msra.mxu0 %v2743
      %4112 = vmatprep.subr.bf16.mxu0 0
      %4113 = vmatpush1.bf16.msra.mxu0 %v2746
      %4114 = vmatprep.subr.bf16.mxu0 0
      %4115 = vmatpush1.bf16.msra.mxu0 %v2749
      %4116 = vmatprep.subr.bf16.mxu0 0
      %4117 = vmatpush1.bf16.msra.mxu0 %v2752
      %4118 = vmatprep.subr.bf16.mxu0 0
      %4119 = vmatpush1.bf16.msra.mxu0 %v2755
      %4120 = vmatprep.subr.bf16.mxu0 0
      %4121 = vmatpush1.bf16.msra.mxu0 %v2758
      %4122 = vmatprep.subr.bf16.mxu0 0
      %4123 = vmatpush1.bf16.msra.mxu0 %v2761
      %4124 = vmatprep.subr.bf16.mxu0 0
      %4125 = vmatpush1.bf16.msra.mxu0 %v2764
      %4126 = vmatprep.subr.bf16.mxu0 0
      %4127 = vmatpush1.bf16.msra.mxu0 %v2767
      %4128 = vmatprep.subr.bf16.mxu0 0
      %4129 = vmatpush1.bf16.msra.mxu0 %v2770
      %4130 = vmatprep.subr.bf16.mxu0 0
      %4131 = vmatpush1.bf16.msra.mxu0 %v2773
      %4132 = vmatprep.subr.bf16.mxu0 0
      %4133 = vmatpush1.bf16.msra.mxu0 %v2776
      %4134 = vmatprep.subr.bf16.mxu0 0
      %4135 = vmatpush1.bf16.msra.mxu0 %v2779
      %4136 = vmatprep.subr.bf16.mxu0 0
      %4137 = vmatpush1.bf16.msra.mxu0 %v2782
      %4138 = vmatprep.subr.bf16.mxu0 0
      %4139 = vmatpush1.bf16.msra.mxu0 %v2785
      %4140 = vmatprep.mubr.bf16.mxu0 %v1033
      %4141 = vmatmul.mubr.bf16.gmra.mrb[0].mxu0 %v1019
      %v4142 = vpop.f32.mrb[0].mxu0
      %v4143 = vadd.f32 %v989, %v4142
      %v4144 = vpop.f32.mrb[0].mxu0
      %v4145 = vpop.f32.mrb[0].mxu0
      %v4146 = vpop.f32.mrb[0].mxu0
      %4147 = vdwg.mxu0
      %4148 = vmatprep.subr.bf16.mxu0 0
      %4149 = vmatpush1.bf16.msra.mxu0 %v2788
      %4150 = vmatprep.subr.bf16.mxu0 0
      %4151 = vmatpush1.bf16.msra.mxu0 %v2791
      %4152 = vmatprep.subr.bf16.mxu0 0
      %4153 = vmatpush1.bf16.msra.mxu0 %v2794
      %4154 = vmatprep.subr.bf16.mxu0 0
      %4155 = vmatpush1.bf16.msra.mxu0 %v2797
      %4156 = vmatprep.subr.bf16.mxu0 0
      %4157 = vmatpush1.bf16.msra.mxu0 %v2800
      %4158 = vmatprep.subr.bf16.mxu0 0
      %4159 = vmatpush1.bf16.msra.mxu0 %v2803
      %4160 = vmatprep.subr.bf16.mxu0 0
      %4161 = vmatpush1.bf16.msra.mxu0 %v2806
      %4162 = vmatprep.subr.bf16.mxu0 0
      %4163 = vmatpush1.bf16.msra.mxu0 %v2809
      %4164 = vmatprep.subr.bf16.mxu0 0
      %4165 = vmatpush1.bf16.msra.mxu0 %v2812
      %4166 = vmatprep.subr.bf16.mxu0 0
      %4167 = vmatpush1.bf16.msra.mxu0 %v2815
      %4168 = vmatprep.subr.bf16.mxu0 0
      %4169 = vmatpush1.bf16.msra.mxu0 %v2818
      %4170 = vmatprep.subr.bf16.mxu0 0
      %4171 = vmatpush1.bf16.msra.mxu0 %v2821
      %4172 = vmatprep.subr.bf16.mxu0 0
      %4173 = vmatpush1.bf16.msra.mxu0 %v2824
      %4174 = vmatprep.subr.bf16.mxu0 0
      %4175 = vmatpush1.bf16.msra.mxu0 %v2827
      %4176 = vmatprep.subr.bf16.mxu0 0
      %4177 = vmatpush1.bf16.msra.mxu0 %v2830
      %4178 = vmatprep.subr.bf16.mxu0 0
      %4179 = vmatpush1.bf16.msra.mxu0 %v2833
      %4180 = vmatprep.mubr.bf16.mxu0 %v1043
      %4181 = vmatmul.mubr.bf16.gmra.mrb[0].mxu0 %v1041
      %v4182 = vpop.f32.mrb[0].mxu0
      %v4183 = vadd.f32 %v4143, %v4182
      %v4184 = vpop.f32.mrb[0].mxu0
      %v4185 = vpop.f32.mrb[0].mxu0
      %v4186 = vpop.f32.mrb[0].mxu0
      %4187 = vdwg.mxu0
      %4188 = vmatprep.subr.bf16.mxu0 0
      %4189 = vmatpush1.bf16.msra.mxu0 %v2836
      %4190 = vmatprep.subr.bf16.mxu0 0
      %4191 = vmatpush1.bf16.msra.mxu0 %v2839
      %4192 = vmatprep.subr.bf16.mxu0 0
      %4193 = vmatpush1.bf16.msra.mxu0 %v2842
      %4194 = vmatprep.subr.bf16.mxu0 0
      %4195 = vmatpush1.bf16.msra.mxu0 %v2845
      %4196 = vmatprep.subr.bf16.mxu0 0
      %4197 = vmatpush1.bf16.msra.mxu0 %v2848
      %4198 = vmatprep.subr.bf16.mxu0 0
      %4199 = vmatpush1.bf16.msra.mxu0 %v2851
      %4200 = vmatprep.subr.bf16.mxu0 0
      %4201 = vmatpush1.bf16.msra.mxu0 %v2854
      %4202 = vmatprep.subr.bf16.mxu0 0
      %4203 = vmatpush1.bf16.msra.mxu0 %v2857
      %4204 = vmatprep.subr.bf16.mxu0 0
      %4205 = vmatpush1.bf16.msra.mxu0 %v2860
      %4206 = vmatprep.subr.bf16.mxu0 0
      %4207 = vmatpush1.bf16.msra.mxu0 %v2863
      %4208 = vmatprep.subr.bf16.mxu0 0
      %4209 = vmatpush1.bf16.msra.mxu0 %v2866
      %4210 = vmatprep.subr.bf16.mxu0 0
      %4211 = vmatpush1.bf16.msra.mxu0 %v2869
      %4212 = vmatprep.subr.bf16.mxu0 0
      %4213 = vmatpush1.bf16.msra.mxu0 %v2872
      %4214 = vmatprep.subr.bf16.mxu0 0
      %4215 = vmatpush1.bf16.msra.mxu0 %v2875
      %4216 = vmatprep.subr.bf16.mxu0 0
      %4217 = vmatpush1.bf16.msra.mxu0 %v2878
      %4218 = vmatprep.subr.bf16.mxu0 0
      %4219 = vmatpush1.bf16.msra.mxu0 %v2881
      %4220 = vmatprep.mubr.bf16.mxu0 %v1040
      %4221 = vmatmul.mubr.bf16.gmra.mrb[0].mxu0 %v1026
      %v4222 = vpop.f32.mrb[0].mxu0
      %v4223 = vadd.f32 %v4183, %v4222
      %v4224 = vpop.f32.mrb[0].mxu0
      %v4225 = vpop.f32.mrb[0].mxu0
      %v4226 = vpop.f32.mrb[0].mxu0
      %4227 = vdwg.mxu0
      %4228 = vmatprep.subr.bf16.mxu0 0
      %4229 = vmatpush1.bf16.msra.mxu0 %v2884
      %4230 = vmatprep.subr.bf16.mxu0 0
      %4231 = vmatpush1.bf16.msra.mxu0 %v2887
      %4232 = vmatprep.subr.bf16.mxu0 0
      %4233 = vmatpush1.bf16.msra.mxu0 %v2890
      %4234 = vmatprep.subr.bf16.mxu0 0
      %4235 = vmatpush1.bf16.msra.mxu0 %v2893
      %4236 = vmatprep.subr.bf16.mxu0 0
      %4237 = vmatpush1.bf16.msra.mxu0 %v2896
      %4238 = vmatprep.subr.bf16.mxu0 0
      %4239 = vmatpush1.bf16.msra.mxu0 %v2899
      %4240 = vmatprep.subr.bf16.mxu0 0
      %4241 = vmatpush1.bf16.msra.mxu0 %v2902
      %4242 = vmatprep.subr.bf16.mxu0 0
      %4243 = vmatpush1.bf16.msra.mxu0 %v2905
      %4244 = vmatprep.subr.bf16.mxu0 0
      %4245 = vmatpush1.bf16.msra.mxu0 %v2908
      %4246 = vmatprep.subr.bf16.mxu0 0
      %4247 = vmatpush1.bf16.msra.mxu0 %v2911
      %4248 = vmatprep.subr.bf16.mxu0 0
      %4249 = vmatpush1.bf16.msra.mxu0 %v2914
      %4250 = vmatprep.subr.bf16.mxu0 0
      %4251 = vmatpush1.bf16.msra.mxu0 %v2917
      %4252 = vmatprep.subr.bf16.mxu0 0
      %4253 = vmatpush1.bf16.msra.mxu0 %v2920
      %4254 = vmatprep.subr.bf16.mxu0 0
      %4255 = vmatpush1.bf16.msra.mxu0 %v2923
      %4256 = vmatprep.subr.bf16.mxu0 0
      %4257 = vmatpush1.bf16.msra.mxu0 %v2926
      %4258 = vmatprep.subr.bf16.mxu0 0
      %4259 = vmatpush1.bf16.msra.mxu0 %v2929
      %4260 = vmatprep.mubr.bf16.mxu0 %v1044
      %4261 = vmatmul.mubr.bf16.gmra.mrb[0].mxu0 %v1042
      %v4262 = vpop.f32.mrb[0].mxu0
      %v4263 = vadd.f32 %v4223, %v4262
      %v4264 = vpop.f32.mrb[0].mxu0
      %v4265 = vpop.f32.mrb[0].mxu0
      %v4266 = vpop.f32.mrb[0].mxu0
      %4267 = vdwg.mxu0
      %4268 = vmatprep.subr.bf16.mxu0 0
      %4269 = vmatpush1.bf16.msra.mxu0 %v2932
      %4270 = vmatprep.subr.bf16.mxu0 0
      %4271 = vmatpush1.bf16.msra.mxu0 %v2935
      %4272 = vmatprep.subr.bf16.mxu0 0
      %4273 = vmatpush1.bf16.msra.mxu0 %v2938
      %4274 = vmatprep.subr.bf16.mxu0 0
      %4275 = vmatpush1.bf16.msra.mxu0 %v2941
      %4276 = vmatprep.subr.bf16.mxu0 0
      %4277 = vmatpush1.bf16.msra.mxu0 %v2944
      %4278 = vmatprep.subr.bf16.mxu0 0
      %4279 = vmatpush1.bf16.msra.mxu0 %v2947
      %4280 = vmatprep.subr.bf16.mxu0 0
      %4281 = vmatpush1.bf16.msra.mxu0 %v2950
      %4282 = vmatprep.subr.bf16.mxu0 0
      %4283 = vmatpush1.bf16.msra.mxu0 %v2953
      %4284 = vmatprep.subr.bf16.mxu0 0
      %4285 = vmatpush1.bf16.msra.mxu0 %v2956
      %4286 = vmatprep.subr.bf16.mxu0 0
      %4287 = vmatpush1.bf16.msra.mxu0 %v2959
      %4288 = vmatprep.subr.bf16.mxu0 0
      %4289 = vmatpush1.bf16.msra.mxu0 %v2962
      %4290 = vmatprep.subr.bf16.mxu0 0
      %4291 = vmatpush1.bf16.msra.mxu0 %v2965
      %4292 = vmatprep.subr.bf16.mxu0 0
      %4293 = vmatpush1.bf16.msra.mxu0 %v2968
      %4294 = vmatprep.subr.bf16.mxu0 0
      %4295 = vmatpush1.bf16.msra.mxu0 %v2971
      %4296 = vmatprep.subr.bf16.mxu0 0
      %4297 = vmatpush1.bf16.msra.mxu0 %v2974
      %4298 = vmatprep.subr.bf16.mxu0 0
      %4299 = vmatpush1.bf16.msra.mxu0 %v2977
      %4300 = vmatprep.mubr.bf16.mxu0 %v1082
      %4301 = vmatmul.mubr.bf16.gmra.mrb[0].mxu0 %v1068
      %v4302 = vpop.f32.mrb[0].mxu0
      %v4303 = vadd.f32 %v4263, %v4302
      %v4304 = vpop.f32.mrb[0].mxu0
      %v4305 = vpop.f32.mrb[0].mxu0
      %v4306 = vpop.f32.mrb[0].mxu0
      %4307 = vdwg.mxu0
      %4308 = vmatprep.subr.bf16.mxu0 0
      %4309 = vmatpush1.bf16.msra.mxu0 %v2980
      %4310 = vmatprep.subr.bf16.mxu0 0
      %4311 = vmatpush1.bf16.msra.mxu0 %v2983
      %4312 = vmatprep.subr.bf16.mxu0 0
      %4313 = vmatpush1.bf16.msra.mxu0 %v2986
      %4314 = vmatprep.subr.bf16.mxu0 0
      %4315 = vmatpush1.bf16.msra.mxu0 %v2989
      %4316 = vmatprep.subr.bf16.mxu0 0
      %4317 = vmatpush1.bf16.msra.mxu0 %v2992
      %4318 = vmatprep.subr.bf16.mxu0 0
      %4319 = vmatpush1.bf16.msra.mxu0 %v2995
      %4320 = vmatprep.subr.bf16.mxu0 0
      %4321 = vmatpush1.bf16.msra.mxu0 %v2998
      %4322 = vmatprep.subr.bf16.mxu0 0
      %4323 = vmatpush1.bf16.msra.mxu0 %v3001
      %4324 = vmatprep.subr.bf16.mxu0 0
      %4325 = vmatpush1.bf16.msra.mxu0 %v3004
      %4326 = vmatprep.subr.bf16.mxu0 0
      %4327 = vmatpush1.bf16.msra.mxu0 %v3007
      %4328 = vmatprep.subr.bf16.mxu0 0
      %4329 = vmatpush1.bf16.msra.mxu0 %v3010
      %4330 = vmatprep.subr.bf16.mxu0 0
      %4331 = vmatpush1.bf16.msra.mxu0 %v3013
      %4332 = vmatprep.subr.bf16.mxu0 0
      %4333 = vmatpush1.bf16.msra.mxu0 %v3016
      %4334 = vmatprep.subr.bf16.mxu0 0
      %4335 = vmatpush1.bf16.msra.mxu0 %v3019
      %4336 = vmatprep.subr.bf16.mxu0 0
      %4337 = vmatpush1.bf16.msra.mxu0 %v3022
      %4338 = vmatprep.subr.bf16.mxu0 0
      %4339 = vmatpush1.bf16.msra.mxu0 %v3025
      %4340 = vmatprep.mubr.bf16.mxu0 %v1092
      %4341 = vmatmul.mubr.bf16.gmra.mrb[0].mxu0 %v1090
      %v4342 = vpop.f32.mrb[0].mxu0
      %v4343 = vadd.f32 %v4303, %v4342
      %v4344 = vpop.f32.mrb[0].mxu0
      %v4345 = vpop.f32.mrb[0].mxu0
      %v4346 = vpop.f32.mrb[0].mxu0
      %4347 = vdwg.mxu0
      %4348 = vmatprep.subr.bf16.mxu0 0
      %4349 = vmatpush1.bf16.msra.mxu0 %v3028
      %4350 = vmatprep.subr.bf16.mxu0 0
      %4351 = vmatpush1.bf16.msra.mxu0 %v3031
      %4352 = vmatprep.subr.bf16.mxu0 0
      %4353 = vmatpush1.bf16.msra.mxu0 %v3034
      %4354 = vmatprep.subr.bf16.mxu0 0
      %4355 = vmatpush1.bf16.msra.mxu0 %v3037
      %4356 = vmatprep.subr.bf16.mxu0 0
      %4357 = vmatpush1.bf16.msra.mxu0 %v3040
      %4358 = vmatprep.subr.bf16.mxu0 0
      %4359 = vmatpush1.bf16.msra.mxu0 %v3043
      %4360 = vmatprep.subr.bf16.mxu0 0
      %4361 = vmatpush1.bf16.msra.mxu0 %v3046
      %4362 = vmatprep.subr.bf16.mxu0 0
      %4363 = vmatpush1.bf16.msra.mxu0 %v3049
      %4364 = vmatprep.subr.bf16.mxu0 0
      %4365 = vmatpush1.bf16.msra.mxu0 %v3052
      %4366 = vmatprep.subr.bf16.mxu0 0
      %4367 = vmatpush1.bf16.msra.mxu0 %v3055
      %4368 = vmatprep.subr.bf16.mxu0 0
      %4369 = vmatpush1.bf16.msra.mxu0 %v3058
      %4370 = vmatprep.subr.bf16.mxu0 0
      %4371 = vmatpush1.bf16.msra.mxu0 %v3061
      %4372 = vmatprep.subr.bf16.mxu0 0
      %4373 = vmatpush1.bf16.msra.mxu0 %v3064
      %4374 = vmatprep.subr.bf16.mxu0 0
      %4375 = vmatpush1.bf16.msra.mxu0 %v3067
      %4376 = vmatprep.subr.bf16.mxu0 0
      %4377 = vmatpush1.bf16.msra.mxu0 %v3070
      %4378 = vmatprep.subr.bf16.mxu0 0
      %4379 = vmatpush1.bf16.msra.mxu0 %v3073
      %4380 = vmatprep.mubr.bf16.mxu0 %v1089
      %4381 = vmatmul.mubr.bf16.gmra.mrb[0].mxu0 %v1075
      %v4382 = vpop.f32.mrb[0].mxu0
      %v4383 = vadd.f32 %v4343, %v4382
      %v4384 = vpop.f32.mrb[0].mxu0
      %v4385 = vpop.f32.mrb[0].mxu0
      %v4386 = vpop.f32.mrb[0].mxu0
      %4387 = vdwg.mxu0
      %4388 = vmatprep.subr.bf16.mxu0 0
      %4389 = vmatpush1.bf16.msra.mxu0 %v3076
      %4390 = vmatprep.subr.bf16.mxu0 0
      %4391 = vmatpush1.bf16.msra.mxu0 %v3079
      %4392 = vmatprep.subr.bf16.mxu0 0
      %4393 = vmatpush1.bf16.msra.mxu0 %v3082
      %4394 = vmatprep.subr.bf16.mxu0 0
      %4395 = vmatpush1.bf16.msra.mxu0 %v3085
      %4396 = vmatprep.subr.bf16.mxu0 0
      %4397 = vmatpush1.bf16.msra.mxu0 %v3088
      %4398 = vmatprep.subr.bf16.mxu0 0
      %4399 = vmatpush1.bf16.msra.mxu0 %v3091
      %4400 = vmatprep.subr.bf16.mxu0 0
      %4401 = vmatpush1.bf16.msra.mxu0 %v3094
      %4402 = vmatprep.subr.bf16.mxu0 0
      %4403 = vmatpush1.bf16.msra.mxu0 %v3097
      %4404 = vmatprep.subr.bf16.mxu0 0
      %4405 = vmatpush1.bf16.msra.mxu0 %v3100
      %4406 = vmatprep.subr.bf16.mxu0 0
      %4407 = vmatpush1.bf16.msra.mxu0 %v3103
      %4408 = vmatprep.subr.bf16.mxu0 0
      %4409 = vmatpush1.bf16.msra.mxu0 %v3106
      %4410 = vmatprep.subr.bf16.mxu0 0
      %4411 = vmatpush1.bf16.msra.mxu0 %v3109
      %4412 = vmatprep.subr.bf16.mxu0 0
      %4413 = vmatpush1.bf16.msra.mxu0 %v3112
      %4414 = vmatprep.subr.bf16.mxu0 0
      %4415 = vmatpush1.bf16.msra.mxu0 %v3115
      %4416 = vmatprep.subr.bf16.mxu0 0
      %4417 = vmatpush1.bf16.msra.mxu0 %v3118
      %4418 = vmatprep.subr.bf16.mxu0 0
      %4419 = vmatpush1.bf16.msra.mxu0 %v3121
      %4420 = vmatprep.mubr.bf16.mxu0 %v1093
      %4421 = vmatmul.mubr.bf16.gmra.mrb[0].mxu0 %v1091
      %v4422 = vpop.f32.mrb[0].mxu0
      %v4423 = vadd.f32 %v4383, %v4422
      %v4424 = vpop.f32.mrb[0].mxu0
      %v4425 = vpop.f32.mrb[0].mxu0
      %v4426 = vpop.f32.mrb[0].mxu0
      %4427 = vdwg.mxu0
      %4428 = vmatprep.subr.bf16.mxu0 0
      %4429 = vmatpush1.bf16.msra.mxu0 %v3124
      %4430 = vmatprep.subr.bf16.mxu0 0
      %4431 = vmatpush1.bf16.msra.mxu0 %v3127
      %4432 = vmatprep.subr.bf16.mxu0 0
      %4433 = vmatpush1.bf16.msra.mxu0 %v3130
      %4434 = vmatprep.subr.bf16.mxu0 0
      %4435 = vmatpush1.bf16.msra.mxu0 %v3133
      %4436 = vmatprep.subr.bf16.mxu0 0
      %4437 = vmatpush1.bf16.msra.mxu0 %v3136
      %4438 = vmatprep.subr.bf16.mxu0 0
      %4439 = vmatpush1.bf16.msra.mxu0 %v3139
      %4440 = vmatprep.subr.bf16.mxu0 0
      %4441 = vmatpush1.bf16.msra.mxu0 %v3142
      %4442 = vmatprep.subr.bf16.mxu0 0
      %4443 = vmatpush1.bf16.msra.mxu0 %v3145
      %4444 = vmatprep.subr.bf16.mxu0 0
      %4445 = vmatpush1.bf16.msra.mxu0 %v3148
      %4446 = vmatprep.subr.bf16.mxu0 0
      %4447 = vmatpush1.bf16.msra.mxu0 %v3151
      %4448 = vmatprep.subr.bf16.mxu0 0
      %4449 = vmatpush1.bf16.msra.mxu0 %v3154
      %4450 = vmatprep.subr.bf16.mxu0 0
      %4451 = vmatpush1.bf16.msra.mxu0 %v3157
      %4452 = vmatprep.subr.bf16.mxu0 0
      %4453 = vmatpush1.bf16.msra.mxu0 %v3160
      %4454 = vmatprep.subr.bf16.mxu0 0
      %4455 = vmatpush1.bf16.msra.mxu0 %v3163
      %4456 = vmatprep.subr.bf16.mxu0 0
      %4457 = vmatpush1.bf16.msra.mxu0 %v3166
      %4458 = vmatprep.subr.bf16.mxu0 0
      %4459 = vmatpush1.bf16.msra.mxu0 %v3169
      %4460 = vmatprep.mubr.bf16.mxu0 %v1115
      %4461 = vmatmul.mubr.bf16.gmra.mrb[0].mxu0 %v1108
      %v4462 = vpop.f32.mrb[0].mxu0
      %v4463 = vadd.f32 %v4423, %v4462
      %v4464 = vpop.f32.mrb[0].mxu0
      %v4465 = vpop.f32.mrb[0].mxu0
      %v4466 = vpop.f32.mrb[0].mxu0
      %4467 = vdwg.mxu0
      %4468 = vmatprep.subr.bf16.mxu0 0
      %4469 = vmatpush1.bf16.msra.mxu0 %v3172
      %4470 = vmatprep.subr.bf16.mxu0 0
      %4471 = vmatpush1.bf16.msra.mxu0 %v3175
      %4472 = vmatprep.subr.bf16.mxu0 0
      %4473 = vmatpush1.bf16.msra.mxu0 %v3178
      %4474 = vmatprep.subr.bf16.mxu0 0
      %4475 = vmatpush1.bf16.msra.mxu0 %v3181
      %4476 = vmatprep.subr.bf16.mxu0 0
      %4477 = vmatpush1.bf16.msra.mxu0 %v3184
      %4478 = vmatprep.subr.bf16.mxu0 0
      %4479 = vmatpush1.bf16.msra.mxu0 %v3187
      %4480 = vmatprep.subr.bf16.mxu0 0
      %4481 = vmatpush1.bf16.msra.mxu0 %v3190
      %4482 = vmatprep.subr.bf16.mxu0 0
      %4483 = vmatpush1.bf16.msra.mxu0 %v3193
      %4484 = vmatprep.subr.bf16.mxu0 0
      %4485 = vmatpush1.bf16.msra.mxu0 %v3196
      %4486 = vmatprep.subr.bf16.mxu0 0
      %4487 = vmatpush1.bf16.msra.mxu0 %v3199
      %4488 = vmatprep.subr.bf16.mxu0 0
      %4489 = vmatpush1.bf16.msra.mxu0 %v3202
      %4490 = vmatprep.subr.bf16.mxu0 0
      %4491 = vmatpush1.bf16.msra.mxu0 %v3205
      %4492 = vmatprep.subr.bf16.mxu0 0
      %4493 = vmatpush1.bf16.msra.mxu0 %v3208
      %4494 = vmatprep.subr.bf16.mxu0 0
      %4495 = vmatpush1.bf16.msra.mxu0 %v3211
      %4496 = vmatprep.subr.bf16.mxu0 0
      %4497 = vmatpush1.bf16.msra.mxu0 %v3214
      %4498 = vmatprep.subr.bf16.mxu0 0
      %4499 = vmatpush1.bf16.msra.mxu0 %v3217
      %4500 = vmatprep.mubr.bf16.mxu0 %v1117
      %4501 = vmatmul.mubr.bf16.gmra.mrb[0].mxu0 %v1116
      %v4502 = vpop.f32.mrb[0].mxu0
      %v4503 = vadd.f32 %v4463, %v4502
      %v4504 = vpop.f32.mrb[0].mxu0
      %v4505 = vpop.f32.mrb[0].mxu0
      %v4506 = vpop.f32.mrb[0].mxu0
      %4507 = vdwg.mxu0
      %v4508 = vmax.f32 %v4102, 0.0
      %v4509 = vmax.f32 %v4104, 0.0
      %v4510 = vmax.f32 %v4503, 0.0
      %v4511 = vpack.c.bf16 %v4508, %v4508
      %v4512 = vpack.c.bf16 %v4509, %v4509
      %v4513 = vpack.c.bf16 %v4510, %v4510
      %v4514 = vld [vmem:[#allocation2] sm:$0xf]
      %v4515 = vld [vmem:[%s321] sm:$0xff]
      %v4516 = vld [vmem:[%s321 + $0x8] sm:$0xff]
      %v4517 = vld [vmem:[%s321 + $0x10] sm:$0xff]
      %v4518 = vld [vmem:[%s321 + $0x18] sm:$0xff]
      %v4519 = vld [vmem:[%s321 + $0x20] sm:$0xff]
      %v4520 = vld [vmem:[%s321 + $0x28] sm:$0xff]
      %v4521 = vld [vmem:[%s321 + $0x30] sm:$0xff]
      %v4522 = vld [vmem:[%s321 + $0x38] sm:$0xff]
      %v4523 = vld [vmem:[%s321 + $0x40] sm:$0xff]
      %v4524 = vld [vmem:[%s321 + $0x48] sm:$0xff]
      %v4525 = vld [vmem:[%s321 + $0x50] sm:$0xff]
      %v4526 = vld [vmem:[%s321 + $0x58] sm:$0xff]
      %v4527 = vld [vmem:[%s321 + $0x60] sm:$0xff]
      %v4528 = vld [vmem:[%s321 + $0x68] sm:$0xff]
      %v4529 = vld [vmem:[%s321 + $0x70] sm:$0xff]
      %v4530 = vld [vmem:[%s321 + $0x78] sm:$0xff]
      %v4531 = vld [vmem:[%s321 + $0x80] sm:$0xff]
      %v4532 = vld [vmem:[%s321 + $0x88] sm:$0xff]
      %v4533 = vld [vmem:[%s321 + $0x90] sm:$0xff]
      %v4534 = vld [vmem:[%s321 + $0x98] sm:$0xff]
      %v4535 = vld [vmem:[%s321 + $0xa0] sm:$0xff]
      %v4536 = vld [vmem:[%s321 + $0xa8] sm:$0xff]
      %v4537 = vld [vmem:[%s321 + $0xb0] sm:$0xff]
      %v4538 = vld [vmem:[%s321 + $0xb8] sm:$0xff]
      %v4539 = vld [vmem:[%s321 + $0xc0] sm:$0xff]
      %v4540 = vld [vmem:[%s321 + $0xc8] sm:$0xff]
      %v4541 = vld [vmem:[%s321 + $0xd0] sm:$0xff]
      %v4542 = vld [vmem:[%s321 + $0xd8] sm:$0xff]
      %v4543 = vld [vmem:[%s321 + $0xe0] sm:$0xff]
      %v4544 = vld [vmem:[%s321 + $0xe8] sm:$0xff]
      %v4545 = vld [vmem:[%s321 + $0xf0] sm:$0xff]
      %v4546 = vld [vmem:[%s321 + $0xf8] sm:$0xff]
      %v4547 = vld [vmem:[%s321 + $0x100] sm:$0xff]
      %v4548 = vld [vmem:[%s321 + $0x108] sm:$0xff]
      %v4549 = vld [vmem:[%s321 + $0x110] sm:$0xff]
      %v4550 = vld [vmem:[%s321 + $0x118] sm:$0xff]
      %v4551 = vld [vmem:[%s321 + $0x120] sm:$0xff]
      %v4552 = vld [vmem:[%s321 + $0x128] sm:$0xff]
      %v4553 = vld [vmem:[%s321 + $0x130] sm:$0xff]
      %v4554 = vld [vmem:[%s321 + $0x138] sm:$0xff]
      %v4555 = vld [vmem:[%s321 + $0x140] sm:$0xff]
      %v4556 = vld [vmem:[%s321 + $0x148] sm:$0xff]
      %v4557 = vld [vmem:[%s321 + $0x150] sm:$0xff]
      %v4558 = vld [vmem:[%s321 + $0x158] sm:$0xff]
      %v4559 = vld [vmem:[%s321 + $0x160] sm:$0xff]
      %v4560 = vld [vmem:[%s321 + $0x168] sm:$0xff]
      %v4561 = vld [vmem:[%s321 + $0x170] sm:$0xff]
      %v4562 = vld [vmem:[%s321 + $0x178] sm:$0xff]
      %v4611 = vunpack.c.l.b16 %v4515
      %v4612 = vunpack.c.h.b16 %v4515
      %v4613 = vunpack.c.l.b16 %v4516
      %v4614 = vunpack.c.h.b16 %v4516
      %v4615 = vunpack.c.l.b16 %v4517
      %v4616 = vunpack.c.h.b16 %v4517
      %v4617 = vunpack.c.l.b16 %v4518
      %v4618 = vunpack.c.h.b16 %v4518
      %v4619 = vunpack.c.l.b16 %v4519
      %v4620 = vunpack.c.h.b16 %v4519
      %v4621 = vunpack.c.l.b16 %v4520
      %v4622 = vunpack.c.h.b16 %v4520
      %v4623 = vunpack.c.l.b16 %v4521
      %v4624 = vunpack.c.h.b16 %v4521
      %v4625 = vunpack.c.l.b16 %v4522
      %v4626 = vunpack.c.h.b16 %v4522
      %v4627 = vunpack.c.l.b16 %v4523
      %v4628 = vunpack.c.h.b16 %v4523
      %v4629 = vunpack.c.l.b16 %v4524
      %v4630 = vunpack.c.h.b16 %v4524
      %v4631 = vunpack.c.l.b16 %v4525
      %v4632 = vunpack.c.h.b16 %v4525
      %v4633 = vunpack.c.l.b16 %v4526
      %v4634 = vunpack.c.h.b16 %v4526
      %v4635 = vunpack.c.l.b16 %v4527
      %v4636 = vunpack.c.h.b16 %v4527
      %v4637 = vunpack.c.l.b16 %v4528
      %v4638 = vunpack.c.h.b16 %v4528
      %v4639 = vunpack.c.l.b16 %v4529
      %v4640 = vunpack.c.h.b16 %v4529
      %v4641 = vunpack.c.l.b16 %v4530
      %v4642 = vunpack.c.h.b16 %v4530
      %v4643 = vunpack.c.l.b16 %v4531
      %v4644 = vunpack.c.h.b16 %v4531
      %v4645 = vunpack.c.l.b16 %v4532
      %v4646 = vunpack.c.h.b16 %v4532
      %v4647 = vunpack.c.l.b16 %v4533
      %v4648 = vunpack.c.h.b16 %v4533
      %v4649 = vunpack.c.l.b16 %v4534
      %v4650 = vunpack.c.h.b16 %v4534
      %v4651 = vunpack.c.l.b16 %v4535
      %v4652 = vunpack.c.h.b16 %v4535
      %v4653 = vunpack.c.l.b16 %v4536
      %v4654 = vunpack.c.h.b16 %v4536
      %v4655 = vunpack.c.l.b16 %v4537
      %v4656 = vunpack.c.h.b16 %v4537
      %v4657 = vunpack.c.l.b16 %v4538
      %v4658 = vunpack.c.h.b16 %v4538
      %v4659 = vunpack.c.l.b16 %v4539
      %v4660 = vunpack.c.h.b16 %v4539
      %v4661 = vunpack.c.l.b16 %v4540
      %v4662 = vunpack.c.h.b16 %v4540
      %v4663 = vunpack.c.l.b16 %v4541
      %v4664 = vunpack.c.h.b16 %v4541
      %v4665 = vunpack.c.l.b16 %v4542
      %v4666 = vunpack.c.h.b16 %v4542
      %v4667 = vunpack.c.l.b16 %v4543
      %v4668 = vunpack.c.h.b16 %v4543
      %v4669 = vunpack.c.l.b16 %v4544
      %v4670 = vunpack.c.h.b16 %v4544
      %v4671 = vunpack.c.l.b16 %v4545
      %v4672 = vunpack.c.h.b16 %v4545
      %v4673 = vunpack.c.l.b16 %v4546
      %v4674 = vunpack.c.h.b16 %v4546
      %v4675 = vunpack.c.l.b16 %v4547
      %v4676 = vunpack.c.h.b16 %v4547
      %v4677 = vunpack.c.l.b16 %v4548
      %v4678 = vunpack.c.h.b16 %v4548
      %v4679 = vunpack.c.l.b16 %v4549
      %v4680 = vunpack.c.h.b16 %v4549
      %v4681 = vunpack.c.l.b16 %v4550
      %v4682 = vunpack.c.h.b16 %v4550
      %v4683 = vunpack.c.l.b16 %v4551
      %v4684 = vunpack.c.h.b16 %v4551
      %v4685 = vunpack.c.l.b16 %v4552
      %v4686 = vunpack.c.h.b16 %v4552
      %v4687 = vunpack.c.l.b16 %v4553
      %v4688 = vunpack.c.h.b16 %v4553
      %v4689 = vunpack.c.l.b16 %v4554
      %v4690 = vunpack.c.h.b16 %v4554
      %v4691 = vunpack.c.l.b16 %v4555
      %v4692 = vunpack.c.h.b16 %v4555
      %v4693 = vunpack.c.l.b16 %v4556
      %v4694 = vunpack.c.h.b16 %v4556
      %v4695 = vunpack.c.l.b16 %v4557
      %v4696 = vunpack.c.h.b16 %v4557
      %v4697 = vunpack.c.l.b16 %v4558
      %v4698 = vunpack.c.h.b16 %v4558
      %v4699 = vunpack.c.l.b16 %v4559
      %v4700 = vunpack.c.h.b16 %v4559
      %v4701 = vunpack.c.l.b16 %v4560
      %v4702 = vunpack.c.h.b16 %v4560
      %v4703 = vunpack.c.l.b16 %v4561
      %v4704 = vunpack.c.h.b16 %v4561
      %v4705 = vunpack.c.l.b16 %v4562
      %v4706 = vunpack.c.h.b16 %v4562
      %v4707 = vpack.c.b16 %v4613, %v4611
      %v4708 = vpack.c.b16 %v4614, %v4612
      %v4709 = vpack.c.b16 %v4617, %v4615
      %v4710 = vpack.c.b16 %v4618, %v4616
      %v4711 = vpack.c.b16 %v4621, %v4619
      %v4712 = vpack.c.b16 %v4622, %v4620
      %v4713 = vpack.c.b16 %v4625, %v4623
      %v4714 = vpack.c.b16 %v4626, %v4624
      %v4715 = vpack.c.b16 %v4629, %v4627
      %v4716 = vpack.c.b16 %v4630, %v4628
      %v4717 = vpack.c.b16 %v4633, %v4631
      %v4718 = vpack.c.b16 %v4634, %v4632
      %v4719 = vpack.c.b16 %v4637, %v4635
      %v4720 = vpack.c.b16 %v4638, %v4636
      %v4721 = vpack.c.b16 %v4641, %v4639
      %v4722 = vpack.c.b16 %v4642, %v4640
      %v4723 = vpack.c.b16 %v4645, %v4643
      %v4724 = vpack.c.b16 %v4646, %v4644
      %v4725 = vpack.c.b16 %v4649, %v4647
      %v4726 = vpack.c.b16 %v4650, %v4648
      %v4727 = vpack.c.b16 %v4653, %v4651
      %v4728 = vpack.c.b16 %v4654, %v4652
      %v4729 = vpack.c.b16 %v4657, %v4655
      %v4730 = vpack.c.b16 %v4658, %v4656
      %v4731 = vpack.c.b16 %v4661, %v4659
      %v4732 = vpack.c.b16 %v4662, %v4660
      %v4733 = vpack.c.b16 %v4665, %v4663
      %v4734 = vpack.c.b16 %v4666, %v4664
      %v4735 = vpack.c.b16 %v4669, %v4667
      %v4736 = vpack.c.b16 %v4670, %v4668
      %v4737 = vpack.c.b16 %v4673, %v4671
      %v4738 = vpack.c.b16 %v4674, %v4672
      %v4739 = vpack.c.b16 %v4677, %v4675
      %v4740 = vpack.c.b16 %v4678, %v4676
      %v4741 = vpack.c.b16 %v4681, %v4679
      %v4742 = vpack.c.b16 %v4682, %v4680
      %v4743 = vpack.c.b16 %v4685, %v4683
      %v4744 = vpack.c.b16 %v4686, %v4684
      %v4745 = vpack.c.b16 %v4689, %v4687
      %v4746 = vpack.c.b16 %v4690, %v4688
      %v4747 = vpack.c.b16 %v4693, %v4691
      %v4748 = vpack.c.b16 %v4694, %v4692
      %v4749 = vpack.c.b16 %v4697, %v4695
      %v4750 = vpack.c.b16 %v4698, %v4696
      %v4751 = vpack.c.b16 %v4701, %v4699
      %v4752 = vpack.c.b16 %v4702, %v4700
      %v4753 = vpack.c.b16 %v4705, %v4703
      %v4754 = vpack.c.b16 %v4706, %v4704
      %4803 = vmatprep.subr.bf16.mxu0 %v4708
      %4804 = vmatpush1.bf16.msra.mxu0 %v4707
      %4805 = vmatprep.subr.bf16.mxu0 %v4710
      %4806 = vmatpush1.bf16.msra.mxu0 %v4709
      %4807 = vmatprep.subr.bf16.mxu0 %v4712
      %4808 = vmatpush1.bf16.msra.mxu0 %v4711
      %4809 = vmatprep.subr.bf16.mxu0 %v4714
      %4810 = vmatpush1.bf16.msra.mxu0 %v4713
      %4811 = vmatprep.subr.bf16.mxu0 %v4716
      %4812 = vmatpush1.bf16.msra.mxu0 %v4715
      %4813 = vmatprep.subr.bf16.mxu0 %v4718
      %4814 = vmatpush1.bf16.msra.mxu0 %v4717
      %4815 = vmatprep.subr.bf16.mxu0 %v4720
      %4816 = vmatpush1.bf16.msra.mxu0 %v4719
      %4817 = vmatprep.subr.bf16.mxu0 %v4722
      %4818 = vmatpush1.bf16.msra.mxu0 %v4721
      %4819 = vmatprep.subr.bf16.mxu0 %v4724
      %4820 = vmatpush1.bf16.msra.mxu0 %v4723
      %4821 = vmatprep.subr.bf16.mxu0 %v4726
      %4822 = vmatpush1.bf16.msra.mxu0 %v4725
      %4823 = vmatprep.subr.bf16.mxu0 %v4728
      %4824 = vmatpush1.bf16.msra.mxu0 %v4727
      %4825 = vmatprep.subr.bf16.mxu0 %v4730
      %4826 = vmatpush1.bf16.msra.mxu0 %v4729
      %4827 = vmatprep.subr.bf16.mxu0 %v4732
      %4828 = vmatpush1.bf16.msra.mxu0 %v4731
      %4829 = vmatprep.subr.bf16.mxu0 %v4734
      %4830 = vmatpush1.bf16.msra.mxu0 %v4733
      %4831 = vmatprep.subr.bf16.mxu0 %v4736
      %4832 = vmatpush1.bf16.msra.mxu0 %v4735
      %4833 = vmatprep.subr.bf16.mxu0 %v4738
      %4834 = vmatpush1.bf16.msra.mxu0 %v4737
      %4835 = vmatprep.mubr.bf16.mxu0 %v4512
      %4836 = vmatmul.mubr.bf16.gmra.mrb[0].mxu0 %v4511
      %v4837 = vpop.f32.mrb[0].mxu0
      %v4838 = vadd.f32 0.0, %v4837
      %v4839 = vpop.f32.mrb[0].mxu0
      %v4840 = vadd.f32 0.0, %v4839
      %v4841 = vpop.f32.mrb[0].mxu0
      %v4842 = vpop.f32.mrb[0].mxu0
      %4843 = vdwg.mxu0
      %4844 = vmatprep.subr.bf16.mxu0 %v4740
      %4845 = vmatpush1.bf16.msra.mxu0 %v4739
      %4846 = vmatprep.subr.bf16.mxu0 %v4742
      %4847 = vmatpush1.bf16.msra.mxu0 %v4741
      %4848 = vmatprep.subr.bf16.mxu0 %v4744
      %4849 = vmatpush1.bf16.msra.mxu0 %v4743
      %4850 = vmatprep.subr.bf16.mxu0 %v4746
      %4851 = vmatpush1.bf16.msra.mxu0 %v4745
      %4852 = vmatprep.subr.bf16.mxu0 %v4748
      %4853 = vmatpush1.bf16.msra.mxu0 %v4747
      %4854 = vmatprep.subr.bf16.mxu0 %v4750
      %4855 = vmatpush1.bf16.msra.mxu0 %v4749
      %4856 = vmatprep.subr.bf16.mxu0 %v4752
      %4857 = vmatpush1.bf16.msra.mxu0 %v4751
      %4858 = vmatprep.subr.bf16.mxu0 %v4754
      %4859 = vmatpush1.bf16.msra.mxu0 %v4753
      %4860 = vmatprep.subr.bf16.mxu0 0
      %4861 = vmatpush1.bf16.msra.mxu0 0
      %4862 = vmatprep.subr.bf16.mxu0 0
      %4863 = vmatpush1.bf16.msra.mxu0 0
      %4864 = vmatprep.subr.bf16.mxu0 0
      %4865 = vmatpush1.bf16.msra.mxu0 0
      %4866 = vmatprep.subr.bf16.mxu0 0
      %4867 = vmatpush1.bf16.msra.mxu0 0
      %4868 = vmatprep.subr.bf16.mxu0 0
      %4869 = vmatpush1.bf16.msra.mxu0 0
      %4870 = vmatprep.subr.bf16.mxu0 0
      %4871 = vmatpush1.bf16.msra.mxu0 0
      %4872 = vmatprep.subr.bf16.mxu0 0
      %4873 = vmatpush1.bf16.msra.mxu0 0
      %4874 = vmatprep.subr.bf16.mxu0 0
      %4875 = vmatpush1.bf16.msra.mxu0 0
      %4876 = vmatprep.mubr.bf16.mxu0 0
      %4877 = vmatmul.mubr.bf16.gmra.mrb[0].mxu0 %v4513
      %v4878 = vpop.f32.mrb[0].mxu0
      %v4879 = vadd.f32 %v4838, %v4878
      %v4880 = vpop.f32.mrb[0].mxu0
      %v4881 = vadd.f32 %v4840, %v4880
      %v4882 = vpop.f32.mrb[0].mxu0
      %v4883 = vpop.f32.mrb[0].mxu0
      %4884 = vdwg.mxu0
      %v4887 = vcombine.low %v4879, %v4881
      %v4889 = vunpack.c.l.s4 1983009808
      %v4890 = vunpack.c.0.s8 %v4889
      %v4891 = vlaneseq
      %v4892 = vshrl.u32 %v4891, 7
      %v4893 = vsub.s32 %v4890, %v4892
      %v4894 = vrot.slane %v4887, %v4893
      %v4896 = vadd.f32 %v4514, %v4894
      %4897 = vst [vmem:[#allocation2] sm:$0xf] %v4896
      %p4898 = scmp.eq.s32.totalorder %s23, 9
      // Predicated region
      $region53: #{cnn_policy_forward.3} parent=47 // pred_check
        %p4899 = pneg %p4898
      $region54: #{cnn_policy_forward.3} parent=47 // pred_check_branch
        %4901 = sbr.rel (%p4899) target = $region56
      $region55: #{cnn_policy_forward.3} parent=47 // pred_region
        %v4902 = vld [vmem:[#allocation2] sm:$0xf]
        %v4903 = vld [vmem:[%s4] sm:$0x3]
        %v4905 = vlaneseq
        %v4906 = vshrl.u32 %v4905, 7
        %v4907 = vsub.s32 0, %v4906
        %v4908 = vrot.slane %v4903, %v4907
        %v4909 = vlaneseq
        %v4910 = vshrl.u32 %v4909, 7
        %v4911 = vsub.s32 1, %v4910
        %v4912 = vrot.slane %v4903, %v4911
        %v4913 = vcombine.low %v4908, %v4912
        %v4915 = vunpack.c.l.s4 1983009808
        %v4916 = vunpack.c.0.s8 %v4915
        %v4917 = vlaneseq
        %v4918 = vshrl.u32 %v4917, 7
        %v4919 = vsub.s32 %v4916, %v4918
        %v4920 = vrot.slane %v4913, %v4919
        %v4922 = vadd.f32 %v4902, %v4920
        %v4923 = vmax.f32 %v4922, 0.0
        %v4926 = vunpack.c.l.s4 1983009808
        %v4927 = vunpack.c.0.s8 %v4926
        %v4928 = vlaneseq
        %v4929 = vshrl.u32 %v4928, 7
        %v4930 = vsub.s32 %v4927, %v4929
        %v4931 = vrot.slane %v4923, %v4930
        %v4932 = vcombine.high %v4931, %v4931
        %v4935 = vpack.c.bf16 %v4931, %v4931
        %v4936 = vpack.c.bf16 %v4932, %v4932
        %v4937 = vld [vmem:[%s5] sm:$0xf]
        %v4938 = vld [vmem:[%s5 + $0x4] sm:$0xf]
        %v4939 = vld [vmem:[%s5 + $0x8] sm:$0xf]
        %v4940 = vld [vmem:[%s5 + $0xc] sm:$0xf]
        %v4941 = vld [vmem:[%s5 + $0x10] sm:$0xf]
        %v4942 = vld [vmem:[%s5 + $0x14] sm:$0xf]
        %v4943 = vld [vmem:[%s5 + $0x18] sm:$0xf]
        %v4944 = vld [vmem:[%s5 + $0x1c] sm:$0xf]
        %v4945 = vld [vmem:[%s5 + $0x20] sm:$0xf]
        %v4946 = vld [vmem:[%s5 + $0x24] sm:$0xf]
        %v4947 = vld [vmem:[%s5 + $0x28] sm:$0xf]
        %v4948 = vld [vmem:[%s5 + $0x2c] sm:$0xf]
        %v4949 = vld [vmem:[%s5 + $0x30] sm:$0xf]
        %v4950 = vld [vmem:[%s5 + $0x34] sm:$0xf]
        %v4951 = vld [vmem:[%s5 + $0x38] sm:$0xf]
        %v4952 = vld [vmem:[%s5 + $0x3c] sm:$0xf]
        %v4953 = vld [vmem:[%s5 + $0x40] sm:$0xf]
        %v4954 = vld [vmem:[%s5 + $0x44] sm:$0xf]
        %v4955 = vld [vmem:[%s5 + $0x48] sm:$0xf]
        %v4956 = vld [vmem:[%s5 + $0x4c] sm:$0xf]
        %v4957 = vld [vmem:[%s5 + $0x50] sm:$0xf]
        %v4958 = vld [vmem:[%s5 + $0x54] sm:$0xf]
        %v4959 = vld [vmem:[%s5 + $0x58] sm:$0xf]
        %v4960 = vld [vmem:[%s5 + $0x5c] sm:$0xf]
        %v4961 = vld [vmem:[%s5 + $0x60] sm:$0xf]
        %v4962 = vld [vmem:[%s5 + $0x64] sm:$0xf]
        %v4963 = vld [vmem:[%s5 + $0x68] sm:$0xf]
        %v4964 = vld [vmem:[%s5 + $0x6c] sm:$0xf]
        %v4965 = vld [vmem:[%s5 + $0x70] sm:$0xf]
        %v4966 = vld [vmem:[%s5 + $0x74] sm:$0xf]
        %v4967 = vld [vmem:[%s5 + $0x78] sm:$0xf]
        %v4968 = vld [vmem:[%s5 + $0x7c] sm:$0xf]
        %v4969 = vld [vmem:[%s6] sm:$0x1]
        %v4971 = vlaneseq
        %v4972 = vshrl.u32 %v4971, 7
        %v4973 = vsub.s32 0, %v4972
        %v4974 = vrot.slane %v4969, %v4973
        %v5008 = vunpack.c.l.b16 %v4937
        %v5009 = vunpack.c.l.b16 %v4938
        %v5010 = vunpack.c.l.b16 %v4939
        %v5011 = vunpack.c.l.b16 %v4940
        %v5012 = vunpack.c.l.b16 %v4941
        %v5013 = vunpack.c.l.b16 %v4942
        %v5014 = vunpack.c.l.b16 %v4943
        %v5015 = vunpack.c.l.b16 %v4944
        %v5016 = vunpack.c.l.b16 %v4945
        %v5017 = vunpack.c.l.b16 %v4946
        %v5018 = vunpack.c.l.b16 %v4947
        %v5019 = vunpack.c.l.b16 %v4948
        %v5020 = vunpack.c.l.b16 %v4949
        %v5021 = vunpack.c.l.b16 %v4950
        %v5022 = vunpack.c.l.b16 %v4951
        %v5023 = vunpack.c.l.b16 %v4952
        %v5024 = vunpack.c.l.b16 %v4953
        %v5025 = vunpack.c.l.b16 %v4954
        %v5026 = vunpack.c.l.b16 %v4955
        %v5027 = vunpack.c.l.b16 %v4956
        %v5028 = vunpack.c.l.b16 %v4957
        %v5029 = vunpack.c.l.b16 %v4958
        %v5030 = vunpack.c.l.b16 %v4959
        %v5031 = vunpack.c.l.b16 %v4960
        %v5032 = vunpack.c.l.b16 %v4961
        %v5033 = vunpack.c.l.b16 %v4962
        %v5034 = vunpack.c.l.b16 %v4963
        %v5035 = vunpack.c.l.b16 %v4964
        %v5036 = vunpack.c.l.b16 %v4965
        %v5037 = vunpack.c.l.b16 %v4966
        %v5038 = vunpack.c.l.b16 %v4967
        %v5039 = vunpack.c.l.b16 %v4968
        %v5040 = vpack.c.b16 %v5009, %v5008
        %v5041 = vpack.c.b16 %v5011, %v5010
        %v5042 = vpack.c.b16 %v5013, %v5012
        %v5043 = vpack.c.b16 %v5015, %v5014
        %v5044 = vpack.c.b16 %v5017, %v5016
        %v5045 = vpack.c.b16 %v5019, %v5018
        %v5046 = vpack.c.b16 %v5021, %v5020
        %v5047 = vpack.c.b16 %v5023, %v5022
        %v5048 = vpack.c.b16 %v5025, %v5024
        %v5049 = vpack.c.b16 %v5027, %v5026
        %v5050 = vpack.c.b16 %v5029, %v5028
        %v5051 = vpack.c.b16 %v5031, %v5030
        %v5052 = vpack.c.b16 %v5033, %v5032
        %v5053 = vpack.c.b16 %v5035, %v5034
        %v5054 = vpack.c.b16 %v5037, %v5036
        %v5055 = vpack.c.b16 %v5039, %v5038
        %5072 = vmatprep.subr.bf16.mxu0 0
        %5073 = vmatpush1.bf16.msra.mxu0 %v5040
        %5074 = vmatprep.subr.bf16.mxu0 0
        %5075 = vmatpush1.bf16.msra.mxu0 %v5041
        %5076 = vmatprep.subr.bf16.mxu0 0
        %5077 = vmatpush1.bf16.msra.mxu0 %v5042
        %5078 = vmatprep.subr.bf16.mxu0 0
        %5079 = vmatpush1.bf16.msra.mxu0 %v5043
        %5080 = vmatprep.subr.bf16.mxu0 0
        %5081 = vmatpush1.bf16.msra.mxu0 %v5044
        %5082 = vmatprep.subr.bf16.mxu0 0
        %5083 = vmatpush1.bf16.msra.mxu0 %v5045
        %5084 = vmatprep.subr.bf16.mxu0 0
        %5085 = vmatpush1.bf16.msra.mxu0 %v5046
        %5086 = vmatprep.subr.bf16.mxu0 0
        %5087 = vmatpush1.bf16.msra.mxu0 %v5047
        %5088 = vmatprep.subr.bf16.mxu0 0
        %5089 = vmatpush1.bf16.msra.mxu0 %v5048
        %5090 = vmatprep.subr.bf16.mxu0 0
        %5091 = vmatpush1.bf16.msra.mxu0 %v5049
        %5092 = vmatprep.subr.bf16.mxu0 0
        %5093 = vmatpush1.bf16.msra.mxu0 %v5050
        %5094 = vmatprep.subr.bf16.mxu0 0
        %5095 = vmatpush1.bf16.msra.mxu0 %v5051
        %5096 = vmatprep.subr.bf16.mxu0 0
        %5097 = vmatpush1.bf16.msra.mxu0 %v5052
        %5098 = vmatprep.subr.bf16.mxu0 0
        %5099 = vmatpush1.bf16.msra.mxu0 %v5053
        %5100 = vmatprep.subr.bf16.mxu0 0
        %5101 = vmatpush1.bf16.msra.mxu0 %v5054
        %5102 = vmatprep.subr.bf16.mxu0 0
        %5103 = vmatpush1.bf16.msra.mxu0 %v5055
        %5104 = vmatprep.mubr.bf16.mxu0 %v4936
        %5105 = vmatmul.mubr.bf16.gmra.mrb[0].mxu0 %v4935
        %v5106 = vpop.f32.mrb[0].mxu0
        %v5107 = vadd.f32 %v4974, %v5106
        %v5108 = vpop.f32.mrb[0].mxu0
        %v5109 = vpop.f32.mrb[0].mxu0
        %v5110 = vpop.f32.mrb[0].mxu0
        %5111 = vdwg.mxu0
        %5112 = vst [vmem:[%s326] sm:$0x3] %v5107
      $region56: #{cnn_policy_forward.3} parent=47 // pred_fallthru
        _
      %p5113 = scmp.lt.s32.totalorder %s22, 0
      %s5114 = scalar_select %p5113, %s22, 0
      %s5115 = smul.addr %s5114, 2
      %s5116 = scalar_lea.vmem %s7, %s5115
      // Predicated region
      $region57: #{cnn_policy_forward.3} parent=47 // pred_check
        %p5117 = pneg %p207
      $region58: #{cnn_policy_forward.3} parent=47 // pred_check_branch
        %5119 = sbr.rel (%p5117) target = $region60
      $region59: #{cnn_policy_forward.3} parent=47 // pred_region
        _
      $region60: #{cnn_policy_forward.3} parent=47 // pred_fallthru
        _
      // Predicated region
      $region61: #{cnn_policy_forward.3} parent=47 // pred_check
        %p5120 = pneg %p207
      $region62: #{cnn_policy_forward.3} parent=47 // pred_check_branch
        %5122 = sbr.rel (%p5120) target = $region64
      $region63: #{cnn_policy_forward.3} parent=47 // pred_region
        %p5123 = scmp.lt.s32.totalorder %s22, 0
        %s5124 = scalar_select %p5123, %s22, 0
        %s5125 = smul.addr %s5124, 2
        %s5126 = scalar_lea.vmem %s7, %s5125
      $region64: #{cnn_policy_forward.3} parent=47 // pred_fallthru
        _
    $region48: #{cnn_policy_forward.3} parent=5 // pred_fallthru
      _
    %p5127 = scmp.le.s32.totalorder 2, %s13
    // Predicated region
    $region65: #{cnn_policy_forward.3} parent=5 // pred_check
      %p5128 = pneg %p5127
    $region66: #{cnn_policy_forward.3} parent=5 // pred_check_branch
      %5130 = sbr.rel (%p5128) target = $region68
    $region67: #{cnn_policy_forward.3} parent=5 // pred_region
      %s5131 = ssub.s32 %s13, 2
    $region68: #{cnn_policy_forward.3} parent=5 // pred_fallthru
      _
  $region6: #{cnn_policy_forward.3} parent=0 // loop_footer
    %s17 = sadd.s32 1, %s13
  $region7: #{cnn_policy_forward.3} parent=0 // loop_footer_branch
    %12 = sbr.rel target = $region3
  $region8: #{cnn_policy_forward.3} parent=0 // loop_exit
    _

</llo_original>
